<compile_context>
chip_gen: v7x
topology: tpu7x:2x2x1
jax: 0.10.0
libtpu: 0.0.40
codegen_flags: <defaults>
</compile_context>

<pallas_src>
import numpy as np
import jax
import jax.numpy as jnp
from jax.experimental import pallas as pl
from jax.experimental.pallas import tpu as pltpu

# ---------------------------------------------------------------------------
# Static configuration (small, consistent with the module's forward pass).
# ---------------------------------------------------------------------------
B = 2            # batch
L = 8            # residues (sequence length)
C_S = 32         # single-rep channels
C_Z = 16         # pair-rep channels
D_H = 16         # attention head dim
C_H = 32         # structure-module hidden dim
ATOM37 = 37
ATOM14 = 14
NBINS = 15       # recycling distogram bins
NUM_STEPS = 100  # diffusion steps
MAX_RECYCLE = 1  # -> 2 recycling iterations
GLY_IDX = 7      # glycine index (residue_constants convention)

BL = B * L           # 16
BLL = B * L * L      # 128

F32 = jnp.float32

# ---------------------------------------------------------------------------
# Compile-time numpy constants (packed into ONE const slab -> one DMA).
# ---------------------------------------------------------------------------
_bins = np.linspace(3.25, 20.75, NBINS)
BIN_LO_NP = (_bins ** 2).astype(np.float32)                                   # (15,)
BIN_HI_NP = (np.concatenate([_bins[1:], [1e8]]) ** 2).astype(np.float32)      # (15,)

# Flattened pair index r = b*L*L + i*L + j  <->  residues p = b*L + i, q = b*L + j.
_r = np.arange(BLL)
_p = _r // L
_q = (_r // (L * L)) * L + (_r % L)
SEL_I_NP = np.zeros((BLL, BL), np.float32); SEL_I_NP[_r, _p] = 1.0
SEL_J_NP = np.zeros((BLL, BL), np.float32); SEL_J_NP[_r, _q] = 1.0
SEL_IT_NP = np.ascontiguousarray(SEL_I_NP.T)                 # (16, 128)
SEL_DT_NP = np.ascontiguousarray((SEL_I_NP - SEL_J_NP).T)    # (16, 128)
SAME_BATCH_NP = (np.arange(BL)[:, None] // L ==
                 np.arange(BL)[None, :] // L).astype(np.float32)   # (16, 16)

# Dense rigid-apply constants:  global[p, 3a+k] = sum_c R[p,k,c]*local[p,3a+c] + t[p,k]
TILE3_NP = np.zeros((ATOM14 * 3, ATOM14 * 9), np.float32)    # (42, 126)
GSUM_NP = np.zeros((ATOM14 * 9, ATOM14 * 3), np.float32)     # (126, 42)
PTILE_NP = np.zeros((3, ATOM14 * 3), np.float32)             # (3, 42)
for _a in range(ATOM14):
    for _k in range(3):
        for _c in range(3):
            TILE3_NP[3 * _a + _c, 9 * _a + 3 * _k + _c] = 1.0
            GSUM_NP[9 * _a + 3 * _k + _c, 3 * _a + _k] = 1.0
    for _c in range(3):
        PTILE_NP[_c, 3 * _a + _c] = 1.0

# Constant slab layout (rows, lane-padded to 128; every block starts on an 8-row boundary)
CONST_ROWS = 360
_cs = np.zeros((CONST_ROWS, 128), np.float32)
_cs[0:16, :] = SEL_IT_NP            # sel_it   (16,128)
_cs[16:32, :] = SEL_DT_NP           # sel_dt   (16,128)
_cs[32:160, 0:BL] = SEL_J_NP        # sel_j    (128,16)
_cs[160:202, 0:126] = TILE3_NP      # tile3    (42,126)
_cs[208:334, 0:42] = GSUM_NP        # gsum     (126,42)
_cs[336:339, 0:42] = PTILE_NP       # ptile    (3,42)
_cs[344:359, 0] = BIN_LO_NP         # bin_lo   (15,1)
_cs[344:359, 1] = BIN_HI_NP         # bin_hi   (15,1)
CONST_SLAB_NP = _cs

W_ROWS = 344   # weight slab rows (see pack_weight_slab)


# ---------------------------------------------------------------------------
# Fused Pallas kernel: recycling embedder + constrainformer + structure head,
# full recycle loop unrolled in-kernel, single grid step.
# ---------------------------------------------------------------------------
def fused_denoise_kernel(s_init_ref, z_init_ref, rmrep_ref, pgm_ref, c_ref, w_ref,
                         out_ref):
    eps = 1e-5
    inv_sqrt_dh = 1.0 / (D_H ** 0.5)

    # ---- dynamic inputs -------------------------------------------------
    s_init = s_init_ref[...]              # (16, 32)   residue-major single rep
    z_init = z_init_ref[...]              # (16, 128)  channels-first pair rep
    rm_rep = rmrep_ref[...]               # (16, 126)  rotation rows tiled x14
    p0 = pgm_ref[:, 0:3]                  # (16, 3)    initial translations
    gly = pgm_ref[:, 3:4]                 # (16, 1)    glycine indicator
    amask = pgm_ref[:, 4:20]              # (16, 16)   additive attn bias (key mask + cross-batch)

    # ---- constant slab ---------------------------------------------------
    sel_it = c_ref[0:16, :]               # (16, 128)
    sel_dt = c_ref[16:32, :]              # (16, 128)
    sel_j = c_ref[32:160, 0:BL]           # (128, 16)
    tile3 = c_ref[160:202, 0:126]         # (42, 126)
    gsum = c_ref[208:334, 0:42]           # (126, 42)
    ptile = c_ref[336:339, 0:42]          # (3, 42)
    bin_lo = c_ref[344:359, 0:1]          # (15, 1)
    bin_hi = c_ref[344:359, 1:2]          # (15, 1)

    # ---- weight slab -----------------------------------------------------
    gs = w_ref[0:1, 0:32]                 # (1, 32)  s-LN gamma
    bs = w_ref[0:1, 32:64]                # (1, 32)  s-LN beta
    gz = w_ref[8:24, 0:1]                 # (16, 1)  z-LN gamma (channels-first)
    bz = w_ref[8:24, 1:2]                 # (16, 1)
    wb = w_ref[8:24, 2:3]                 # (16, 1)  pair-bias weight
    wd_t = w_ref[8:24, 3:18]              # (16, 15) distogram weight, transposed
    wqkv = w_ref[24:56, 0:48]             # (32, 48) fused Q|K|V
    wo = w_ref[56:72, 0:32]               # (16, 32)
    w1 = w_ref[72:104, 0:128]             # (32, 128)
    w2 = w_ref[104:232, 0:32]             # (128, 32)
    wz1t = w_ref[232:264, 0:16]           # (32, 16) pair transition 1 (transposed)
    wz2t = w_ref[264:280, 0:32]           # (16, 32) pair transition 2 (transposed)
    sw1 = w_ref[280:312, 0:32]            # (32, 32)
    swtp = w_ref[312:344, 0:45]           # (32, 45) fused trans|local14

    def ln_rows(x, gamma, beta):          # LayerNorm over last axis (s stream)
        mu = jnp.mean(x, axis=-1, keepdims=True)
        var = jnp.mean((x - mu) ** 2, axis=-1, keepdims=True)
        return (x - mu) * jax.lax.rsqrt(var + eps) * gamma + beta

    def ln_cols(x, gamma, beta):          # LayerNorm over channel axis 0 (z stream, channels-first)
        mu = jnp.mean(x, axis=0, keepdims=True)
        var = jnp.mean((x - mu) ** 2, axis=0, keepdims=True)
        return (x - mu) * jax.lax.rsqrt(var + eps) * gamma + beta

    # recycle-loop carried state (first iteration: zeros, matching the reference)
    s_prev = jnp.zeros((BL, C_S), F32)
    z_prev = jnp.zeros((C_Z, BLL), F32)
    x_pb = jnp.zeros((BL, 3), F32)        # pseudo-beta of x_prev (global)

    global14 = jnp.zeros((BL, ATOM14 * 3), F32)
    p_new = p0

    for _cycle in range(MAX_RECYCLE + 1):
        # ---------------- RecyclingEmbedder ----------------
        s = s_init + ln_rows(s_prev, gs, bs)                                   # (16, 32)
        z_ln = ln_cols(z_prev, gz, bz)                                         # (16, 128)

        # pairwise squared distance of pseudo-beta atoms, lane-major (1, 128)
        x_t = x_pb.T                                                           # (3, 16)
        xdiff = jnp.dot(x_t, sel_dt, preferred_element_type=F32)              # (3, 128) = x_i - x_j
        d2_row = jnp.sum(xdiff * xdiff, axis=0, keepdims=True)                # (1, 128)
        onehot = jnp.logical_and(d2_row > bin_lo, d2_row < bin_hi).astype(F32)  # (15, 128)
        zd = jnp.dot(wd_t, onehot, preferred_element_type=F32)                # (16, 128)

        z = z_init + z_ln + zd                                                 # (16, 128)

        # ---------------- ConstrainFormer ----------------
        qkv = jnp.dot(s, wqkv, preferred_element_type=F32)                     # (16, 48)
        q = qkv[:, 0:D_H]
        k = qkv[:, D_H:2 * D_H]
        v = qkv[:, 2 * D_H:3 * D_H]

        # pair bias: per-pair scalar (1,128) scattered onto the block diagonal
        brow = jnp.sum(wb * z, axis=0, keepdims=True)                          # (1, 128)
        bias = jnp.dot(sel_it * brow, sel_j, preferred_element_type=F32)       # (16, 16) block-diag

        logits = jnp.dot(q, k.T, preferred_element_type=F32) * inv_sqrt_dh
        logits = logits + bias + amask                                         # (16, 16)
        logits = logits - jnp.max(logits, axis=-1, keepdims=True)
        pexp = jnp.exp(logits)
        probs = pexp / jnp.sum(pexp, axis=-1, keepdims=True)                   # exact softmax
        o = jnp.dot(probs, v, preferred_element_type=F32)                      # (16, 16)

        s1 = s + jnp.dot(o, wo, preferred_element_type=F32)                    # (16, 32)
        h = jnp.maximum(jnp.dot(s1, w1, preferred_element_type=F32), 0.0)      # (16, 128)
        s_new = s1 + jnp.dot(h, w2, preferred_element_type=F32)                # (16, 32)

        # pair transition, channels-first (lane-dense)
        hz = jnp.maximum(jnp.dot(wz1t, z, preferred_element_type=F32), 0.0)    # (32, 128)
        z_new = z + jnp.dot(wz2t, hz, preferred_element_type=F32)              # (16, 128)

        # ---------------- StructureModule head ----------------
        a = jnp.maximum(jnp.dot(s_new, sw1, preferred_element_type=F32), 0.0)  # (16, 32)
        tp = jnp.dot(a, swtp, preferred_element_type=F32)                      # (16, 45)
        trans = tp[:, 0:3]                                                     # (16, 3)
        local14 = tp[:, 3:45]                                                  # (16, 42)
        p_new = p0 + trans                                                     # (16, 3)

        # dense rigid apply for all 14 atoms: global = R @ local + p
        local_rep = jnp.dot(local14, tile3, preferred_element_type=F32)        # (16, 126)
        glob_rot = jnp.dot(local_rep * rm_rep, gsum, preferred_element_type=F32)  # (16, 42)
        p_rep = jnp.dot(p_new, ptile, preferred_element_type=F32)              # (16, 42)
        global14 = glob_rot + p_rep                                            # (16, 42)

        # pseudo-beta for the next recycle: CA (atom14 idx 1) for glycine, CB (idx 4) otherwise
        ca_g = global14[:, 3:6]
        cb_g = global14[:, 12:15]
        x_pb = jnp.where(gly > 0.5, ca_g, cb_g)

        s_prev = s_new
        z_prev = z_new

    # single output slab: [global14 (42) | p_new (3)]
    out_ref[...] = jnp.concatenate([global14, p_new], axis=-1)                 # (16, 45)


# ---------------------------------------------------------------------------
# Weight slab packing (called ONCE outside jit).
# ---------------------------------------------------------------------------
def pack_weight_slab(params):
    def pad(x, rows):
        x = x.astype(F32)
        return jnp.pad(x, ((0, rows - x.shape[0]), (0, 128 - x.shape[1])))

    zpar = jnp.concatenate([params['rc_gamma_z'].reshape(C_Z, 1),
                            params['rc_beta_z'].reshape(C_Z, 1),
                            params['cf_wb'].reshape(C_Z, 1),
                            params['rc_w_dgram'].T], axis=-1)                  # (16, 18)
    blocks = [
        pad(jnp.concatenate([params['rc_gamma_s'], params['rc_beta_s']], axis=-1), 8),   # rows   0:8
        pad(zpar, 16),                                                                   # rows   8:24
        pad(jnp.concatenate([params['cf_wq'], params['cf_wk'], params['cf_wv']], -1), 32),  # 24:56
        pad(params['cf_wo'], 16),                                                        # rows  56:72
        pad(params['cf_w1'], 32),                                                        # rows  72:104
        pad(params['cf_w2'], 128),                                                       # rows 104:232
        pad(params['cf_wz1'].T, 32),                                                     # rows 232:264
        pad(params['cf_wz2'].T, 16),                                                     # rows 264:280
        pad(params['sm_w1'], 32),                                                        # rows 280:312
        pad(jnp.concatenate([params['sm_wt'], params['sm_wp']], axis=-1), 32),           # rows 312:344
    ]
    wslab = jnp.concatenate(blocks, axis=0)
    assert wslab.shape == (W_ROWS, 128)
    return wslab


# ---------------------------------------------------------------------------
# Pallas wrapper (single launch, single grid step; everything resident in VMEM)
# ---------------------------------------------------------------------------
def fused_denoise_core(s_init, z_init, R, p, aatype, seq_mask, wslab):
    s_flat = s_init.reshape(BL, C_S)                                  # (16, 32)
    z_cf = z_init.reshape(BLL, C_Z).T                                 # (16, 128) channels-first
    rm_rep = jnp.tile(R.reshape(BL, 9), (1, ATOM14))                  # (16, 126)
    gly = (aatype.reshape(BL, 1) == GLY_IDX).astype(F32)              # (16, 1)

    # additive attention bias: key mask inside each batch block, -1e9 cross-batch
    key_flat = ((seq_mask - 1.0) * 1e9).reshape(BL)                   # (16,)
    amask = jnp.where(jnp.asarray(SAME_BATCH_NP) > 0, key_flat[None, :], -1e9)  # (16, 16)

    pgm = jnp.concatenate([p.reshape(BL, 3), gly, amask], axis=-1)    # (16, 20)
    cslab = jnp.asarray(CONST_SLAB_NP)                                # (360, 128) jit constant

    args = (s_flat, z_cf, rm_rep, pgm, cslab, wslab)
    in_specs = [pl.BlockSpec(a.shape, lambda i: (0, 0)) for a in args]

    out = pl.pallas_call(
        fused_denoise_kernel,
        out_shape=jax.ShapeDtypeStruct((BL, ATOM14 * 3 + 3), F32),
        grid_spec=pltpu.PrefetchScalarGridSpec(
            num_scalar_prefetch=0,
            grid=(1,),
            in_specs=in_specs,
            out_specs=pl.BlockSpec((BL, ATOM14 * 3 + 3), lambda i: (0, 0))),
        compiler_params=pltpu.CompilerParams(
            dimension_semantics=("arbitrary",)),
    )(*args)
    return out                                                        # (16, 45)


# ---------------------------------------------------------------------------
# Geometry / diffusion glue (plain JAX)
# ---------------------------------------------------------------------------
def decoy_to_rigids(x37):
    """atom37_to_rigids: backbone frame via Gram-Schmidt over (N, CA, C)."""
    eps = 1e-8
    n, ca, c = x37[..., 0, :], x37[..., 1, :], x37[..., 2, :]
    v1, v2 = c - ca, n - ca
    e1 = v1 / (jnp.linalg.norm(v1, axis=-1, keepdims=True) + eps)
    u2 = v2 - jnp.sum(e1 * v2, axis=-1, keepdims=True) * e1
    e2 = u2 / (jnp.linalg.norm(u2, axis=-1, keepdims=True) + eps)
    e3 = jnp.cross(e1, e2)
    R = jnp.stack([e1, e2, e3], axis=-1)     # columns are the frame axes
    return R, ca


def rotation_to_so3vec(R):
    tr = R[..., 0, 0] + R[..., 1, 1] + R[..., 2, 2]
    cos = jnp.clip((tr - 1.0) / 2.0, -1.0 + 1e-6, 1.0 - 1e-6)
    theta = jnp.arccos(cos)
    w = jnp.stack([R[..., 2, 1] - R[..., 1, 2],
                   R[..., 0, 2] - R[..., 2, 0],
                   R[..., 1, 0] - R[..., 0, 1]], axis=-1)
    axis = w / (2.0 * jnp.sin(theta)[..., None] + 1e-8)
    return axis * theta[..., None]


def so3vec_to_rotation(v):
    theta = jnp.linalg.norm(v, axis=-1, keepdims=True) + 1e-8
    a = v / theta
    ax, ay, az = a[..., 0], a[..., 1], a[..., 2]
    zeros = jnp.zeros_like(ax)
    K = jnp.stack([jnp.stack([zeros, -az, ay], -1),
                   jnp.stack([az, zeros, -ax], -1),
                   jnp.stack([-ay, ax, zeros], -1)], -2)
    th = theta[..., None]
    I = jnp.eye(3, dtype=v.dtype)
    return I + jnp.sin(th) * K + (1.0 - jnp.cos(th)) * (K @ K)


def add_noise(v0, p0, seq_mask, time_step, key):
    """RotationTransition / PositionTransition add_noise (DDPM schedule)."""
    # TODO(synk): rotation noise uses a Gaussian so3-vector approximation instead of IGSO(3) sampling.
    betas = jnp.linspace(1e-4, 0.02, NUM_STEPS)
    alpha_bar = jnp.cumprod(1.0 - betas)
    ab = alpha_bar[time_step][:, None, None]                  # (B,1,1)
    k1, k2 = jax.random.split(key)
    eps_v = jax.random.normal(k1, v0.shape, F32)
    eps_p = jax.random.normal(k2, p0.shape, F32)
    v_noisy = jnp.sqrt(ab) * v0 + jnp.sqrt(1.0 - ab) * 0.1 * eps_v
    p_noisy = jnp.sqrt(ab) * p0 + jnp.sqrt(1.0 - ab) * eps_p
    m = seq_mask[..., None]
    return jnp.where(m > 0, v_noisy, v0), jnp.where(m > 0, p_noisy, p0), eps_p


# ---------------------------------------------------------------------------
# Parameters / decoy embedding
# ---------------------------------------------------------------------------
def init_params(key):
    def w(k, shape, scale=0.1):
        return scale * jax.random.normal(k, shape, F32)
    ks = jax.random.split(key, 16)
    return {
        'w_aa_s': w(ks[0], (21, C_S)),
        'w_rel_z': w(ks[1], (17, C_Z)),
        'rc_gamma_s': jnp.ones((1, C_S), F32), 'rc_beta_s': jnp.zeros((1, C_S), F32),
        'rc_gamma_z': jnp.ones((1, C_Z), F32), 'rc_beta_z': jnp.zeros((1, C_Z), F32),
        'rc_w_dgram': w(ks[2], (NBINS, C_Z)),
        'cf_wq': w(ks[3], (C_S, D_H)), 'cf_wk': w(ks[4], (C_S, D_H)),
        'cf_wv': w(ks[5], (C_S, D_H)), 'cf_wb': w(ks[6], (1, C_Z)),
        'cf_wo': w(ks[7], (D_H, C_S)),
        'cf_w1': w(ks[8], (C_S, 4 * C_S)), 'cf_w2': w(ks[9], (4 * C_S, C_S)),
        'cf_wz1': w(ks[10], (C_Z, 2 * C_Z)), 'cf_wz2': w(ks[11], (2 * C_Z, C_Z)),
        'sm_w1': w(ks[12], (C_S, C_H)), 'sm_wt': w(ks[13], (C_H, 3)),
        'sm_wp': w(ks[14], (C_H, ATOM14 * 3)),
    }


def embed_decoy(params, batch):
    """DecoyEncoder (simplified): aatype embedding + relative-position pair embedding."""
    aatype = batch['decoy_aatype']
    s = jax.nn.one_hot(aatype, 21, dtype=F32) @ params['w_aa_s']          # (B,L,C_S)
    ri = jnp.arange(L)
    rel = jnp.clip(ri[None, :] - ri[:, None], -8, 8) + 8
    z_rel = jax.nn.one_hot(rel, 17, dtype=F32) @ params['w_rel_z']        # (L,L,C_Z)
    z = jnp.broadcast_to(z_rel[None], (B, L, L, C_Z)) + 0.0
    t = None  # TODO(synk): time embedding `t` feeds decoy_pointwise_att, which is not defined in the module's __init__.
    return s, z, t


# ---------------------------------------------------------------------------
# Module forward
# ---------------------------------------------------------------------------
def denoise_forward(params, wslab, batch, time_step, noise_key, denoise_structure=True):
    seq_mask = batch['decoy_seq_mask']
    aatype = batch['decoy_aatype']
    s, z, _t = embed_decoy(params, batch)

    R0, p0 = decoy_to_rigids(batch['decoy_all_atom_positions'])
    v0 = rotation_to_so3vec(R0)

    if denoise_structure:
        v_noisy, p_noisy, _eps_p = add_noise(v0, p0, seq_mask, time_step, noise_key)
        R_noisy = so3vec_to_rotation(v_noisy)
        rigids = (R_noisy, p_noisy)
    else:
        rigids = (R0, p0)
    R, p = rigids

    # Fused kernel: recycling embedder + constrainformer + structure head + rigid apply,
    # full recycle loop in-kernel.  TODO(synk): self.decoy_pointwise_att is referenced
    # but never constructed in the PyTorch module; skipped.
    out_slab = fused_denoise_core(s, z, R, p, aatype, seq_mask, wslab)   # (16, 45)

    atom14_global = out_slab[:, :ATOM14 * 3].reshape(B, L, ATOM14, 3)
    p_new = out_slab[:, ATOM14 * 3:ATOM14 * 3 + 3].reshape(B, L, 3)

    # atom14 -> atom37 placement
    atom37 = jnp.zeros((B, L, ATOM37, 3), F32).at[:, :, :ATOM14, :].set(atom14_global)
    # TODO(synk): residue-type-specific atom14->atom37 index tables omitted (synthetic mapping into first 14 slots).

    affine = jnp.concatenate([R.reshape(B, L, 9), p_new], axis=-1)
    outputs = {
        'sm': {'positions': atom14_global[None], 'frames': affine[None]},
        'final_atom_positions': atom37,
        'final_atom_mask': batch['decoy_atom37_atom_exists'],
        'final_affine_tensor': affine,
    }
    return outputs


# ---------------------------------------------------------------------------
# Main
# ---------------------------------------------------------------------------
if __name__ == "__main__":
    key = jax.random.PRNGKey(0)
    k_param, k_aa, k_pos, k_t, k_noise = jax.random.split(key, 5)

    params = init_params(k_param)
    wslab = pack_weight_slab(params)          # packed once, outside jit -> one DMA per call

    batch = {
        'decoy_aatype': jax.random.randint(k_aa, (B, L), 0, 21),
        'decoy_all_atom_positions': 3.0 * jax.random.normal(k_pos, (B, L, ATOM37, 3), F32),
        'decoy_all_atom_mask': jnp.ones((B, L, ATOM37), F32),
        'decoy_seq_mask': jnp.ones((B, L), F32),
        'decoy_atom37_atom_exists': jnp.ones((B, L, ATOM37), F32),
    }
    time_step = jax.random.randint(k_t, (B,), 0, NUM_STEPS)

    fwd = jax.jit(denoise_forward)
    outputs = fwd(params, wslab, batch, time_step, k_noise)
    jax.block_until_ready(outputs['final_atom_positions'])

    assert outputs['final_atom_positions'].shape == (B, L, ATOM37, 3)
    assert outputs['final_affine_tensor'].shape == (B, L, 12)
    assert bool(jnp.all(jnp.isfinite(outputs['final_atom_positions'])))
    print("KERNEL_OK")
</pallas_src>

<mosaic_0001>
module attributes {stable_mosaic.version = 11 : i64} {
  func.func @fused_denoise_kernel(%arg0: i32, %arg1: memref<16x32xf32, #tpu.memory_space<vmem>>, %arg2: memref<16x128xf32, #tpu.memory_space<vmem>>, %arg3: memref<16x126xf32, #tpu.memory_space<vmem>>, %arg4: memref<16x20xf32, #tpu.memory_space<vmem>>, %arg5: memref<360x128xf32, #tpu.memory_space<vmem>>, %arg6: memref<344x128xf32, #tpu.memory_space<vmem>>, %arg7: memref<16x45xf32, #tpu.memory_space<vmem>>) attributes {dimension_semantics = [#tpu.dimension_semantics<arbitrary>], iteration_bounds = array<i64: 1>, scalar_prefetch = 0 : i64, scratch_operands = 0 : i64, tpu.core_type = #tpu.core_type<tc>, window_params = [{pipeline_mode = #tpu.pipeline_mode<synchronous>, transform_indices = @transform_0, window_bounds = array<i64: 16, 32>}, {pipeline_mode = #tpu.pipeline_mode<synchronous>, transform_indices = @transform_1, window_bounds = array<i64: 16, 128>}, {pipeline_mode = #tpu.pipeline_mode<synchronous>, transform_indices = @transform_2, window_bounds = array<i64: 16, 126>}, {pipeline_mode = #tpu.pipeline_mode<synchronous>, transform_indices = @transform_3, window_bounds = array<i64: 16, 20>}, {pipeline_mode = #tpu.pipeline_mode<synchronous>, transform_indices = @transform_4, window_bounds = array<i64: 360, 128>}, {pipeline_mode = #tpu.pipeline_mode<synchronous>, transform_indices = @transform_5, window_bounds = array<i64: 344, 128>}, {pipeline_mode = #tpu.pipeline_mode<synchronous>, transform_indices = @transform_6, window_bounds = array<i64: 16, 45>}]} {
    %c0 = arith.constant 0 : index
    %c0_0 = arith.constant 0 : index
    %0 = vector.load %arg1[%c0, %c0_0] : memref<16x32xf32, #tpu.memory_space<vmem>>, vector<16x32xf32>
    %c0_1 = arith.constant 0 : index
    %c0_2 = arith.constant 0 : index
    %1 = vector.load %arg2[%c0_1, %c0_2] : memref<16x128xf32, #tpu.memory_space<vmem>>, vector<16x128xf32>
    %c0_3 = arith.constant 0 : index
    %c0_4 = arith.constant 0 : index
    %2 = vector.load %arg3[%c0_3, %c0_4] : memref<16x126xf32, #tpu.memory_space<vmem>>, vector<16x126xf32>
    %c0_5 = arith.constant 0 : index
    %c0_6 = arith.constant 0 : index
    %3 = vector.load %arg4[%c0_5, %c0_6] : memref<16x20xf32, #tpu.memory_space<vmem>>, vector<16x3xf32>
    %c0_7 = arith.constant 0 : index
    %c3 = arith.constant 3 : index
    %4 = vector.load %arg4[%c0_7, %c3] : memref<16x20xf32, #tpu.memory_space<vmem>>, vector<16x1xf32>
    %c0_8 = arith.constant 0 : index
    %c4 = arith.constant 4 : index
    %5 = vector.load %arg4[%c0_8, %c4] : memref<16x20xf32, #tpu.memory_space<vmem>>, vector<16x16xf32>
    %c0_9 = arith.constant 0 : index
    %c0_10 = arith.constant 0 : index
    %6 = vector.load %arg5[%c0_9, %c0_10] : memref<360x128xf32, #tpu.memory_space<vmem>>, vector<16x128xf32>
    %c16 = arith.constant 16 : index
    %c0_11 = arith.constant 0 : index
    %7 = vector.load %arg5[%c16, %c0_11] : memref<360x128xf32, #tpu.memory_space<vmem>>, vector<16x128xf32>
    %c32 = arith.constant 32 : index
    %c0_12 = arith.constant 0 : index
    %8 = vector.load %arg5[%c32, %c0_12] : memref<360x128xf32, #tpu.memory_space<vmem>>, vector<128x16xf32>
    %c160 = arith.constant 160 : index
    %c0_13 = arith.constant 0 : index
    %9 = vector.load %arg5[%c160, %c0_13] : memref<360x128xf32, #tpu.memory_space<vmem>>, vector<42x126xf32>
    %c208 = arith.constant 208 : index
    %c0_14 = arith.constant 0 : index
    %10 = vector.load %arg5[%c208, %c0_14] : memref<360x128xf32, #tpu.memory_space<vmem>>, vector<126x42xf32>
    %c336 = arith.constant 336 : index
    %c0_15 = arith.constant 0 : index
    %11 = vector.load %arg5[%c336, %c0_15] : memref<360x128xf32, #tpu.memory_space<vmem>>, vector<3x42xf32>
    %c344 = arith.constant 344 : index
    %c0_16 = arith.constant 0 : index
    %12 = vector.load %arg5[%c344, %c0_16] : memref<360x128xf32, #tpu.memory_space<vmem>>, vector<15x1xf32>
    %c344_17 = arith.constant 344 : index
    %c1 = arith.constant 1 : index
    %13 = vector.load %arg5[%c344_17, %c1] : memref<360x128xf32, #tpu.memory_space<vmem>>, vector<15x1xf32>
    %c0_18 = arith.constant 0 : index
    %c0_19 = arith.constant 0 : index
    %14 = vector.load %arg6[%c0_18, %c0_19] : memref<344x128xf32, #tpu.memory_space<vmem>>, vector<1x32xf32>
    %c0_20 = arith.constant 0 : index
    %c32_21 = arith.constant 32 : index
    %15 = vector.load %arg6[%c0_20, %c32_21] : memref<344x128xf32, #tpu.memory_space<vmem>>, vector<1x32xf32>
    %c8 = arith.constant 8 : index
    %c0_22 = arith.constant 0 : index
    %16 = vector.load %arg6[%c8, %c0_22] : memref<344x128xf32, #tpu.memory_space<vmem>>, vector<16x1xf32>
    %c8_23 = arith.constant 8 : index
    %c1_24 = arith.constant 1 : index
    %17 = vector.load %arg6[%c8_23, %c1_24] : memref<344x128xf32, #tpu.memory_space<vmem>>, vector<16x1xf32>
    %c8_25 = arith.constant 8 : index
    %c2 = arith.constant 2 : index
    %18 = vector.load %arg6[%c8_25, %c2] : memref<344x128xf32, #tpu.memory_space<vmem>>, vector<16x1xf32>
    %c8_26 = arith.constant 8 : index
    %c3_27 = arith.constant 3 : index
    %19 = vector.load %arg6[%c8_26, %c3_27] : memref<344x128xf32, #tpu.memory_space<vmem>>, vector<16x15xf32>
    %c24 = arith.constant 24 : index
    %c0_28 = arith.constant 0 : index
    %20 = vector.load %arg6[%c24, %c0_28] : memref<344x128xf32, #tpu.memory_space<vmem>>, vector<32x48xf32>
    %c56 = arith.constant 56 : index
    %c0_29 = arith.constant 0 : index
    %21 = vector.load %arg6[%c56, %c0_29] : memref<344x128xf32, #tpu.memory_space<vmem>>, vector<16x32xf32>
    %c72 = arith.constant 72 : index
    %c0_30 = arith.constant 0 : index
    %22 = vector.load %arg6[%c72, %c0_30] : memref<344x128xf32, #tpu.memory_space<vmem>>, vector<32x128xf32>
    %c104 = arith.constant 104 : index
    %c0_31 = arith.constant 0 : index
    %23 = vector.load %arg6[%c104, %c0_31] : memref<344x128xf32, #tpu.memory_space<vmem>>, vector<128x32xf32>
    %c232 = arith.constant 232 : index
    %c0_32 = arith.constant 0 : index
    %24 = vector.load %arg6[%c232, %c0_32] : memref<344x128xf32, #tpu.memory_space<vmem>>, vector<32x16xf32>
    %c264 = arith.constant 264 : index
    %c0_33 = arith.constant 0 : index
    %25 = vector.load %arg6[%c264, %c0_33] : memref<344x128xf32, #tpu.memory_space<vmem>>, vector<16x32xf32>
    %c280 = arith.constant 280 : index
    %c0_34 = arith.constant 0 : index
    %26 = vector.load %arg6[%c280, %c0_34] : memref<344x128xf32, #tpu.memory_space<vmem>>, vector<32x32xf32>
    %c312 = arith.constant 312 : index
    %c0_35 = arith.constant 0 : index
    %27 = vector.load %arg6[%c312, %c0_35] : memref<344x128xf32, #tpu.memory_space<vmem>>, vector<32x45xf32>
    %cst = arith.constant 0.000000e+00 : f32
    %28 = vector.broadcast %cst : f32 to vector<16x32xf32>
    %cst_36 = arith.constant 0.000000e+00 : f32
    %29 = vector.broadcast %cst_36 : f32 to vector<16x128xf32>
    %cst_37 = arith.constant 0.000000e+00 : f32
    %30 = vector.broadcast %cst_37 : f32 to vector<16x3xf32>
    %cst_38 = arith.constant dense<0.000000e+00> : vector<16xf32>
    %31 = vector.multi_reduction <add>, %28, %cst_38 [1] : vector<16x32xf32> to vector<16xf32>
    %32 = vector.shape_cast %31 : vector<16xf32> to vector<16x1xf32>
    %cst_39 = arith.constant 3.200000e+01 : f32
    %33 = vector.broadcast %cst_39 : f32 to vector<16x1xf32>
    %34 = arith.divf %32, %33 : vector<16x1xf32>
    %35 = vector.broadcast %34 : vector<16x1xf32> to vector<16x32xf32>
    %36 = arith.subf %28, %35 : vector<16x32xf32>
    %37 = arith.mulf %36, %36 : vector<16x32xf32>
    %cst_40 = arith.constant dense<0.000000e+00> : vector<16xf32>
    %38 = vector.multi_reduction <add>, %37, %cst_40 [1] : vector<16x32xf32> to vector<16xf32>
    %39 = vector.shape_cast %38 : vector<16xf32> to vector<16x1xf32>
    %cst_41 = arith.constant 3.200000e+01 : f32
    %40 = vector.broadcast %cst_41 : f32 to vector<16x1xf32>
    %41 = arith.divf %39, %40 : vector<16x1xf32>
    %42 = vector.broadcast %34 : vector<16x1xf32> to vector<16x32xf32>
    %43 = arith.subf %28, %42 : vector<16x32xf32>
    %cst_42 = arith.constant 9.99999974E-6 : f32
    %44 = vector.broadcast %cst_42 : f32 to vector<16x1xf32>
    %45 = arith.addf %41, %44 : vector<16x1xf32>
    %46 = math.rsqrt %45 : vector<16x1xf32>
    %47 = vector.broadcast %46 : vector<16x1xf32> to vector<16x32xf32>
    %48 = arith.mulf %43, %47 : vector<16x32xf32>
    %49 = vector.broadcast %14 : vector<1x32xf32> to vector<16x32xf32>
    %50 = arith.mulf %48, %49 : vector<16x32xf32>
    %51 = vector.broadcast %15 : vector<1x32xf32> to vector<16x32xf32>
    %52 = arith.addf %50, %51 : vector<16x32xf32>
    %53 = arith.addf %0, %52 : vector<16x32xf32>
    %cst_43 = arith.constant dense<0.000000e+00> : vector<128xf32>
    %54 = vector.multi_reduction <add>, %29, %cst_43 [0] : vector<16x128xf32> to vector<128xf32>
    %55 = vector.shape_cast %54 : vector<128xf32> to vector<1x128xf32>
    %cst_44 = arith.constant 1.600000e+01 : f32
    %56 = vector.broadcast %cst_44 : f32 to vector<1x128xf32>
    %57 = arith.divf %55, %56 : vector<1x128xf32>
    %58 = vector.broadcast %57 : vector<1x128xf32> to vector<16x128xf32>
    %59 = arith.subf %29, %58 : vector<16x128xf32>
    %60 = arith.mulf %59, %59 : vector<16x128xf32>
    %cst_45 = arith.constant dense<0.000000e+00> : vector<128xf32>
    %61 = vector.multi_reduction <add>, %60, %cst_45 [0] : vector<16x128xf32> to vector<128xf32>
    %62 = vector.shape_cast %61 : vector<128xf32> to vector<1x128xf32>
    %cst_46 = arith.constant 1.600000e+01 : f32
    %63 = vector.broadcast %cst_46 : f32 to vector<1x128xf32>
    %64 = arith.divf %62, %63 : vector<1x128xf32>
    %65 = vector.broadcast %57 : vector<1x128xf32> to vector<16x128xf32>
    %66 = arith.subf %29, %65 : vector<16x128xf32>
    %cst_47 = arith.constant 9.99999974E-6 : f32
    %67 = vector.broadcast %cst_47 : f32 to vector<1x128xf32>
    %68 = arith.addf %64, %67 : vector<1x128xf32>
    %69 = math.rsqrt %68 : vector<1x128xf32>
    %70 = vector.broadcast %69 : vector<1x128xf32> to vector<16x128xf32>
    %71 = arith.mulf %66, %70 : vector<16x128xf32>
    %72 = vector.broadcast %16 : vector<16x1xf32> to vector<16x128xf32>
    %73 = arith.mulf %71, %72 : vector<16x128xf32>
    %74 = vector.broadcast %17 : vector<16x1xf32> to vector<16x128xf32>
    %75 = arith.addf %73, %74 : vector<16x128xf32>
    %76 = tpu.transpose %30, [1, 0] : vector<16x3xf32> -> vector<3x16xf32>
    %cst_48 = arith.constant dense<0.000000e+00> : vector<3x128xf32>
    %77 = tpu.matmul %76, %7, %cst_48 {dimension_numbers = #tpu.dot_dimension_numbers<[1], [0], [0], [1], [0, 0, 1, 1], [], []>} : vector<3x16xf32>, vector<16x128xf32>, vector<3x128xf32> -> vector<3x128xf32>
    %78 = arith.mulf %77, %77 : vector<3x128xf32>
    %cst_49 = arith.constant dense<0.000000e+00> : vector<128xf32>
    %79 = vector.multi_reduction <add>, %78, %cst_49 [0] : vector<3x128xf32> to vector<128xf32>
    %80 = vector.shape_cast %79 : vector<128xf32> to vector<1x128xf32>
    %81 = vector.broadcast %80 : vector<1x128xf32> to vector<15x128xf32>
    %82 = vector.broadcast %12 : vector<15x1xf32> to vector<15x128xf32>
    %83 = arith.cmpf ogt, %81, %82 : vector<15x128xf32>
    %84 = vector.broadcast %80 : vector<1x128xf32> to vector<15x128xf32>
    %85 = vector.broadcast %13 : vector<15x1xf32> to vector<15x128xf32>
    %86 = arith.cmpf olt, %84, %85 : vector<15x128xf32>
    %87 = arith.andi %83, %86 : vector<15x128xi1>
    %88 = arith.extui %87 : vector<15x128xi1> to vector<15x128xi32>
    %89 = arith.sitofp %88 : vector<15x128xi32> to vector<15x128xf32>
    %cst_50 = arith.constant dense<0.000000e+00> : vector<16x128xf32>
    %90 = tpu.matmul %19, %89, %cst_50 {dimension_numbers = #tpu.dot_dimension_numbers<[1], [0], [0], [1], [0, 0, 1, 1], [], []>} : vector<16x15xf32>, vector<15x128xf32>, vector<16x128xf32> -> vector<16x128xf32>
    %91 = arith.addf %1, %75 : vector<16x128xf32>
    %92 = arith.addf %91, %90 : vector<16x128xf32>
    %cst_51 = arith.constant dense<0.000000e+00> : vector<16x48xf32>
    %93 = tpu.matmul %53, %20, %cst_51 {dimension_numbers = #tpu.dot_dimension_numbers<[1], [0], [0], [1], [0, 0, 1, 1], [], []>} : vector<16x32xf32>, vector<32x48xf32>, vector<16x48xf32> -> vector<16x48xf32>
    %94 = vector.extract_strided_slice %93 {offsets = [0, 0], sizes = [16, 16], strides = [1, 1]} : vector<16x48xf32> to vector<16x16xf32>
    %95 = vector.extract_strided_slice %93 {offsets = [0, 16], sizes = [16, 16], strides = [1, 1]} : vector<16x48xf32> to vector<16x16xf32>
    %96 = vector.extract_strided_slice %93 {offsets = [0, 32], sizes = [16, 16], strides = [1, 1]} : vector<16x48xf32> to vector<16x16xf32>
    %97 = vector.broadcast %18 : vector<16x1xf32> to vector<16x128xf32>
    %98 = arith.mulf %97, %92 : vector<16x128xf32>
    %cst_52 = arith.constant dense<0.000000e+00> : vector<128xf32>
    %99 = vector.multi_reduction <add>, %98, %cst_52 [0] : vector<16x128xf32> to vector<128xf32>
    %100 = vector.shape_cast %99 : vector<128xf32> to vector<1x128xf32>
    %101 = vector.broadcast %100 : vector<1x128xf32> to vector<16x128xf32>
    %102 = arith.mulf %6, %101 : vector<16x128xf32>
    %cst_53 = arith.constant dense<0.000000e+00> : vector<16x16xf32>
    %103 = tpu.matmul %102, %8, %cst_53 {dimension_numbers = #tpu.dot_dimension_numbers<[1], [0], [0], [1], [0, 0, 1, 1], [], []>} : vector<16x128xf32>, vector<128x16xf32>, vector<16x16xf32> -> vector<16x16xf32>
    %104 = tpu.transpose %95, [1, 0] : vector<16x16xf32> -> vector<16x16xf32>
    %cst_54 = arith.constant dense<0.000000e+00> : vector<16x16xf32>
    %105 = tpu.matmul %94, %104, %cst_54 {dimension_numbers = #tpu.dot_dimension_numbers<[1], [0], [0], [1], [0, 0, 1, 1], [], []>} : vector<16x16xf32>, vector<16x16xf32>, vector<16x16xf32> -> vector<16x16xf32>
    %cst_55 = arith.constant 2.500000e-01 : f32
    %106 = vector.broadcast %cst_55 : f32 to vector<16x16xf32>
    %107 = arith.mulf %105, %106 : vector<16x16xf32>
    %108 = arith.addf %107, %103 : vector<16x16xf32>
    %109 = arith.addf %108, %5 : vector<16x16xf32>
    %cst_56 = arith.constant dense<0xFF800000> : vector<16xf32>
    %110 = vector.multi_reduction <maximumf>, %109, %cst_56 [1] : vector<16x16xf32> to vector<16xf32>
    %111 = vector.shape_cast %110 : vector<16xf32> to vector<16x1xf32>
    %112 = vector.broadcast %111 : vector<16x1xf32> to vector<16x16xf32>
    %113 = arith.subf %109, %112 : vector<16x16xf32>
    %114 = math.exp %113 : vector<16x16xf32>
    %cst_57 = arith.constant dense<0.000000e+00> : vector<16xf32>
    %115 = vector.multi_reduction <add>, %114, %cst_57 [1] : vector<16x16xf32> to vector<16xf32>
    %116 = vector.shape_cast %115 : vector<16xf32> to vector<16x1xf32>
    %117 = vector.broadcast %116 : vector<16x1xf32> to vector<16x16xf32>
    %118 = arith.divf %114, %117 : vector<16x16xf32>
    %cst_58 = arith.constant dense<0.000000e+00> : vector<16x16xf32>
    %119 = tpu.matmul %118, %96, %cst_58 {dimension_numbers = #tpu.dot_dimension_numbers<[1], [0], [0], [1], [0, 0, 1, 1], [], []>} : vector<16x16xf32>, vector<16x16xf32>, vector<16x16xf32> -> vector<16x16xf32>
    %cst_59 = arith.constant dense<0.000000e+00> : vector<16x32xf32>
    %120 = tpu.matmul %119, %21, %cst_59 {dimension_numbers = #tpu.dot_dimension_numbers<[1], [0], [0], [1], [0, 0, 1, 1], [], []>} : vector<16x16xf32>, vector<16x32xf32>, vector<16x32xf32> -> vector<16x32xf32>
    %121 = arith.addf %53, %120 : vector<16x32xf32>
    %cst_60 = arith.constant dense<0.000000e+00> : vector<16x128xf32>
    %122 = tpu.matmul %121, %22, %cst_60 {dimension_numbers = #tpu.dot_dimension_numbers<[1], [0], [0], [1], [0, 0, 1, 1], [], []>} : vector<16x32xf32>, vector<32x128xf32>, vector<16x128xf32> -> vector<16x128xf32>
    %cst_61 = arith.constant 0.000000e+00 : f32
    %123 = vector.broadcast %cst_61 : f32 to vector<16x128xf32>
    %124 = arith.maximumf %122, %123 : vector<16x128xf32>
    %cst_62 = arith.constant dense<0.000000e+00> : vector<16x32xf32>
    %125 = tpu.matmul %124, %23, %cst_62 {dimension_numbers = #tpu.dot_dimension_numbers<[1], [0], [0], [1], [0, 0, 1, 1], [], []>} : vector<16x128xf32>, vector<128x32xf32>, vector<16x32xf32> -> vector<16x32xf32>
    %126 = arith.addf %121, %125 : vector<16x32xf32>
    %cst_63 = arith.constant dense<0.000000e+00> : vector<32x128xf32>
    %127 = tpu.matmul %24, %92, %cst_63 {dimension_numbers = #tpu.dot_dimension_numbers<[1], [0], [0], [1], [0, 0, 1, 1], [], []>} : vector<32x16xf32>, vector<16x128xf32>, vector<32x128xf32> -> vector<32x128xf32>
    %cst_64 = arith.constant 0.000000e+00 : f32
    %128 = vector.broadcast %cst_64 : f32 to vector<32x128xf32>
    %129 = arith.maximumf %127, %128 : vector<32x128xf32>
    %cst_65 = arith.constant dense<0.000000e+00> : vector<16x128xf32>
    %130 = tpu.matmul %25, %129, %cst_65 {dimension_numbers = #tpu.dot_dimension_numbers<[1], [0], [0], [1], [0, 0, 1, 1], [], []>} : vector<16x32xf32>, vector<32x128xf32>, vector<16x128xf32> -> vector<16x128xf32>
    %131 = arith.addf %92, %130 : vector<16x128xf32>
    %cst_66 = arith.constant dense<0.000000e+00> : vector<16x32xf32>
    %132 = tpu.matmul %126, %26, %cst_66 {dimension_numbers = #tpu.dot_dimension_numbers<[1], [0], [0], [1], [0, 0, 1, 1], [], []>} : vector<16x32xf32>, vector<32x32xf32>, vector<16x32xf32> -> vector<16x32xf32>
    %cst_67 = arith.constant 0.000000e+00 : f32
    %133 = vector.broadcast %cst_67 : f32 to vector<16x32xf32>
    %134 = arith.maximumf %132, %133 : vector<16x32xf32>
    %cst_68 = arith.constant dense<0.000000e+00> : vector<16x45xf32>
    %135 = tpu.matmul %134, %27, %cst_68 {dimension_numbers = #tpu.dot_dimension_numbers<[1], [0], [0], [1], [0, 0, 1, 1], [], []>} : vector<16x32xf32>, vector<32x45xf32>, vector<16x45xf32> -> vector<16x45xf32>
    %136 = vector.extract_strided_slice %135 {offsets = [0, 0], sizes = [16, 3], strides = [1, 1]} : vector<16x45xf32> to vector<16x3xf32>
    %137 = vector.extract_strided_slice %135 {offsets = [0, 3], sizes = [16, 42], strides = [1, 1]} : vector<16x45xf32> to vector<16x42xf32>
    %138 = arith.addf %3, %136 : vector<16x3xf32>
    %cst_69 = arith.constant dense<0.000000e+00> : vector<16x126xf32>
    %139 = tpu.matmul %137, %9, %cst_69 {dimension_numbers = #tpu.dot_dimension_numbers<[1], [0], [0], [1], [0, 0, 1, 1], [], []>} : vector<16x42xf32>, vector<42x126xf32>, vector<16x126xf32> -> vector<16x126xf32>
    %140 = arith.mulf %139, %2 : vector<16x126xf32>
    %cst_70 = arith.constant dense<0.000000e+00> : vector<16x42xf32>
    %141 = tpu.matmul %140, %10, %cst_70 {dimension_numbers = #tpu.dot_dimension_numbers<[1], [0], [0], [1], [0, 0, 1, 1], [], []>} : vector<16x126xf32>, vector<126x42xf32>, vector<16x42xf32> -> vector<16x42xf32>
    %cst_71 = arith.constant dense<0.000000e+00> : vector<16x42xf32>
    %142 = tpu.matmul %138, %11, %cst_71 {dimension_numbers = #tpu.dot_dimension_numbers<[1], [0], [0], [1], [0, 0, 1, 1], [], []>} : vector<16x3xf32>, vector<3x42xf32>, vector<16x42xf32> -> vector<16x42xf32>
    %143 = arith.addf %141, %142 : vector<16x42xf32>
    %144 = vector.extract_strided_slice %143 {offsets = [0, 3], sizes = [16, 3], strides = [1, 1]} : vector<16x42xf32> to vector<16x3xf32>
    %145 = vector.extract_strided_slice %143 {offsets = [0, 12], sizes = [16, 3], strides = [1, 1]} : vector<16x42xf32> to vector<16x3xf32>
    %cst_72 = arith.constant 5.000000e-01 : f32
    %146 = vector.broadcast %cst_72 : f32 to vector<16x1xf32>
    %147 = arith.cmpf ogt, %4, %146 : vector<16x1xf32>
    %148 = vector.shape_cast %147 : vector<16x1xi1> to vector<16x1xi1>
    %149 = vector.broadcast %148 : vector<16x1xi1> to vector<16x3xi1>
    %150 = arith.select %149, %144, %145 : vector<16x3xi1>, vector<16x3xf32>
    %cst_73 = arith.constant dense<0.000000e+00> : vector<16xf32>
    %151 = vector.multi_reduction <add>, %126, %cst_73 [1] : vector<16x32xf32> to vector<16xf32>
    %152 = vector.shape_cast %151 : vector<16xf32> to vector<16x1xf32>
    %cst_74 = arith.constant 3.200000e+01 : f32
    %153 = vector.broadcast %cst_74 : f32 to vector<16x1xf32>
    %154 = arith.divf %152, %153 : vector<16x1xf32>
    %155 = vector.broadcast %154 : vector<16x1xf32> to vector<16x32xf32>
    %156 = arith.subf %126, %155 : vector<16x32xf32>
    %157 = arith.mulf %156, %156 : vector<16x32xf32>
    %cst_75 = arith.constant dense<0.000000e+00> : vector<16xf32>
    %158 = vector.multi_reduction <add>, %157, %cst_75 [1] : vector<16x32xf32> to vector<16xf32>
    %159 = vector.shape_cast %158 : vector<16xf32> to vector<16x1xf32>
    %cst_76 = arith.constant 3.200000e+01 : f32
    %160 = vector.broadcast %cst_76 : f32 to vector<16x1xf32>
    %161 = arith.divf %159, %160 : vector<16x1xf32>
    %162 = vector.broadcast %154 : vector<16x1xf32> to vector<16x32xf32>
    %163 = arith.subf %126, %162 : vector<16x32xf32>
    %cst_77 = arith.constant 9.99999974E-6 : f32
    %164 = vector.broadcast %cst_77 : f32 to vector<16x1xf32>
    %165 = arith.addf %161, %164 : vector<16x1xf32>
    %166 = math.rsqrt %165 : vector<16x1xf32>
    %167 = vector.broadcast %166 : vector<16x1xf32> to vector<16x32xf32>
    %168 = arith.mulf %163, %167 : vector<16x32xf32>
    %169 = vector.broadcast %14 : vector<1x32xf32> to vector<16x32xf32>
    %170 = arith.mulf %168, %169 : vector<16x32xf32>
    %171 = vector.broadcast %15 : vector<1x32xf32> to vector<16x32xf32>
    %172 = arith.addf %170, %171 : vector<16x32xf32>
    %173 = arith.addf %0, %172 : vector<16x32xf32>
    %cst_78 = arith.constant dense<0.000000e+00> : vector<128xf32>
    %174 = vector.multi_reduction <add>, %131, %cst_78 [0] : vector<16x128xf32> to vector<128xf32>
    %175 = vector.shape_cast %174 : vector<128xf32> to vector<1x128xf32>
    %cst_79 = arith.constant 1.600000e+01 : f32
    %176 = vector.broadcast %cst_79 : f32 to vector<1x128xf32>
    %177 = arith.divf %175, %176 : vector<1x128xf32>
    %178 = vector.broadcast %177 : vector<1x128xf32> to vector<16x128xf32>
    %179 = arith.subf %131, %178 : vector<16x128xf32>
    %180 = arith.mulf %179, %179 : vector<16x128xf32>
    %cst_80 = arith.constant dense<0.000000e+00> : vector<128xf32>
    %181 = vector.multi_reduction <add>, %180, %cst_80 [0] : vector<16x128xf32> to vector<128xf32>
    %182 = vector.shape_cast %181 : vector<128xf32> to vector<1x128xf32>
    %cst_81 = arith.constant 1.600000e+01 : f32
    %183 = vector.broadcast %cst_81 : f32 to vector<1x128xf32>
    %184 = arith.divf %182, %183 : vector<1x128xf32>
    %185 = vector.broadcast %177 : vector<1x128xf32> to vector<16x128xf32>
    %186 = arith.subf %131, %185 : vector<16x128xf32>
    %cst_82 = arith.constant 9.99999974E-6 : f32
    %187 = vector.broadcast %cst_82 : f32 to vector<1x128xf32>
    %188 = arith.addf %184, %187 : vector<1x128xf32>
    %189 = math.rsqrt %188 : vector<1x128xf32>
    %190 = vector.broadcast %189 : vector<1x128xf32> to vector<16x128xf32>
    %191 = arith.mulf %186, %190 : vector<16x128xf32>
    %192 = vector.broadcast %16 : vector<16x1xf32> to vector<16x128xf32>
    %193 = arith.mulf %191, %192 : vector<16x128xf32>
    %194 = vector.broadcast %17 : vector<16x1xf32> to vector<16x128xf32>
    %195 = arith.addf %193, %194 : vector<16x128xf32>
    %196 = tpu.transpose %150, [1, 0] : vector<16x3xf32> -> vector<3x16xf32>
    %cst_83 = arith.constant dense<0.000000e+00> : vector<3x128xf32>
    %197 = tpu.matmul %196, %7, %cst_83 {dimension_numbers = #tpu.dot_dimension_numbers<[1], [0], [0], [1], [0, 0, 1, 1], [], []>} : vector<3x16xf32>, vector<16x128xf32>, vector<3x128xf32> -> vector<3x128xf32>
    %198 = arith.mulf %197, %197 : vector<3x128xf32>
    %cst_84 = arith.constant dense<0.000000e+00> : vector<128xf32>
    %199 = vector.multi_reduction <add>, %198, %cst_84 [0] : vector<3x128xf32> to vector<128xf32>
    %200 = vector.shape_cast %199 : vector<128xf32> to vector<1x128xf32>
    %201 = vector.broadcast %200 : vector<1x128xf32> to vector<15x128xf32>
    %202 = vector.broadcast %12 : vector<15x1xf32> to vector<15x128xf32>
    %203 = arith.cmpf ogt, %201, %202 : vector<15x128xf32>
    %204 = vector.broadcast %200 : vector<1x128xf32> to vector<15x128xf32>
    %205 = vector.broadcast %13 : vector<15x1xf32> to vector<15x128xf32>
    %206 = arith.cmpf olt, %204, %205 : vector<15x128xf32>
    %207 = arith.andi %203, %206 : vector<15x128xi1>
    %208 = arith.extui %207 : vector<15x128xi1> to vector<15x128xi32>
    %209 = arith.sitofp %208 : vector<15x128xi32> to vector<15x128xf32>
    %cst_85 = arith.constant dense<0.000000e+00> : vector<16x128xf32>
    %210 = tpu.matmul %19, %209, %cst_85 {dimension_numbers = #tpu.dot_dimension_numbers<[1], [0], [0], [1], [0, 0, 1, 1], [], []>} : vector<16x15xf32>, vector<15x128xf32>, vector<16x128xf32> -> vector<16x128xf32>
    %211 = arith.addf %1, %195 : vector<16x128xf32>
    %212 = arith.addf %211, %210 : vector<16x128xf32>
    %cst_86 = arith.constant dense<0.000000e+00> : vector<16x48xf32>
    %213 = tpu.matmul %173, %20, %cst_86 {dimension_numbers = #tpu.dot_dimension_numbers<[1], [0], [0], [1], [0, 0, 1, 1], [], []>} : vector<16x32xf32>, vector<32x48xf32>, vector<16x48xf32> -> vector<16x48xf32>
    %214 = vector.extract_strided_slice %213 {offsets = [0, 0], sizes = [16, 16], strides = [1, 1]} : vector<16x48xf32> to vector<16x16xf32>
    %215 = vector.extract_strided_slice %213 {offsets = [0, 16], sizes = [16, 16], strides = [1, 1]} : vector<16x48xf32> to vector<16x16xf32>
    %216 = vector.extract_strided_slice %213 {offsets = [0, 32], sizes = [16, 16], strides = [1, 1]} : vector<16x48xf32> to vector<16x16xf32>
    %217 = vector.broadcast %18 : vector<16x1xf32> to vector<16x128xf32>
    %218 = arith.mulf %217, %212 : vector<16x128xf32>
    %cst_87 = arith.constant dense<0.000000e+00> : vector<128xf32>
    %219 = vector.multi_reduction <add>, %218, %cst_87 [0] : vector<16x128xf32> to vector<128xf32>
    %220 = vector.shape_cast %219 : vector<128xf32> to vector<1x128xf32>
    %221 = vector.broadcast %220 : vector<1x128xf32> to vector<16x128xf32>
    %222 = arith.mulf %6, %221 : vector<16x128xf32>
    %cst_88 = arith.constant dense<0.000000e+00> : vector<16x16xf32>
    %223 = tpu.matmul %222, %8, %cst_88 {dimension_numbers = #tpu.dot_dimension_numbers<[1], [0], [0], [1], [0, 0, 1, 1], [], []>} : vector<16x128xf32>, vector<128x16xf32>, vector<16x16xf32> -> vector<16x16xf32>
    %224 = tpu.transpose %215, [1, 0] : vector<16x16xf32> -> vector<16x16xf32>
    %cst_89 = arith.constant dense<0.000000e+00> : vector<16x16xf32>
    %225 = tpu.matmul %214, %224, %cst_89 {dimension_numbers = #tpu.dot_dimension_numbers<[1], [0], [0], [1], [0, 0, 1, 1], [], []>} : vector<16x16xf32>, vector<16x16xf32>, vector<16x16xf32> -> vector<16x16xf32>
    %cst_90 = arith.constant 2.500000e-01 : f32
    %226 = vector.broadcast %cst_90 : f32 to vector<16x16xf32>
    %227 = arith.mulf %225, %226 : vector<16x16xf32>
    %228 = arith.addf %227, %223 : vector<16x16xf32>
    %229 = arith.addf %228, %5 : vector<16x16xf32>
    %cst_91 = arith.constant dense<0xFF800000> : vector<16xf32>
    %230 = vector.multi_reduction <maximumf>, %229, %cst_91 [1] : vector<16x16xf32> to vector<16xf32>
    %231 = vector.shape_cast %230 : vector<16xf32> to vector<16x1xf32>
    %232 = vector.broadcast %231 : vector<16x1xf32> to vector<16x16xf32>
    %233 = arith.subf %229, %232 : vector<16x16xf32>
    %234 = math.exp %233 : vector<16x16xf32>
    %cst_92 = arith.constant dense<0.000000e+00> : vector<16xf32>
    %235 = vector.multi_reduction <add>, %234, %cst_92 [1] : vector<16x16xf32> to vector<16xf32>
    %236 = vector.shape_cast %235 : vector<16xf32> to vector<16x1xf32>
    %237 = vector.broadcast %236 : vector<16x1xf32> to vector<16x16xf32>
    %238 = arith.divf %234, %237 : vector<16x16xf32>
    %cst_93 = arith.constant dense<0.000000e+00> : vector<16x16xf32>
    %239 = tpu.matmul %238, %216, %cst_93 {dimension_numbers = #tpu.dot_dimension_numbers<[1], [0], [0], [1], [0, 0, 1, 1], [], []>} : vector<16x16xf32>, vector<16x16xf32>, vector<16x16xf32> -> vector<16x16xf32>
    %cst_94 = arith.constant dense<0.000000e+00> : vector<16x32xf32>
    %240 = tpu.matmul %239, %21, %cst_94 {dimension_numbers = #tpu.dot_dimension_numbers<[1], [0], [0], [1], [0, 0, 1, 1], [], []>} : vector<16x16xf32>, vector<16x32xf32>, vector<16x32xf32> -> vector<16x32xf32>
    %241 = arith.addf %173, %240 : vector<16x32xf32>
    %cst_95 = arith.constant dense<0.000000e+00> : vector<16x128xf32>
    %242 = tpu.matmul %241, %22, %cst_95 {dimension_numbers = #tpu.dot_dimension_numbers<[1], [0], [0], [1], [0, 0, 1, 1], [], []>} : vector<16x32xf32>, vector<32x128xf32>, vector<16x128xf32> -> vector<16x128xf32>
    %cst_96 = arith.constant 0.000000e+00 : f32
    %243 = vector.broadcast %cst_96 : f32 to vector<16x128xf32>
    %244 = arith.maximumf %242, %243 : vector<16x128xf32>
    %cst_97 = arith.constant dense<0.000000e+00> : vector<16x32xf32>
    %245 = tpu.matmul %244, %23, %cst_97 {dimension_numbers = #tpu.dot_dimension_numbers<[1], [0], [0], [1], [0, 0, 1, 1], [], []>} : vector<16x128xf32>, vector<128x32xf32>, vector<16x32xf32> -> vector<16x32xf32>
    %246 = arith.addf %241, %245 : vector<16x32xf32>
    %cst_98 = arith.constant dense<0.000000e+00> : vector<16x32xf32>
    %247 = tpu.matmul %246, %26, %cst_98 {dimension_numbers = #tpu.dot_dimension_numbers<[1], [0], [0], [1], [0, 0, 1, 1], [], []>} : vector<16x32xf32>, vector<32x32xf32>, vector<16x32xf32> -> vector<16x32xf32>
    %cst_99 = arith.constant 0.000000e+00 : f32
    %248 = vector.broadcast %cst_99 : f32 to vector<16x32xf32>
    %249 = arith.maximumf %247, %248 : vector<16x32xf32>
    %cst_100 = arith.constant dense<0.000000e+00> : vector<16x45xf32>
    %250 = tpu.matmul %249, %27, %cst_100 {dimension_numbers = #tpu.dot_dimension_numbers<[1], [0], [0], [1], [0, 0, 1, 1], [], []>} : vector<16x32xf32>, vector<32x45xf32>, vector<16x45xf32> -> vector<16x45xf32>
    %251 = vector.extract_strided_slice %250 {offsets = [0, 0], sizes = [16, 3], strides = [1, 1]} : vector<16x45xf32> to vector<16x3xf32>
    %252 = vector.extract_strided_slice %250 {offsets = [0, 3], sizes = [16, 42], strides = [1, 1]} : vector<16x45xf32> to vector<16x42xf32>
    %253 = arith.addf %3, %251 : vector<16x3xf32>
    %cst_101 = arith.constant dense<0.000000e+00> : vector<16x126xf32>
    %254 = tpu.matmul %252, %9, %cst_101 {dimension_numbers = #tpu.dot_dimension_numbers<[1], [0], [0], [1], [0, 0, 1, 1], [], []>} : vector<16x42xf32>, vector<42x126xf32>, vector<16x126xf32> -> vector<16x126xf32>
    %255 = arith.mulf %254, %2 : vector<16x126xf32>
    %cst_102 = arith.constant dense<0.000000e+00> : vector<16x42xf32>
    %256 = tpu.matmul %255, %10, %cst_102 {dimension_numbers = #tpu.dot_dimension_numbers<[1], [0], [0], [1], [0, 0, 1, 1], [], []>} : vector<16x126xf32>, vector<126x42xf32>, vector<16x42xf32> -> vector<16x42xf32>
    %cst_103 = arith.constant dense<0.000000e+00> : vector<16x42xf32>
    %257 = tpu.matmul %253, %11, %cst_103 {dimension_numbers = #tpu.dot_dimension_numbers<[1], [0], [0], [1], [0, 0, 1, 1], [], []>} : vector<16x3xf32>, vector<3x42xf32>, vector<16x42xf32> -> vector<16x42xf32>
    %258 = arith.addf %256, %257 : vector<16x42xf32>
    %259 = tpu.concatenate %258, %253 in 1 : vector<16x42xf32>, vector<16x3xf32> -> vector<16x45xf32>
    %c0_104 = arith.constant 0 : index
    %c0_105 = arith.constant 0 : index
    %260 = vector.load %arg7[%c0_104, %c0_105] : memref<16x45xf32, #tpu.memory_space<vmem>>, vector<16x45xf32>
    tpu.vector_store %arg7[%c0_104, %c0_105], %259 {strides = array<i32>} : memref<16x45xf32, #tpu.memory_space<vmem>>, vector<16x45xf32>,
    return
  }
  func.func @transform_0(%arg0: i32) -> (i32, i32) {
    %c0_i32 = arith.constant 0 : i32
    %c0_i32_0 = arith.constant 0 : i32
    %c0_i32_1 = arith.constant 0 : i32
    return %c0_i32, %c0_i32_0 : i32, i32
  }
  func.func @transform_1(%arg0: i32) -> (i32, i32) {
    %c0_i32 = arith.constant 0 : i32
    %c0_i32_0 = arith.constant 0 : i32
    %c0_i32_1 = arith.constant 0 : i32
    return %c0_i32, %c0_i32_0 : i32, i32
  }
  func.func @transform_2(%arg0: i32) -> (i32, i32) {
    %c0_i32 = arith.constant 0 : i32
    %c0_i32_0 = arith.constant 0 : i32
    %c0_i32_1 = arith.constant 0 : i32
    return %c0_i32, %c0_i32_0 : i32, i32
  }
  func.func @transform_3(%arg0: i32) -> (i32, i32) {
    %c0_i32 = arith.constant 0 : i32
    %c0_i32_0 = arith.constant 0 : i32
    %c0_i32_1 = arith.constant 0 : i32
    return %c0_i32, %c0_i32_0 : i32, i32
  }
  func.func @transform_4(%arg0: i32) -> (i32, i32) {
    %c0_i32 = arith.constant 0 : i32
    %c0_i32_0 = arith.constant 0 : i32
    %c0_i32_1 = arith.constant 0 : i32
    return %c0_i32, %c0_i32_0 : i32, i32
  }
  func.func @transform_5(%arg0: i32) -> (i32, i32) {
    %c0_i32 = arith.constant 0 : i32
    %c0_i32_0 = arith.constant 0 : i32
    %c0_i32_1 = arith.constant 0 : i32
    return %c0_i32, %c0_i32_0 : i32, i32
  }
  func.func @transform_6(%arg0: i32) -> (i32, i32) {
    %c0_i32 = arith.constant 0 : i32
    %c0_i32_0 = arith.constant 0 : i32
    %c0_i32_1 = arith.constant 0 : i32
    return %c0_i32, %c0_i32_0 : i32, i32
  }
}

</mosaic_0001>

<llo_original>
// kernel: tile.7
$region0: #{tile.7}
  %s0 = inlined_call_operand.vmem [shape: f32[16,14,9], index: 0, kind: input, shape index: {}]
  %s1 = inlined_call_operand.vmem [shape: f32[16,126], index: 1, kind: output, shape index: {}]
  %s2 = smov 3
  %v3 = vld [vmem:[%s0] ss:$16 sm:%s2]
  %s4 = smov 12
  %v5 = vld [vmem:[%s0] ss:$16 sm:%s4]
  %vm6 = vcmask 1043458
  %v7 = vsel %vm6, %v5, %v3
  %s8 = smov 48
  %v9 = vld [vmem:[%s0] ss:$16 sm:%s8]
  %vm10 = vcmask 1045508
  %v11 = vsel %vm10, %v9, %v7
  %s12 = smov 192
  %v13 = vld [vmem:[%s0] ss:$16 sm:%s12]
  %vm14 = vcmask 1047558
  %v15 = vsel %vm14, %v13, %v11
  %vm16 = vcmask 72704
  %17 = vst.msk [vmem:[%s1] sm:$0xff] %vm16, %v15
  %s18 = scalar_lea.vmem %s0, 128
  %s19 = smov 3
  %v20 = vld [vmem:[%s18] ss:$16 sm:%s19]
  %s21 = scalar_lea.vmem %s0, 128
  %s22 = smov 12
  %v23 = vld [vmem:[%s21] ss:$16 sm:%s22]
  %vm24 = vcmask 1043458
  %v25 = vsel %vm24, %v23, %v20
  %s26 = scalar_lea.vmem %s0, 128
  %s27 = smov 48
  %v28 = vld [vmem:[%s26] ss:$16 sm:%s27]
  %vm29 = vcmask 1045508
  %v30 = vsel %vm29, %v28, %v25
  %s31 = scalar_lea.vmem %s0, 128
  %s32 = smov 192
  %v33 = vld [vmem:[%s31] ss:$16 sm:%s32]
  %vm34 = vcmask 1047558
  %v35 = vsel %vm34, %v33, %v30
  %vm36 = vcmask 72704
  %s37 = scalar_lea.vmem %s1, 8
  %38 = vst.msk [vmem:[%s37] sm:$0xff] %vm36, %v35
  %s39 = scalar_lea.vmem %s0, 13
  %s40 = smov 3
  %v41 = vld [vmem:[%s39] ss:$16 sm:%s40]
  %s42 = scalar_lea.vmem %s0, 13
  %s43 = smov 12
  %v44 = vld [vmem:[%s42] ss:$16 sm:%s43]
  %vm45 = vcmask 1043458
  %v46 = vsel %vm45, %v44, %v41
  %s47 = scalar_lea.vmem %s0, 13
  %s48 = smov 48
  %v49 = vld [vmem:[%s47] ss:$16 sm:%s48]
  %vm50 = vcmask 1045508
  %v51 = vsel %vm50, %v49, %v46
  %s52 = scalar_lea.vmem %s0, 13
  %s53 = smov 192
  %v54 = vld [vmem:[%s52] ss:$16 sm:%s53]
  %vm55 = vcmask 1047558
  %v56 = vsel %vm55, %v54, %v51
  %57 = vrot.lane.b32.xlu0 %v56, 117
  %v58 = vpop.permute.xlu0 %57
  %vm59 = vcmask 1032104
  %60 = vst.msk [vmem:[%s1] sm:$0xff] %vm59, %v58
  %s61 = scalar_lea.vmem %s0, 141
  %s62 = smov 3
  %v63 = vld [vmem:[%s61] ss:$16 sm:%s62]
  %s64 = scalar_lea.vmem %s0, 141
  %s65 = smov 12
  %v66 = vld [vmem:[%s64] ss:$16 sm:%s65]
  %vm67 = vcmask 1043458
  %v68 = vsel %vm67, %v66, %v63
  %s69 = scalar_lea.vmem %s0, 141
  %s70 = smov 48
  %v71 = vld [vmem:[%s69] ss:$16 sm:%s70]
  %vm72 = vcmask 1045508
  %v73 = vsel %vm72, %v71, %v68
  %s74 = scalar_lea.vmem %s0, 141
  %s75 = smov 192
  %v76 = vld [vmem:[%s74] ss:$16 sm:%s75]
  %vm77 = vcmask 1047558
  %v78 = vsel %vm77, %v76, %v73
  %79 = vrot.lane.b32.xlu0 %v78, 117
  %v80 = vpop.permute.xlu0 %79
  %vm81 = vcmask 1032104
  %s82 = scalar_lea.vmem %s1, 8
  %83 = vst.msk [vmem:[%s82] sm:$0xff] %vm81, %v80
  %s84 = scalar_lea.vmem %s0, 12
  %s85 = smov 3
  %v86 = vld [vmem:[%s84] ss:$16 sm:%s85]
  %s87 = scalar_lea.vmem %s0, 12
  %s88 = smov 12
  %v89 = vld [vmem:[%s87] ss:$16 sm:%s88]
  %vm90 = vcmask 1043458
  %v91 = vsel %vm90, %v89, %v86
  %s92 = scalar_lea.vmem %s0, 12
  %s93 = smov 48
  %v94 = vld [vmem:[%s92] ss:$16 sm:%s93]
  %vm95 = vcmask 1045508
  %v96 = vsel %vm95, %v94, %v91
  %s97 = scalar_lea.vmem %s0, 12
  %s98 = smov 192
  %v99 = vld [vmem:[%s97] ss:$16 sm:%s98]
  %vm100 = vcmask 1047558
  %v101 = vsel %vm100, %v99, %v96
  %102 = vrot.lane.b32.xlu0 %v101, 108
  %v103 = vpop.permute.xlu0 %102
  %vm104 = vcmask 958304
  %105 = vst.msk [vmem:[%s1] sm:$0xff] %vm104, %v103
  %s106 = scalar_lea.vmem %s0, 140
  %s107 = smov 3
  %v108 = vld [vmem:[%s106] ss:$16 sm:%s107]
  %s109 = scalar_lea.vmem %s0, 140
  %s110 = smov 12
  %v111 = vld [vmem:[%s109] ss:$16 sm:%s110]
  %vm112 = vcmask 1043458
  %v113 = vsel %vm112, %v111, %v108
  %s114 = scalar_lea.vmem %s0, 140
  %s115 = smov 48
  %v116 = vld [vmem:[%s114] ss:$16 sm:%s115]
  %vm117 = vcmask 1045508
  %v118 = vsel %vm117, %v116, %v113
  %s119 = scalar_lea.vmem %s0, 140
  %s120 = smov 192
  %v121 = vld [vmem:[%s119] ss:$16 sm:%s120]
  %vm122 = vcmask 1047558
  %v123 = vsel %vm122, %v121, %v118
  %124 = vrot.lane.b32.xlu0 %v123, 108
  %v125 = vpop.permute.xlu0 %124
  %vm126 = vcmask 958304
  %s127 = scalar_lea.vmem %s1, 8
  %128 = vst.msk [vmem:[%s127] sm:$0xff] %vm126, %v125
  %s129 = scalar_lea.vmem %s0, 11
  %s130 = smov 3
  %v131 = vld [vmem:[%s129] ss:$16 sm:%s130]
  %s132 = scalar_lea.vmem %s0, 11
  %s133 = smov 12
  %v134 = vld [vmem:[%s132] ss:$16 sm:%s133]
  %vm135 = vcmask 1043458
  %v136 = vsel %vm135, %v134, %v131
  %s137 = scalar_lea.vmem %s0, 11
  %s138 = smov 48
  %v139 = vld [vmem:[%s137] ss:$16 sm:%s138]
  %vm140 = vcmask 1045508
  %v141 = vsel %vm140, %v139, %v136
  %s142 = scalar_lea.vmem %s0, 11
  %s143 = smov 192
  %v144 = vld [vmem:[%s142] ss:$16 sm:%s143]
  %vm145 = vcmask 1047558
  %v146 = vsel %vm145, %v144, %v141
  %147 = vrot.lane.b32.xlu0 %v146, 99
  %v148 = vpop.permute.xlu0 %147
  %vm149 = vcmask 884504
  %150 = vst.msk [vmem:[%s1] sm:$0xff] %vm149, %v148
  %s151 = scalar_lea.vmem %s0, 139
  %s152 = smov 3
  %v153 = vld [vmem:[%s151] ss:$16 sm:%s152]
  %s154 = scalar_lea.vmem %s0, 139
  %s155 = smov 12
  %v156 = vld [vmem:[%s154] ss:$16 sm:%s155]
  %vm157 = vcmask 1043458
  %v158 = vsel %vm157, %v156, %v153
  %s159 = scalar_lea.vmem %s0, 139
  %s160 = smov 48
  %v161 = vld [vmem:[%s159] ss:$16 sm:%s160]
  %vm162 = vcmask 1045508
  %v163 = vsel %vm162, %v161, %v158
  %s164 = scalar_lea.vmem %s0, 139
  %s165 = smov 192
  %v166 = vld [vmem:[%s164] ss:$16 sm:%s165]
  %vm167 = vcmask 1047558
  %v168 = vsel %vm167, %v166, %v163
  %169 = vrot.lane.b32.xlu0 %v168, 99
  %v170 = vpop.permute.xlu0 %169
  %vm171 = vcmask 884504
  %s172 = scalar_lea.vmem %s1, 8
  %173 = vst.msk [vmem:[%s172] sm:$0xff] %vm171, %v170
  %s174 = scalar_lea.vmem %s0, 10
  %s175 = smov 3
  %v176 = vld [vmem:[%s174] ss:$16 sm:%s175]
  %s177 = scalar_lea.vmem %s0, 10
  %s178 = smov 12
  %v179 = vld [vmem:[%s177] ss:$16 sm:%s178]
  %vm180 = vcmask 1043458
  %v181 = vsel %vm180, %v179, %v176
  %s182 = scalar_lea.vmem %s0, 10
  %s183 = smov 48
  %v184 = vld [vmem:[%s182] ss:$16 sm:%s183]
  %vm185 = vcmask 1045508
  %v186 = vsel %vm185, %v184, %v181
  %s187 = scalar_lea.vmem %s0, 10
  %s188 = smov 192
  %v189 = vld [vmem:[%s187] ss:$16 sm:%s188]
  %vm190 = vcmask 1047558
  %v191 = vsel %vm190, %v189, %v186
  %192 = vrot.lane.b32.xlu0 %v191, 90
  %v193 = vpop.permute.xlu0 %192
  %vm194 = vcmask 810704
  %195 = vst.msk [vmem:[%s1] sm:$0xff] %vm194, %v193
  %s196 = scalar_lea.vmem %s0, 138
  %s197 = smov 3
  %v198 = vld [vmem:[%s196] ss:$16 sm:%s197]
  %s199 = scalar_lea.vmem %s0, 138
  %s200 = smov 12
  %v201 = vld [vmem:[%s199] ss:$16 sm:%s200]
  %vm202 = vcmask 1043458
  %v203 = vsel %vm202, %v201, %v198
  %s204 = scalar_lea.vmem %s0, 138
  %s205 = smov 48
  %v206 = vld [vmem:[%s204] ss:$16 sm:%s205]
  %vm207 = vcmask 1045508
  %v208 = vsel %vm207, %v206, %v203
  %s209 = scalar_lea.vmem %s0, 138
  %s210 = smov 192
  %v211 = vld [vmem:[%s209] ss:$16 sm:%s210]
  %vm212 = vcmask 1047558
  %v213 = vsel %vm212, %v211, %v208
  %214 = vrot.lane.b32.xlu0 %v213, 90
  %v215 = vpop.permute.xlu0 %214
  %vm216 = vcmask 810704
  %s217 = scalar_lea.vmem %s1, 8
  %218 = vst.msk [vmem:[%s217] sm:$0xff] %vm216, %v215
  %s219 = scalar_lea.vmem %s0, 9
  %s220 = smov 3
  %v221 = vld [vmem:[%s219] ss:$16 sm:%s220]
  %s222 = scalar_lea.vmem %s0, 9
  %s223 = smov 12
  %v224 = vld [vmem:[%s222] ss:$16 sm:%s223]
  %vm225 = vcmask 1043458
  %v226 = vsel %vm225, %v224, %v221
  %s227 = scalar_lea.vmem %s0, 9
  %s228 = smov 48
  %v229 = vld [vmem:[%s227] ss:$16 sm:%s228]
  %vm230 = vcmask 1045508
  %v231 = vsel %vm230, %v229, %v226
  %s232 = scalar_lea.vmem %s0, 9
  %s233 = smov 192
  %v234 = vld [vmem:[%s232] ss:$16 sm:%s233]
  %vm235 = vcmask 1047558
  %v236 = vsel %vm235, %v234, %v231
  %237 = vrot.lane.b32.xlu0 %v236, 81
  %v238 = vpop.permute.xlu0 %237
  %vm239 = vcmask 736904
  %240 = vst.msk [vmem:[%s1] sm:$0xff] %vm239, %v238
  %s241 = scalar_lea.vmem %s0, 137
  %s242 = smov 3
  %v243 = vld [vmem:[%s241] ss:$16 sm:%s242]
  %s244 = scalar_lea.vmem %s0, 137
  %s245 = smov 12
  %v246 = vld [vmem:[%s244] ss:$16 sm:%s245]
  %vm247 = vcmask 1043458
  %v248 = vsel %vm247, %v246, %v243
  %s249 = scalar_lea.vmem %s0, 137
  %s250 = smov 48
  %v251 = vld [vmem:[%s249] ss:$16 sm:%s250]
  %vm252 = vcmask 1045508
  %v253 = vsel %vm252, %v251, %v248
  %s254 = scalar_lea.vmem %s0, 137
  %s255 = smov 192
  %v256 = vld [vmem:[%s254] ss:$16 sm:%s255]
  %vm257 = vcmask 1047558
  %v258 = vsel %vm257, %v256, %v253
  %259 = vrot.lane.b32.xlu0 %v258, 81
  %v260 = vpop.permute.xlu0 %259
  %vm261 = vcmask 736904
  %s262 = scalar_lea.vmem %s1, 8
  %263 = vst.msk [vmem:[%s262] sm:$0xff] %vm261, %v260
  %s264 = scalar_lea.vmem %s0, 8
  %s265 = smov 3
  %v266 = vld [vmem:[%s264] ss:$16 sm:%s265]
  %s267 = scalar_lea.vmem %s0, 8
  %s268 = smov 12
  %v269 = vld [vmem:[%s267] ss:$16 sm:%s268]
  %vm270 = vcmask 1043458
  %v271 = vsel %vm270, %v269, %v266
  %s272 = scalar_lea.vmem %s0, 8
  %s273 = smov 48
  %v274 = vld [vmem:[%s272] ss:$16 sm:%s273]
  %vm275 = vcmask 1045508
  %v276 = vsel %vm275, %v274, %v271
  %s277 = scalar_lea.vmem %s0, 8
  %s278 = smov 192
  %v279 = vld [vmem:[%s277] ss:$16 sm:%s278]
  %vm280 = vcmask 1047558
  %v281 = vsel %vm280, %v279, %v276
  %282 = vrot.lane.b32.xlu0 %v281, 72
  %v283 = vpop.permute.xlu0 %282
  %vm284 = vcmask 663104
  %285 = vst.msk [vmem:[%s1] sm:$0xff] %vm284, %v283
  %s286 = scalar_lea.vmem %s0, 136
  %s287 = smov 3
  %v288 = vld [vmem:[%s286] ss:$16 sm:%s287]
  %s289 = scalar_lea.vmem %s0, 136
  %s290 = smov 12
  %v291 = vld [vmem:[%s289] ss:$16 sm:%s290]
  %vm292 = vcmask 1043458
  %v293 = vsel %vm292, %v291, %v288
  %s294 = scalar_lea.vmem %s0, 136
  %s295 = smov 48
  %v296 = vld [vmem:[%s294] ss:$16 sm:%s295]
  %vm297 = vcmask 1045508
  %v298 = vsel %vm297, %v296, %v293
  %s299 = scalar_lea.vmem %s0, 136
  %s300 = smov 192
  %v301 = vld [vmem:[%s299] ss:$16 sm:%s300]
  %vm302 = vcmask 1047558
  %v303 = vsel %vm302, %v301, %v298
  %304 = vrot.lane.b32.xlu0 %v303, 72
  %v305 = vpop.permute.xlu0 %304
  %vm306 = vcmask 663104
  %s307 = scalar_lea.vmem %s1, 8
  %308 = vst.msk [vmem:[%s307] sm:$0xff] %vm306, %v305
  %s309 = scalar_lea.vmem %s0, 7
  %s310 = smov 3
  %v311 = vld [vmem:[%s309] ss:$16 sm:%s310]
  %s312 = scalar_lea.vmem %s0, 7
  %s313 = smov 12
  %v314 = vld [vmem:[%s312] ss:$16 sm:%s313]
  %vm315 = vcmask 1043458
  %v316 = vsel %vm315, %v314, %v311
  %s317 = scalar_lea.vmem %s0, 7
  %s318 = smov 48
  %v319 = vld [vmem:[%s317] ss:$16 sm:%s318]
  %vm320 = vcmask 1045508
  %v321 = vsel %vm320, %v319, %v316
  %s322 = scalar_lea.vmem %s0, 7
  %s323 = smov 192
  %v324 = vld [vmem:[%s322] ss:$16 sm:%s323]
  %vm325 = vcmask 1047558
  %v326 = vsel %vm325, %v324, %v321
  %327 = vrot.lane.b32.xlu0 %v326, 63
  %v328 = vpop.permute.xlu0 %327
  %vm329 = vcmask 589304
  %330 = vst.msk [vmem:[%s1] sm:$0xff] %vm329, %v328
  %s331 = scalar_lea.vmem %s0, 135
  %s332 = smov 3
  %v333 = vld [vmem:[%s331] ss:$16 sm:%s332]
  %s334 = scalar_lea.vmem %s0, 135
  %s335 = smov 12
  %v336 = vld [vmem:[%s334] ss:$16 sm:%s335]
  %vm337 = vcmask 1043458
  %v338 = vsel %vm337, %v336, %v333
  %s339 = scalar_lea.vmem %s0, 135
  %s340 = smov 48
  %v341 = vld [vmem:[%s339] ss:$16 sm:%s340]
  %vm342 = vcmask 1045508
  %v343 = vsel %vm342, %v341, %v338
  %s344 = scalar_lea.vmem %s0, 135
  %s345 = smov 192
  %v346 = vld [vmem:[%s344] ss:$16 sm:%s345]
  %vm347 = vcmask 1047558
  %v348 = vsel %vm347, %v346, %v343
  %349 = vrot.lane.b32.xlu0 %v348, 63
  %v350 = vpop.permute.xlu0 %349
  %vm351 = vcmask 589304
  %s352 = scalar_lea.vmem %s1, 8
  %353 = vst.msk [vmem:[%s352] sm:$0xff] %vm351, %v350
  %s354 = scalar_lea.vmem %s0, 6
  %s355 = smov 3
  %v356 = vld [vmem:[%s354] ss:$16 sm:%s355]
  %s357 = scalar_lea.vmem %s0, 6
  %s358 = smov 12
  %v359 = vld [vmem:[%s357] ss:$16 sm:%s358]
  %vm360 = vcmask 1043458
  %v361 = vsel %vm360, %v359, %v356
  %s362 = scalar_lea.vmem %s0, 6
  %s363 = smov 48
  %v364 = vld [vmem:[%s362] ss:$16 sm:%s363]
  %vm365 = vcmask 1045508
  %v366 = vsel %vm365, %v364, %v361
  %s367 = scalar_lea.vmem %s0, 6
  %s368 = smov 192
  %v369 = vld [vmem:[%s367] ss:$16 sm:%s368]
  %vm370 = vcmask 1047558
  %v371 = vsel %vm370, %v369, %v366
  %372 = vrot.lane.b32.xlu0 %v371, 54
  %v373 = vpop.permute.xlu0 %372
  %vm374 = vcmask 515504
  %375 = vst.msk [vmem:[%s1] sm:$0xff] %vm374, %v373
  %s376 = scalar_lea.vmem %s0, 134
  %s377 = smov 3
  %v378 = vld [vmem:[%s376] ss:$16 sm:%s377]
  %s379 = scalar_lea.vmem %s0, 134
  %s380 = smov 12
  %v381 = vld [vmem:[%s379] ss:$16 sm:%s380]
  %vm382 = vcmask 1043458
  %v383 = vsel %vm382, %v381, %v378
  %s384 = scalar_lea.vmem %s0, 134
  %s385 = smov 48
  %v386 = vld [vmem:[%s384] ss:$16 sm:%s385]
  %vm387 = vcmask 1045508
  %v388 = vsel %vm387, %v386, %v383
  %s389 = scalar_lea.vmem %s0, 134
  %s390 = smov 192
  %v391 = vld [vmem:[%s389] ss:$16 sm:%s390]
  %vm392 = vcmask 1047558
  %v393 = vsel %vm392, %v391, %v388
  %394 = vrot.lane.b32.xlu0 %v393, 54
  %v395 = vpop.permute.xlu0 %394
  %vm396 = vcmask 515504
  %s397 = scalar_lea.vmem %s1, 8
  %398 = vst.msk [vmem:[%s397] sm:$0xff] %vm396, %v395
  %s399 = scalar_lea.vmem %s0, 5
  %s400 = smov 3
  %v401 = vld [vmem:[%s399] ss:$16 sm:%s400]
  %s402 = scalar_lea.vmem %s0, 5
  %s403 = smov 12
  %v404 = vld [vmem:[%s402] ss:$16 sm:%s403]
  %vm405 = vcmask 1043458
  %v406 = vsel %vm405, %v404, %v401
  %s407 = scalar_lea.vmem %s0, 5
  %s408 = smov 48
  %v409 = vld [vmem:[%s407] ss:$16 sm:%s408]
  %vm410 = vcmask 1045508
  %v411 = vsel %vm410, %v409, %v406
  %s412 = scalar_lea.vmem %s0, 5
  %s413 = smov 192
  %v414 = vld [vmem:[%s412] ss:$16 sm:%s413]
  %vm415 = vcmask 1047558
  %v416 = vsel %vm415, %v414, %v411
  %417 = vrot.lane.b32.xlu0 %v416, 45
  %v418 = vpop.permute.xlu0 %417
  %vm419 = vcmask 441704
  %420 = vst.msk [vmem:[%s1] sm:$0xff] %vm419, %v418
  %s421 = scalar_lea.vmem %s0, 133
  %s422 = smov 3
  %v423 = vld [vmem:[%s421] ss:$16 sm:%s422]
  %s424 = scalar_lea.vmem %s0, 133
  %s425 = smov 12
  %v426 = vld [vmem:[%s424] ss:$16 sm:%s425]
  %vm427 = vcmask 1043458
  %v428 = vsel %vm427, %v426, %v423
  %s429 = scalar_lea.vmem %s0, 133
  %s430 = smov 48
  %v431 = vld [vmem:[%s429] ss:$16 sm:%s430]
  %vm432 = vcmask 1045508
  %v433 = vsel %vm432, %v431, %v428
  %s434 = scalar_lea.vmem %s0, 133
  %s435 = smov 192
  %v436 = vld [vmem:[%s434] ss:$16 sm:%s435]
  %vm437 = vcmask 1047558
  %v438 = vsel %vm437, %v436, %v433
  %439 = vrot.lane.b32.xlu0 %v438, 45
  %v440 = vpop.permute.xlu0 %439
  %vm441 = vcmask 441704
  %s442 = scalar_lea.vmem %s1, 8
  %443 = vst.msk [vmem:[%s442] sm:$0xff] %vm441, %v440
  %s444 = scalar_lea.vmem %s0, 4
  %s445 = smov 3
  %v446 = vld [vmem:[%s444] ss:$16 sm:%s445]
  %s447 = scalar_lea.vmem %s0, 4
  %s448 = smov 12
  %v449 = vld [vmem:[%s447] ss:$16 sm:%s448]
  %vm450 = vcmask 1043458
  %v451 = vsel %vm450, %v449, %v446
  %s452 = scalar_lea.vmem %s0, 4
  %s453 = smov 48
  %v454 = vld [vmem:[%s452] ss:$16 sm:%s453]
  %vm455 = vcmask 1045508
  %v456 = vsel %vm455, %v454, %v451
  %s457 = scalar_lea.vmem %s0, 4
  %s458 = smov 192
  %v459 = vld [vmem:[%s457] ss:$16 sm:%s458]
  %vm460 = vcmask 1047558
  %v461 = vsel %vm460, %v459, %v456
  %462 = vrot.lane.b32.xlu0 %v461, 36
  %v463 = vpop.permute.xlu0 %462
  %vm464 = vcmask 367904
  %465 = vst.msk [vmem:[%s1] sm:$0xff] %vm464, %v463
  %s466 = scalar_lea.vmem %s0, 132
  %s467 = smov 3
  %v468 = vld [vmem:[%s466] ss:$16 sm:%s467]
  %s469 = scalar_lea.vmem %s0, 132
  %s470 = smov 12
  %v471 = vld [vmem:[%s469] ss:$16 sm:%s470]
  %vm472 = vcmask 1043458
  %v473 = vsel %vm472, %v471, %v468
  %s474 = scalar_lea.vmem %s0, 132
  %s475 = smov 48
  %v476 = vld [vmem:[%s474] ss:$16 sm:%s475]
  %vm477 = vcmask 1045508
  %v478 = vsel %vm477, %v476, %v473
  %s479 = scalar_lea.vmem %s0, 132
  %s480 = smov 192
  %v481 = vld [vmem:[%s479] ss:$16 sm:%s480]
  %vm482 = vcmask 1047558
  %v483 = vsel %vm482, %v481, %v478
  %484 = vrot.lane.b32.xlu0 %v483, 36
  %v485 = vpop.permute.xlu0 %484
  %vm486 = vcmask 367904
  %s487 = scalar_lea.vmem %s1, 8
  %488 = vst.msk [vmem:[%s487] sm:$0xff] %vm486, %v485
  %s489 = scalar_lea.vmem %s0, 3
  %s490 = smov 3
  %v491 = vld [vmem:[%s489] ss:$16 sm:%s490]
  %s492 = scalar_lea.vmem %s0, 3
  %s493 = smov 12
  %v494 = vld [vmem:[%s492] ss:$16 sm:%s493]
  %vm495 = vcmask 1043458
  %v496 = vsel %vm495, %v494, %v491
  %s497 = scalar_lea.vmem %s0, 3
  %s498 = smov 48
  %v499 = vld [vmem:[%s497] ss:$16 sm:%s498]
  %vm500 = vcmask 1045508
  %v501 = vsel %vm500, %v499, %v496
  %s502 = scalar_lea.vmem %s0, 3
  %s503 = smov 192
  %v504 = vld [vmem:[%s502] ss:$16 sm:%s503]
  %vm505 = vcmask 1047558
  %v506 = vsel %vm505, %v504, %v501
  %507 = vrot.lane.b32.xlu0 %v506, 27
  %v508 = vpop.permute.xlu0 %507
  %vm509 = vcmask 294104
  %510 = vst.msk [vmem:[%s1] sm:$0xff] %vm509, %v508
  %s511 = scalar_lea.vmem %s0, 131
  %s512 = smov 3
  %v513 = vld [vmem:[%s511] ss:$16 sm:%s512]
  %s514 = scalar_lea.vmem %s0, 131
  %s515 = smov 12
  %v516 = vld [vmem:[%s514] ss:$16 sm:%s515]
  %vm517 = vcmask 1043458
  %v518 = vsel %vm517, %v516, %v513
  %s519 = scalar_lea.vmem %s0, 131
  %s520 = smov 48
  %v521 = vld [vmem:[%s519] ss:$16 sm:%s520]
  %vm522 = vcmask 1045508
  %v523 = vsel %vm522, %v521, %v518
  %s524 = scalar_lea.vmem %s0, 131
  %s525 = smov 192
  %v526 = vld [vmem:[%s524] ss:$16 sm:%s525]
  %vm527 = vcmask 1047558
  %v528 = vsel %vm527, %v526, %v523
  %529 = vrot.lane.b32.xlu0 %v528, 27
  %v530 = vpop.permute.xlu0 %529
  %vm531 = vcmask 294104
  %s532 = scalar_lea.vmem %s1, 8
  %533 = vst.msk [vmem:[%s532] sm:$0xff] %vm531, %v530
  %s534 = scalar_lea.vmem %s0, 2
  %s535 = smov 3
  %v536 = vld [vmem:[%s534] ss:$16 sm:%s535]
  %s537 = scalar_lea.vmem %s0, 2
  %s538 = smov 12
  %v539 = vld [vmem:[%s537] ss:$16 sm:%s538]
  %vm540 = vcmask 1043458
  %v541 = vsel %vm540, %v539, %v536
  %s542 = scalar_lea.vmem %s0, 2
  %s543 = smov 48
  %v544 = vld [vmem:[%s542] ss:$16 sm:%s543]
  %vm545 = vcmask 1045508
  %v546 = vsel %vm545, %v544, %v541
  %s547 = scalar_lea.vmem %s0, 2
  %s548 = smov 192
  %v549 = vld [vmem:[%s547] ss:$16 sm:%s548]
  %vm550 = vcmask 1047558
  %v551 = vsel %vm550, %v549, %v546
  %552 = vrot.lane.b32.xlu0 %v551, 18
  %v553 = vpop.permute.xlu0 %552
  %vm554 = vcmask 220304
  %555 = vst.msk [vmem:[%s1] sm:$0xff] %vm554, %v553
  %s556 = scalar_lea.vmem %s0, 130
  %s557 = smov 3
  %v558 = vld [vmem:[%s556] ss:$16 sm:%s557]
  %s559 = scalar_lea.vmem %s0, 130
  %s560 = smov 12
  %v561 = vld [vmem:[%s559] ss:$16 sm:%s560]
  %vm562 = vcmask 1043458
  %v563 = vsel %vm562, %v561, %v558
  %s564 = scalar_lea.vmem %s0, 130
  %s565 = smov 48
  %v566 = vld [vmem:[%s564] ss:$16 sm:%s565]
  %vm567 = vcmask 1045508
  %v568 = vsel %vm567, %v566, %v563
  %s569 = scalar_lea.vmem %s0, 130
  %s570 = smov 192
  %v571 = vld [vmem:[%s569] ss:$16 sm:%s570]
  %vm572 = vcmask 1047558
  %v573 = vsel %vm572, %v571, %v568
  %574 = vrot.lane.b32.xlu0 %v573, 18
  %v575 = vpop.permute.xlu0 %574
  %vm576 = vcmask 220304
  %s577 = scalar_lea.vmem %s1, 8
  %578 = vst.msk [vmem:[%s577] sm:$0xff] %vm576, %v575
  %s579 = scalar_lea.vmem %s0, 1
  %s580 = smov 3
  %v581 = vld [vmem:[%s579] ss:$16 sm:%s580]
  %s582 = scalar_lea.vmem %s0, 1
  %s583 = smov 12
  %v584 = vld [vmem:[%s582] ss:$16 sm:%s583]
  %vm585 = vcmask 1043458
  %v586 = vsel %vm585, %v584, %v581
  %s587 = scalar_lea.vmem %s0, 1
  %s588 = smov 48
  %v589 = vld [vmem:[%s587] ss:$16 sm:%s588]
  %vm590 = vcmask 1045508
  %v591 = vsel %vm590, %v589, %v586
  %s592 = scalar_lea.vmem %s0, 1
  %s593 = smov 192
  %v594 = vld [vmem:[%s592] ss:$16 sm:%s593]
  %vm595 = vcmask 1047558
  %v596 = vsel %vm595, %v594, %v591
  %597 = vrot.lane.b32.xlu0 %v596, 9
  %v598 = vpop.permute.xlu0 %597
  %vm599 = vcmask 146504
  %600 = vst.msk [vmem:[%s1] sm:$0xff] %vm599, %v598
  %s601 = scalar_lea.vmem %s0, 129
  %s602 = smov 3
  %v603 = vld [vmem:[%s601] ss:$16 sm:%s602]
  %s604 = scalar_lea.vmem %s0, 129
  %s605 = smov 12
  %v606 = vld [vmem:[%s604] ss:$16 sm:%s605]
  %vm607 = vcmask 1043458
  %v608 = vsel %vm607, %v606, %v603
  %s609 = scalar_lea.vmem %s0, 129
  %s610 = smov 48
  %v611 = vld [vmem:[%s609] ss:$16 sm:%s610]
  %vm612 = vcmask 1045508
  %v613 = vsel %vm612, %v611, %v608
  %s614 = scalar_lea.vmem %s0, 129
  %s615 = smov 192
  %v616 = vld [vmem:[%s614] ss:$16 sm:%s615]
  %vm617 = vcmask 1047558
  %v618 = vsel %vm617, %v616, %v613
  %619 = vrot.lane.b32.xlu0 %v618, 9
  %v620 = vpop.permute.xlu0 %619
  %vm621 = vcmask 146504
  %s622 = scalar_lea.vmem %s1, 8
  %623 = vst.msk [vmem:[%s622] sm:$0xff] %vm621, %v620

// kernel: denoise_forward.1
$region0: #{denoise_forward.1}
  #allocation0 [shape = 'u32[]', space=smem, size = 0x4, offset = 0x4, fixed_abs, tag = 'smem constant byte address 0x4 - core index']
  #allocation1 [shape = 'u32[144,128]{1,0:T(1,128)}', space=vmem, size = 0x12000, scoped, tag = 'internal scratch']
  %s0 = inlined_call_operand.vmem [shape: f32[16,32], index: 0, kind: input, shape index: {}]
  %s1 = inlined_call_operand.vmem [shape: f32[16,128], index: 1, kind: input, shape index: {}]
  %s2 = inlined_call_operand.vmem [shape: f32[16,126], index: 2, kind: input, shape index: {}]
  %s3 = inlined_call_operand.vmem [shape: f32[16,20], index: 3, kind: input, shape index: {}]
  %s4 = inlined_call_operand.vmem [shape: f32[360,128], index: 4, kind: input, shape index: {}]
  %s5 = inlined_call_operand.vmem [shape: f32[344,128], index: 5, kind: input, shape index: {}]
  %s6 = inlined_call_operand.vmem [shape: f32[16,45], index: 6, kind: output, shape index: {}]
  %s7 = sld [smem:[#allocation0]]
  $region34: #{denoise_forward.1} parent=0
    _
  %s9 = ssub.s32 1, %s7
  %s10 = scalar_select 0, %s9, %s7
  // Predicated region
  $region2: #{denoise_forward.1} parent=0 // pred_check
    _
  $region3: #{denoise_forward.1} parent=0 // pred_check_branch
    %12 = sbr.rel (0) target = $region5
  $region4: #{denoise_forward.1} parent=0 // pred_region
    _
  $region5: #{denoise_forward.1} parent=0 // pred_fallthru
    _
  // Predicated region
  $region6: #{denoise_forward.1} parent=0 // pred_check
    _
  $region7: #{denoise_forward.1} parent=0 // pred_check_branch
    %14 = sbr.rel (0) target = $region9
  $region8: #{denoise_forward.1} parent=0 // pred_region
    _
  $region9: #{denoise_forward.1} parent=0 // pred_fallthru
    _
  // Predicated region
  $region10: #{denoise_forward.1} parent=0 // pred_check
    _
  $region11: #{denoise_forward.1} parent=0 // pred_check_branch
    %16 = sbr.rel (0) target = $region13
  $region12: #{denoise_forward.1} parent=0 // pred_region
    _
  $region13: #{denoise_forward.1} parent=0 // pred_fallthru
    _
  // Predicated region
  $region14: #{denoise_forward.1} parent=0 // pred_check
    _
  $region15: #{denoise_forward.1} parent=0 // pred_check_branch
    %18 = sbr.rel (0) target = $region17
  $region16: #{denoise_forward.1} parent=0 // pred_region
    _
  $region17: #{denoise_forward.1} parent=0 // pred_fallthru
    _
  // Predicated region
  $region18: #{denoise_forward.1} parent=0 // pred_check
    _
  $region19: #{denoise_forward.1} parent=0 // pred_check_branch
    %20 = sbr.rel (0) target = $region21
  $region20: #{denoise_forward.1} parent=0 // pred_region
    _
  $region21: #{denoise_forward.1} parent=0 // pred_fallthru
    _
  // Predicated region
  $region22: #{denoise_forward.1} parent=0 // pred_check
    _
  $region23: #{denoise_forward.1} parent=0 // pred_check_branch
    %22 = sbr.rel (0) target = $region25
  $region24: #{denoise_forward.1} parent=0 // pred_region
    _
  $region25: #{denoise_forward.1} parent=0 // pred_fallthru
    _
  %v23 = vld [vmem:[%s0] sm:$0xff]
  %v24 = vld [vmem:[%s0 + $0x8] sm:$0xff]
  %v25 = vld [vmem:[%s1] sm:$0xff]
  %v26 = vld [vmem:[%s1 + $0x8] sm:$0xff]
  %v27 = vld [vmem:[%s2] sm:$0xff]
  %v28 = vld [vmem:[%s2 + $0x8] sm:$0xff]
  %v29 = vld [vmem:[%s3] sm:$0xff]
  %v30 = vld [vmem:[%s3 + $0x8] sm:$0xff]
  %v31 = vld [vmem:[%s4] sm:$0xff]
  %v32 = vld [vmem:[%s4 + $0x8] sm:$0xff]
  %v33 = vld [vmem:[%s4 + $0x10] sm:$0xff]
  %v34 = vld [vmem:[%s4 + $0x18] sm:$0xff]
  %v35 = vld [vmem:[%s4 + $0x20] sm:$0xff]
  %v36 = vld [vmem:[%s4 + $0x28] sm:$0xff]
  %v37 = vld [vmem:[%s4 + $0x30] sm:$0xff]
  %v38 = vld [vmem:[%s4 + $0x38] sm:$0xff]
  %v39 = vld [vmem:[%s4 + $0x40] sm:$0xff]
  %v40 = vld [vmem:[%s4 + $0x48] sm:$0xff]
  %v41 = vld [vmem:[%s4 + $0x50] sm:$0xff]
  %v42 = vld [vmem:[%s4 + $0x58] sm:$0xff]
  %v43 = vld [vmem:[%s4 + $0x60] sm:$0xff]
  %v44 = vld [vmem:[%s4 + $0x68] sm:$0xff]
  %v45 = vld [vmem:[%s4 + $0x70] sm:$0xff]
  %v46 = vld [vmem:[%s4 + $0x78] sm:$0xff]
  %v47 = vld [vmem:[%s4 + $0x80] sm:$0xff]
  %v48 = vld [vmem:[%s4 + $0x88] sm:$0xff]
  %v49 = vld [vmem:[%s4 + $0x90] sm:$0xff]
  %v50 = vld [vmem:[%s4 + $0x98] sm:$0xff]
  %v51 = vld [vmem:[%s4 + $0xa0] sm:$0xff]
  %v52 = vld [vmem:[%s4 + $0xa8] sm:$0xff]
  %v53 = vld [vmem:[%s4 + $0xb0] sm:$0xff]
  %v54 = vld [vmem:[%s4 + $0xb8] sm:$0xff]
  %v55 = vld [vmem:[%s4 + $0xc0] sm:$0xff]
  %v56 = vld [vmem:[%s4 + $0xc8] sm:$0x3]
  %v57 = vld [vmem:[%s4 + $0xd0] sm:$0xff]
  %v58 = vld [vmem:[%s4 + $0xd8] sm:$0xff]
  %v59 = vld [vmem:[%s4 + $0xe0] sm:$0xff]
  %v60 = vld [vmem:[%s4 + $0xe8] sm:$0xff]
  %v61 = vld [vmem:[%s4 + $0xf0] sm:$0xff]
  %v62 = vld [vmem:[%s4 + $0xf8] sm:$0xff]
  %v63 = vld [vmem:[%s4 + $0x100] sm:$0xff]
  %v64 = vld [vmem:[%s4 + $0x108] sm:$0xff]
  %v65 = vld [vmem:[%s4 + $0x110] sm:$0xff]
  %v66 = vld [vmem:[%s4 + $0x118] sm:$0xff]
  %v67 = vld [vmem:[%s4 + $0x120] sm:$0xff]
  %v68 = vld [vmem:[%s4 + $0x128] sm:$0xff]
  %v69 = vld [vmem:[%s4 + $0x130] sm:$0xff]
  %v70 = vld [vmem:[%s4 + $0x138] sm:$0xff]
  %v71 = vld [vmem:[%s4 + $0x140] sm:$0xff]
  %v72 = vld [vmem:[%s4 + $0x148] sm:$0x3f]
  %v73 = vld [vmem:[%s4 + $0x150] sm:$0x7]
  %v74 = vld [vmem:[%s4 + $0x158] sm:$0xff]
  %v75 = vld [vmem:[%s4 + $0x160] sm:$0x7f]
  %v76 = vld [vmem:[%s5] sm:$0x1]
  %v77 = vld [vmem:[%s5 + $0x8] sm:$0xff]
  %v78 = vld [vmem:[%s5 + $0x10] sm:$0xff]
  %v79 = vld [vmem:[%s5 + $0x18] sm:$0xff]
  %v80 = vld [vmem:[%s5 + $0x20] sm:$0xff]
  %v81 = vld [vmem:[%s5 + $0x28] sm:$0xff]
  %v82 = vld [vmem:[%s5 + $0x30] sm:$0xff]
  %v83 = vld [vmem:[%s5 + $0x38] sm:$0xff]
  %v84 = vld [vmem:[%s5 + $0x40] sm:$0xff]
  %v85 = vld [vmem:[%s5 + $0x48] sm:$0xff]
  %v86 = vld [vmem:[%s5 + $0x50] sm:$0xff]
  %v87 = vld [vmem:[%s5 + $0x58] sm:$0xff]
  %v88 = vld [vmem:[%s5 + $0x60] sm:$0xff]
  %v89 = vld [vmem:[%s5 + $0x68] sm:$0xff]
  %v90 = vld [vmem:[%s5 + $0x70] sm:$0xff]
  %v91 = vld [vmem:[%s5 + $0x78] sm:$0xff]
  %v92 = vld [vmem:[%s5 + $0x80] sm:$0xff]
  %v93 = vld [vmem:[%s5 + $0x88] sm:$0xff]
  %v94 = vld [vmem:[%s5 + $0x90] sm:$0xff]
  %v95 = vld [vmem:[%s5 + $0x98] sm:$0xff]
  %v96 = vld [vmem:[%s5 + $0xa0] sm:$0xff]
  %v97 = vld [vmem:[%s5 + $0xa8] sm:$0xff]
  %v98 = vld [vmem:[%s5 + $0xb0] sm:$0xff]
  %v99 = vld [vmem:[%s5 + $0xb8] sm:$0xff]
  %v100 = vld [vmem:[%s5 + $0xc0] sm:$0xff]
  %v101 = vld [vmem:[%s5 + $0xc8] sm:$0xff]
  %v102 = vld [vmem:[%s5 + $0xd0] sm:$0xff]
  %v103 = vld [vmem:[%s5 + $0xd8] sm:$0xff]
  %v104 = vld [vmem:[%s5 + $0xe0] sm:$0xff]
  %v105 = vld [vmem:[%s5 + $0xe8] sm:$0xff]
  %v106 = vld [vmem:[%s5 + $0xf0] sm:$0xff]
  %v107 = vld [vmem:[%s5 + $0xf8] sm:$0xff]
  %v108 = vld [vmem:[%s5 + $0x100] sm:$0xff]
  %v109 = vld [vmem:[%s5 + $0x108] sm:$0xff]
  %v110 = vld [vmem:[%s5 + $0x110] sm:$0xff]
  %v111 = vld [vmem:[%s5 + $0x118] sm:$0xff]
  %v112 = vld [vmem:[%s5 + $0x120] sm:$0xff]
  %v113 = vld [vmem:[%s5 + $0x128] sm:$0xff]
  %v114 = vld [vmem:[%s5 + $0x130] sm:$0xff]
  %v115 = vld [vmem:[%s5 + $0x138] sm:$0xff]
  %v116 = vld [vmem:[%s5 + $0x140] sm:$0xff]
  %v117 = vld [vmem:[%s5 + $0x148] sm:$0xff]
  %v118 = vld [vmem:[%s5 + $0x150] sm:$0xff]
  %119 = vadd.xlane.f32.xlu0 0.0
  %v120 = vpop.xlane.xlu0 %119
  %v121 = vrcp.pop 32.0
  %v122 = vmul.f32 %v120, %v121
  %v123 = vsub.f32 0.0, %v122
  %v124 = vmul.f32 %v123, %v123
  %vm125 = vcmask 261120
  %v126 = vsel %vm125, %v124, 0.0
  %127 = vadd.xlane.f32.xlu0 %v126
  %v128 = vpop.xlane.xlu0 %127
  %v129 = vmul.f32 %v128, %v121
  %v130 = vadd.f32 %v129, 1e-05
  %v131 = vrsqrt.pop %v130
  %v132 = vmul.f32 %v123, %v131
  %v133 = vlaneseq
  %v134 = vshrl.u32 %v133, 7
  %v135 = vsub.s32 0, %v134
  %v136 = vrot.slane %v76, %v135
  %v137 = vmul.f32 %v132, %v136
  %139 = vrot.lane.b32.xlu0 %v136, 96
  %v140 = vpop.permute.xlu0 %139
  %v142 = vadd.f32 %v137, %v140
  %v143 = vadd.f32 %v23, %v142
  %v144 = vadd.f32 %v24, %v142
  %v145 = vrcp.pop 16.0
  %v146 = vmul.f32 0.0, %v145
  %v147 = vsub.f32 0.0, %v146
  %v148 = vmul.f32 %v147, %v147
  %v149 = vadd.f32 %v148, %v148
  %v150 = vrot.slane %v149, 4
  %v151 = vadd.f32 %v149, %v150
  %v152 = vrot.slane %v151, 2
  %v153 = vadd.f32 %v151, %v152
  %v154 = vrot.slane %v153, 1
  %v155 = vadd.f32 %v153, %v154
  %v156 = vmul.f32 %v155, %v145
  %v157 = vadd.f32 %v156, 1e-05
  %v158 = vrsqrt.pop %v157
  %v159 = vmul.f32 %v147, %v158
  %161 = vset.pattern.permute.xlu0 0
  %162 = vperm.xlu0 %161, %v77
  %v163 = vpop.permute.xlu0 %162
  %166 = vset.pattern.permute.xlu0 0
  %167 = vperm.xlu0 %166, %v78
  %v168 = vpop.permute.xlu0 %167
  %v170 = vmul.f32 %v159, %v163
  %v171 = vmul.f32 %v159, %v168
  %172 = vset.pattern.permute.xlu0 1
  %173 = vperm.xlu0 %172, %v77
  %v174 = vpop.permute.xlu0 %173
  %176 = vset.pattern.permute.xlu0 1
  %177 = vperm.xlu0 %176, %v78
  %v178 = vpop.permute.xlu0 %177
  %v180 = vadd.f32 %v170, %v174
  %v181 = vadd.f32 %v171, %v178
  %182 = vxpose.xlu0.b32.start [1/16] 0.0, 128
  %183 = vxpose.xlu0.b32.cont [2/16] 0.0, 128
  %184 = vxpose.xlu0.b32.cont [3/16] 0.0, 128
  %185 = vxpose.xlu0.b32.cont [4/16] 0.0, 128
  %186 = vxpose.xlu0.b32.cont [5/16] 0.0, 128
  %187 = vxpose.xlu0.b32.cont [6/16] 0.0, 128
  %188 = vxpose.xlu0.b32.cont [7/16] 0.0, 128
  %189 = vxpose.xlu0.b32.cont [8/16] 0.0, 128
  %190 = vxpose.xlu0.b32.cont [9/16] 0.0, 128
  %191 = vxpose.xlu0.b32.cont [10/16] 0.0, 128
  %192 = vxpose.xlu0.b32.cont [11/16] 0.0, 128
  %193 = vxpose.xlu0.b32.cont [12/16] 0.0, 128
  %194 = vxpose.xlu0.b32.cont [13/16] 0.0, 128
  %195 = vxpose.xlu0.b32.cont [14/16] 0.0, 128
  %196 = vxpose.xlu0.b32.cont [15/16] 0.0, 128
  %197 = vxpose.xlu0.b32.end [16/16] 0.0, 128
  %v198 = vpop.trf.xlu0
  %v199 = vpop.trf.xlu0
  %v200 = vpop.trf.xlu0
  %v201 = vpop.trf.xlu0
  %v202 = vpop.trf.xlu0
  %v203 = vpop.trf.xlu0
  %v204 = vpop.trf.xlu0
  %v205 = vpop.trf.xlu0
  %v206 = vpop.trf.xlu0
  %v207 = vpop.trf.xlu0
  %v208 = vpop.trf.xlu0
  %v209 = vpop.trf.xlu0
  %v210 = vpop.trf.xlu0
  %v211 = vpop.trf.xlu0
  %v212 = vpop.trf.xlu0
  %v213 = vpop.trf.xlu0
  %vm214 = vcmask 130048
  %v216 = vsel %vm214, %v198, 0
  %218 = vmatprep.subr.mxu0 0.0
  %219 = vmatpush1.msra.mxu0 %v33
  %220 = vmatprep.subr.mxu0 0.0
  %221 = vmatpush1.msra.mxu0 %v34
  %222 = vmatprep.subr.mxu0 0.0
  %223 = vmatpush1.msra.mxu0 0.0
  %224 = vmatprep.subr.mxu0 0.0
  %225 = vmatpush1.msra.mxu0 0.0
  %226 = vmatprep.subr.mxu0 0.0
  %227 = vmatpush1.msra.mxu0 0.0
  %228 = vmatprep.subr.mxu0 0.0
  %229 = vmatpush1.msra.mxu0 0.0
  %230 = vmatprep.subr.mxu0 0.0
  %231 = vmatpush1.msra.mxu0 0.0
  %232 = vmatprep.subr.mxu0 0.0
  %233 = vmatpush1.msra.mxu0 0.0
  %234 = vmatprep.subr.mxu0 0.0
  %235 = vmatpush1.msra.mxu0 0.0
  %236 = vmatprep.subr.mxu0 0.0
  %237 = vmatpush1.msra.mxu0 0.0
  %238 = vmatprep.subr.mxu0 0.0
  %239 = vmatpush1.msra.mxu0 0.0
  %240 = vmatprep.subr.mxu0 0.0
  %241 = vmatpush1.msra.mxu0 0.0
  %242 = vmatprep.subr.mxu0 0.0
  %243 = vmatpush1.msra.mxu0 0.0
  %244 = vmatprep.subr.mxu0 0.0
  %245 = vmatpush1.msra.mxu0 0.0
  %246 = vmatprep.subr.mxu0 0.0
  %247 = vmatpush1.msra.mxu0 0.0
  %248 = vmatprep.subr.mxu0 0.0
  %249 = vmatpush1.msra.mxu0 0.0
  %250 = vmatprep.subr.mxu0 0.0
  %251 = vmatpush1.msra.mxu0 0.0
  %252 = vmatprep.subr.mxu0 0.0
  %253 = vmatpush1.msra.mxu0 0.0
  %254 = vmatprep.subr.mxu0 0.0
  %255 = vmatpush1.msra.mxu0 0.0
  %256 = vmatprep.subr.mxu0 0.0
  %257 = vmatpush1.msra.mxu0 0.0
  %258 = vmatprep.subr.mxu0 0.0
  %259 = vmatpush1.msra.mxu0 0.0
  %260 = vmatprep.subr.mxu0 0.0
  %261 = vmatpush1.msra.mxu0 0.0
  %262 = vmatprep.subr.mxu0 0.0
  %263 = vmatpush1.msra.mxu0 0.0
  %264 = vmatprep.subr.mxu0 0.0
  %265 = vmatpush1.msra.mxu0 0.0
  %266 = vmatprep.subr.mxu0 0.0
  %267 = vmatpush1.msra.mxu0 0.0
  %268 = vmatprep.subr.mxu0 0.0
  %269 = vmatpush1.msra.mxu0 0.0
  %270 = vmatprep.subr.mxu0 0.0
  %271 = vmatpush1.msra.mxu0 0.0
  %272 = vmatprep.subr.mxu0 0.0
  %273 = vmatpush1.msra.mxu0 0.0
  %274 = vmatprep.subr.mxu0 0.0
  %275 = vmatpush1.msra.mxu0 0.0
  %276 = vmatprep.subr.mxu0 0.0
  %277 = vmatpush1.msra.mxu0 0.0
  %278 = vmatprep.subr.mxu0 0.0
  %279 = vmatpush1.msra.mxu0 0.0
  %280 = vmatprep.subr.mxu0 0.0
  %281 = vmatpush1.msra.mxu0 0.0
  %282 = vmatprep.mubr.f32.mxu0 0.0
  %283 = vmatmul.mubr.f32.gmra.mrb[0].mxu0 %v216
  %v284 = vpop.f32.mrb[0].mxu0
  %v285 = vadd.f32 0.0, %v284
  %v286 = vpop.f32.mrb[0].mxu0
  %287 = vdwg.mxu0
  %v288 = vmul.f32 %v285, %v285
  %vm289 = vcmask 1042432
  %v290 = vsel %vm289, %v288, 0.0
  %v291 = vrot.slane %v290, 4
  %v292 = vadd.f32 %v290, %v291
  %v293 = vrot.slane %v292, 2
  %v294 = vadd.f32 %v292, %v293
  %v295 = vrot.slane %v294, 1
  %v296 = vadd.f32 %v294, %v295
  %298 = vset.pattern.permute.xlu0 0
  %299 = vperm.xlu0 %298, %v74
  %v300 = vpop.permute.xlu0 %299
  %303 = vset.pattern.permute.xlu0 0
  %304 = vperm.xlu0 %303, %v75
  %v305 = vpop.permute.xlu0 %304
  %vm307 = vcmp.gt.f32.partialorder %v296, %v300
  %vm308 = vcmp.gt.f32.partialorder %v296, %v305
  %309 = vset.pattern.permute.xlu0 1
  %310 = vperm.xlu0 %309, %v74
  %v311 = vpop.permute.xlu0 %310
  %313 = vset.pattern.permute.xlu0 1
  %314 = vperm.xlu0 %313, %v75
  %v315 = vpop.permute.xlu0 %314
  %vm317 = vcmp.lt.f32.partialorder %v296, %v311
  %vm318 = vcmp.lt.f32.partialorder %v296, %v315
  %vm319 = vmand %vm307, %vm317
  %vm320 = vmand %vm308, %vm318
  %v321 = vsel %vm319, 1, 0
  %v322 = vsel %vm320, 1, 0
  %v323 = vcvt.s32.f32 %v321
  %v324 = vcvt.s32.f32 %v322
  %325 = vrot.lane.b32.xlu0 %v77, 125
  %v326 = vpop.permute.xlu0 %325
  %327 = vrot.lane.b32.xlu0 %v78, 125
  %v328 = vpop.permute.xlu0 %327
  %vm329 = vcmask 121856
  %v330 = vsel %vm329, %v326, 0
  %v332 = vsel %vm329, %v328, 0
  %vm334 = vcmask 1046528
  %v336 = vsel %vm334, %v324, 0
  %338 = vmatprep.subr.mxu0 0.0
  %339 = vmatpush1.msra.mxu0 %v323
  %340 = vmatprep.subr.mxu0 0.0
  %341 = vmatpush1.msra.mxu0 %v336
  %342 = vmatprep.subr.mxu0 0.0
  %343 = vmatpush1.msra.mxu0 0.0
  %344 = vmatprep.subr.mxu0 0.0
  %345 = vmatpush1.msra.mxu0 0.0
  %346 = vmatprep.subr.mxu0 0.0
  %347 = vmatpush1.msra.mxu0 0.0
  %348 = vmatprep.subr.mxu0 0.0
  %349 = vmatpush1.msra.mxu0 0.0
  %350 = vmatprep.subr.mxu0 0.0
  %351 = vmatpush1.msra.mxu0 0.0
  %352 = vmatprep.subr.mxu0 0.0
  %353 = vmatpush1.msra.mxu0 0.0
  %354 = vmatprep.subr.mxu0 0.0
  %355 = vmatpush1.msra.mxu0 0.0
  %356 = vmatprep.subr.mxu0 0.0
  %357 = vmatpush1.msra.mxu0 0.0
  %358 = vmatprep.subr.mxu0 0.0
  %359 = vmatpush1.msra.mxu0 0.0
  %360 = vmatprep.subr.mxu0 0.0
  %361 = vmatpush1.msra.mxu0 0.0
  %362 = vmatprep.subr.mxu0 0.0
  %363 = vmatpush1.msra.mxu0 0.0
  %364 = vmatprep.subr.mxu0 0.0
  %365 = vmatpush1.msra.mxu0 0.0
  %366 = vmatprep.subr.mxu0 0.0
  %367 = vmatpush1.msra.mxu0 0.0
  %368 = vmatprep.subr.mxu0 0.0
  %369 = vmatpush1.msra.mxu0 0.0
  %370 = vmatprep.subr.mxu0 0.0
  %371 = vmatpush1.msra.mxu0 0.0
  %372 = vmatprep.subr.mxu0 0.0
  %373 = vmatpush1.msra.mxu0 0.0
  %374 = vmatprep.subr.mxu0 0.0
  %375 = vmatpush1.msra.mxu0 0.0
  %376 = vmatprep.subr.mxu0 0.0
  %377 = vmatpush1.msra.mxu0 0.0
  %378 = vmatprep.subr.mxu0 0.0
  %379 = vmatpush1.msra.mxu0 0.0
  %380 = vmatprep.subr.mxu0 0.0
  %381 = vmatpush1.msra.mxu0 0.0
  %382 = vmatprep.subr.mxu0 0.0
  %383 = vmatpush1.msra.mxu0 0.0
  %384 = vmatprep.subr.mxu0 0.0
  %385 = vmatpush1.msra.mxu0 0.0
  %386 = vmatprep.subr.mxu0 0.0
  %387 = vmatpush1.msra.mxu0 0.0
  %388 = vmatprep.subr.mxu0 0.0
  %389 = vmatpush1.msra.mxu0 0.0
  %390 = vmatprep.subr.mxu0 0.0
  %391 = vmatpush1.msra.mxu0 0.0
  %392 = vmatprep.subr.mxu0 0.0
  %393 = vmatpush1.msra.mxu0 0.0
  %394 = vmatprep.subr.mxu0 0.0
  %395 = vmatpush1.msra.mxu0 0.0
  %396 = vmatprep.subr.mxu0 0.0
  %397 = vmatpush1.msra.mxu0 0.0
  %398 = vmatprep.subr.mxu0 0.0
  %399 = vmatpush1.msra.mxu0 0.0
  %400 = vmatprep.subr.mxu0 0.0
  %401 = vmatpush1.msra.mxu0 0.0
  %402 = vmatprep.mubr.f32.mxu0 0.0
  %403 = vmatmul.mubr.f32.gmra.mrb[0].mxu0 %v330
  %v404 = vpop.f32.mrb[0].mxu0
  %v405 = vadd.f32 0.0, %v404
  %v406 = vpop.f32.mrb[0].mxu0
  %407 = vmatprep.mubr.f32.mxu0 0.0
  %408 = vmatmul.mubr.f32.gmra.mrb[0].mxu0 %v332
  %v409 = vpop.f32.mrb[0].mxu0
  %v410 = vadd.f32 0.0, %v409
  %v411 = vpop.f32.mrb[0].mxu0
  %412 = vdwg.mxu0
  %v413 = vadd.f32 %v25, %v180
  %v414 = vadd.f32 %v26, %v181
  %v415 = vadd.f32 %v413, %v405
  %v416 = vadd.f32 %v414, %v410
  %v418 = vsel %vm125, %v143, 0
  %v421 = vsel %vm125, %v144, 0
  %423 = vmatprep.subr.mxu0 0.0
  %424 = vmatpush1.msra.mxu0 %v79
  %425 = vmatprep.subr.mxu0 0.0
  %426 = vmatpush1.msra.mxu0 %v80
  %427 = vmatprep.subr.mxu0 0.0
  %428 = vmatpush1.msra.mxu0 %v81
  %429 = vmatprep.subr.mxu0 0.0
  %430 = vmatpush1.msra.mxu0 %v82
  %431 = vmatprep.subr.mxu0 0.0
  %432 = vmatpush1.msra.mxu0 0.0
  %433 = vmatprep.subr.mxu0 0.0
  %434 = vmatpush1.msra.mxu0 0.0
  %435 = vmatprep.subr.mxu0 0.0
  %436 = vmatpush1.msra.mxu0 0.0
  %437 = vmatprep.subr.mxu0 0.0
  %438 = vmatpush1.msra.mxu0 0.0
  %439 = vmatprep.subr.mxu0 0.0
  %440 = vmatpush1.msra.mxu0 0.0
  %441 = vmatprep.subr.mxu0 0.0
  %442 = vmatpush1.msra.mxu0 0.0
  %443 = vmatprep.subr.mxu0 0.0
  %444 = vmatpush1.msra.mxu0 0.0
  %445 = vmatprep.subr.mxu0 0.0
  %446 = vmatpush1.msra.mxu0 0.0
  %447 = vmatprep.subr.mxu0 0.0
  %448 = vmatpush1.msra.mxu0 0.0
  %449 = vmatprep.subr.mxu0 0.0
  %450 = vmatpush1.msra.mxu0 0.0
  %451 = vmatprep.subr.mxu0 0.0
  %452 = vmatpush1.msra.mxu0 0.0
  %453 = vmatprep.subr.mxu0 0.0
  %454 = vmatpush1.msra.mxu0 0.0
  %455 = vmatprep.subr.mxu0 0.0
  %456 = vmatpush1.msra.mxu0 0.0
  %457 = vmatprep.subr.mxu0 0.0
  %458 = vmatpush1.msra.mxu0 0.0
  %459 = vmatprep.subr.mxu0 0.0
  %460 = vmatpush1.msra.mxu0 0.0
  %461 = vmatprep.subr.mxu0 0.0
  %462 = vmatpush1.msra.mxu0 0.0
  %463 = vmatprep.subr.mxu0 0.0
  %464 = vmatpush1.msra.mxu0 0.0
  %465 = vmatprep.subr.mxu0 0.0
  %466 = vmatpush1.msra.mxu0 0.0
  %467 = vmatprep.subr.mxu0 0.0
  %468 = vmatpush1.msra.mxu0 0.0
  %469 = vmatprep.subr.mxu0 0.0
  %470 = vmatpush1.msra.mxu0 0.0
  %471 = vmatprep.subr.mxu0 0.0
  %472 = vmatpush1.msra.mxu0 0.0
  %473 = vmatprep.subr.mxu0 0.0
  %474 = vmatpush1.msra.mxu0 0.0
  %475 = vmatprep.subr.mxu0 0.0
  %476 = vmatpush1.msra.mxu0 0.0
  %477 = vmatprep.subr.mxu0 0.0
  %478 = vmatpush1.msra.mxu0 0.0
  %479 = vmatprep.subr.mxu0 0.0
  %480 = vmatpush1.msra.mxu0 0.0
  %481 = vmatprep.subr.mxu0 0.0
  %482 = vmatpush1.msra.mxu0 0.0
  %483 = vmatprep.subr.mxu0 0.0
  %484 = vmatpush1.msra.mxu0 0.0
  %485 = vmatprep.subr.mxu0 0.0
  %486 = vmatpush1.msra.mxu0 0.0
  %487 = vmatprep.mubr.f32.mxu0 0.0
  %488 = vmatmul.mubr.f32.gmra.mrb[0].mxu0 %v418
  %v489 = vpop.f32.mrb[0].mxu0
  %v490 = vadd.f32 0.0, %v489
  %v491 = vpop.f32.mrb[0].mxu0
  %492 = vmatprep.mubr.f32.mxu0 0.0
  %493 = vmatmul.mubr.f32.gmra.mrb[0].mxu0 %v421
  %v494 = vpop.f32.mrb[0].mxu0
  %v495 = vadd.f32 0.0, %v494
  %v496 = vpop.f32.mrb[0].mxu0
  %497 = vdwg.mxu0
  %498 = vset.pattern.permute.xlu0 2
  %499 = vperm.xlu0 %498, %v77
  %v500 = vpop.permute.xlu0 %499
  %502 = vset.pattern.permute.xlu0 2
  %503 = vperm.xlu0 %502, %v78
  %v504 = vpop.permute.xlu0 %503
  %v506 = vmul.f32 %v500, %v415
  %v507 = vmul.f32 %v504, %v416
  %v508 = vadd.f32 %v506, %v507
  %v509 = vrot.slane %v508, 4
  %v510 = vadd.f32 %v508, %v509
  %v511 = vrot.slane %v510, 2
  %v512 = vadd.f32 %v510, %v511
  %v513 = vrot.slane %v512, 1
  %v514 = vadd.f32 %v512, %v513
  %v515 = vmul.f32 %v31, %v514
  %v516 = vmul.f32 %v32, %v514
  %517 = vmatprep.subr.mxu0 0.0
  %518 = vmatpush1.msra.mxu0 %v35
  %519 = vmatprep.subr.mxu0 0.0
  %520 = vmatpush1.msra.mxu0 %v36
  %521 = vmatprep.subr.mxu0 0.0
  %522 = vmatpush1.msra.mxu0 %v37
  %523 = vmatprep.subr.mxu0 0.0
  %524 = vmatpush1.msra.mxu0 %v38
  %525 = vmatprep.subr.mxu0 0.0
  %526 = vmatpush1.msra.mxu0 %v39
  %527 = vmatprep.subr.mxu0 0.0
  %528 = vmatpush1.msra.mxu0 %v40
  %529 = vmatprep.subr.mxu0 0.0
  %530 = vmatpush1.msra.mxu0 %v41
  %531 = vmatprep.subr.mxu0 0.0
  %532 = vmatpush1.msra.mxu0 %v42
  %533 = vmatprep.subr.mxu0 0.0
  %534 = vmatpush1.msra.mxu0 %v43
  %535 = vmatprep.subr.mxu0 0.0
  %536 = vmatpush1.msra.mxu0 %v44
  %537 = vmatprep.subr.mxu0 0.0
  %538 = vmatpush1.msra.mxu0 %v45
  %539 = vmatprep.subr.mxu0 0.0
  %540 = vmatpush1.msra.mxu0 %v46
  %541 = vmatprep.subr.mxu0 0.0
  %542 = vmatpush1.msra.mxu0 %v47
  %543 = vmatprep.subr.mxu0 0.0
  %544 = vmatpush1.msra.mxu0 %v48
  %545 = vmatprep.subr.mxu0 0.0
  %546 = vmatpush1.msra.mxu0 %v49
  %547 = vmatprep.subr.mxu0 0.0
  %548 = vmatpush1.msra.mxu0 %v50
  %549 = vmatprep.subr.mxu0 0.0
  %550 = vmatpush1.msra.mxu0 0.0
  %551 = vmatprep.subr.mxu0 0.0
  %552 = vmatpush1.msra.mxu0 0.0
  %553 = vmatprep.subr.mxu0 0.0
  %554 = vmatpush1.msra.mxu0 0.0
  %555 = vmatprep.subr.mxu0 0.0
  %556 = vmatpush1.msra.mxu0 0.0
  %557 = vmatprep.subr.mxu0 0.0
  %558 = vmatpush1.msra.mxu0 0.0
  %559 = vmatprep.subr.mxu0 0.0
  %560 = vmatpush1.msra.mxu0 0.0
  %561 = vmatprep.subr.mxu0 0.0
  %562 = vmatpush1.msra.mxu0 0.0
  %563 = vmatprep.subr.mxu0 0.0
  %564 = vmatpush1.msra.mxu0 0.0
  %565 = vmatprep.subr.mxu0 0.0
  %566 = vmatpush1.msra.mxu0 0.0
  %567 = vmatprep.subr.mxu0 0.0
  %568 = vmatpush1.msra.mxu0 0.0
  %569 = vmatprep.subr.mxu0 0.0
  %570 = vmatpush1.msra.mxu0 0.0
  %571 = vmatprep.subr.mxu0 0.0
  %572 = vmatpush1.msra.mxu0 0.0
  %573 = vmatprep.subr.mxu0 0.0
  %574 = vmatpush1.msra.mxu0 0.0
  %575 = vmatprep.subr.mxu0 0.0
  %576 = vmatpush1.msra.mxu0 0.0
  %577 = vmatprep.subr.mxu0 0.0
  %578 = vmatpush1.msra.mxu0 0.0
  %579 = vmatprep.subr.mxu0 0.0
  %580 = vmatpush1.msra.mxu0 0.0
  %581 = vmatprep.mubr.f32.mxu0 0.0
  %582 = vmatmul.mubr.f32.gmra.mrb[0].mxu0 %v515
  %v583 = vpop.f32.mrb[0].mxu0
  %v584 = vadd.f32 0.0, %v583
  %v585 = vpop.f32.mrb[0].mxu0
  %586 = vmatprep.mubr.f32.mxu0 0.0
  %587 = vmatmul.mubr.f32.gmra.mrb[0].mxu0 %v516
  %v588 = vpop.f32.mrb[0].mxu0
  %v589 = vadd.f32 0.0, %v588
  %v590 = vpop.f32.mrb[0].mxu0
  %591 = vdwg.mxu0
  %594 = vrot.lane.b32.xlu0 %v490, 112
  %v595 = vpop.permute.xlu0 %594
  %596 = vrot.lane.b32.xlu0 %v495, 112
  %v597 = vpop.permute.xlu0 %596
  %v598 = vsel %vm214, %v490, 0
  %v600 = vsel %vm214, %v495, 0
  %v602 = vsel %vm214, %v595, 0
  %v604 = vsel %vm214, %v597, 0
  %606 = vmatprep.subr.mxu0 0.0
  %607 = vmatpush1.xpose.msra.mxu0 %v602
  %608 = vmatprep.subr.mxu0 0.0
  %609 = vmatpush1.xpose.msra.mxu0 %v604
  %610 = vmatprep.subr.mxu0 0.0
  %611 = vmatpush1.xpose.msra.mxu0 0.0
  %612 = vmatprep.subr.mxu0 0.0
  %613 = vmatpush1.xpose.msra.mxu0 0.0
  %614 = vmatprep.subr.mxu0 0.0
  %615 = vmatpush1.xpose.msra.mxu0 0.0
  %616 = vmatprep.subr.mxu0 0.0
  %617 = vmatpush1.xpose.msra.mxu0 0.0
  %618 = vmatprep.subr.mxu0 0.0
  %619 = vmatpush1.xpose.msra.mxu0 0.0
  %620 = vmatprep.subr.mxu0 0.0
  %621 = vmatpush1.xpose.msra.mxu0 0.0
  %622 = vmatprep.subr.mxu0 0.0
  %623 = vmatpush1.xpose.msra.mxu0 0.0
  %624 = vmatprep.subr.mxu0 0.0
  %625 = vmatpush1.xpose.msra.mxu0 0.0
  %626 = vmatprep.subr.mxu0 0.0
  %627 = vmatpush1.xpose.msra.mxu0 0.0
  %628 = vmatprep.subr.mxu0 0.0
  %629 = vmatpush1.xpose.msra.mxu0 0.0
  %630 = vmatprep.subr.mxu0 0.0
  %631 = vmatpush1.xpose.msra.mxu0 0.0
  %632 = vmatprep.subr.mxu0 0.0
  %633 = vmatpush1.xpose.msra.mxu0 0.0
  %634 = vmatprep.subr.mxu0 0.0
  %635 = vmatpush1.xpose.msra.mxu0 0.0
  %636 = vmatprep.subr.mxu0 0.0
  %637 = vmatpush1.xpose.msra.mxu0 0.0
  %638 = vmatprep.subr.mxu0 0.0
  %639 = vmatpush1.xpose.msra.mxu0 0.0
  %640 = vmatprep.subr.mxu0 0.0
  %641 = vmatpush1.xpose.msra.mxu0 0.0
  %642 = vmatprep.subr.mxu0 0.0
  %643 = vmatpush1.xpose.msra.mxu0 0.0
  %644 = vmatprep.subr.mxu0 0.0
  %645 = vmatpush1.xpose.msra.mxu0 0.0
  %646 = vmatprep.subr.mxu0 0.0
  %647 = vmatpush1.xpose.msra.mxu0 0.0
  %648 = vmatprep.subr.mxu0 0.0
  %649 = vmatpush1.xpose.msra.mxu0 0.0
  %650 = vmatprep.subr.mxu0 0.0
  %651 = vmatpush1.xpose.msra.mxu0 0.0
  %652 = vmatprep.subr.mxu0 0.0
  %653 = vmatpush1.xpose.msra.mxu0 0.0
  %654 = vmatprep.subr.mxu0 0.0
  %655 = vmatpush1.xpose.msra.mxu0 0.0
  %656 = vmatprep.subr.mxu0 0.0
  %657 = vmatpush1.xpose.msra.mxu0 0.0
  %658 = vmatprep.subr.mxu0 0.0
  %659 = vmatpush1.xpose.msra.mxu0 0.0
  %660 = vmatprep.subr.mxu0 0.0
  %661 = vmatpush1.xpose.msra.mxu0 0.0
  %662 = vmatprep.subr.mxu0 0.0
  %663 = vmatpush1.xpose.msra.mxu0 0.0
  %664 = vmatprep.subr.mxu0 0.0
  %665 = vmatpush1.xpose.msra.mxu0 0.0
  %666 = vmatprep.subr.mxu0 0.0
  %667 = vmatpush1.xpose.msra.mxu0 0.0
  %668 = vmatprep.subr.mxu0 0.0
  %669 = vmatpush1.xpose.msra.mxu0 0.0
  %670 = vmatprep.mubr.f32.mxu0 0.0
  %671 = vmatmul.mubr.f32.gmra.mrb[0].mxu0 %v598
  %v672 = vpop.f32.mrb[0].mxu0
  %v673 = vadd.f32 0.0, %v672
  %v674 = vpop.f32.mrb[0].mxu0
  %675 = vmatprep.mubr.f32.mxu0 0.0
  %676 = vmatmul.mubr.f32.gmra.mrb[0].mxu0 %v600
  %v677 = vpop.f32.mrb[0].mxu0
  %v678 = vadd.f32 0.0, %v677
  %v679 = vpop.f32.mrb[0].mxu0
  %680 = vdwg.mxu0
  %v681 = vmul.f32 %v673, 0.25
  %v682 = vmul.f32 %v678, 0.25
  %v683 = vadd.f32 %v681, %v584
  %v684 = vadd.f32 %v682, %v589
  %687 = vrot.lane.b32.xlu0 %v29, 124
  %v688 = vpop.permute.xlu0 %687
  %689 = vrot.lane.b32.xlu0 %v30, 124
  %v690 = vpop.permute.xlu0 %689
  %v693 = vadd.f32 %v683, %v688
  %v694 = vadd.f32 %v684, %v690
  %v695 = vsel %vm214, %v693, -inf
  %696 = vmax.xlane.f32.xlu0 %v695
  %v697 = vpop.xlane.xlu0 %696
  %v698 = vsel %vm214, %v694, -inf
  %699 = vmax.xlane.f32.xlu0 %v698
  %v700 = vpop.xlane.xlu0 %699
  %v701 = vsub.f32 %v693, %v697
  %v702 = vsub.f32 %v694, %v700
  %v703 = vmul.f32 %v701, 1.442695
  %v704 = vpow.pop %v703
  %v705 = vmul.f32 %v702, 1.442695
  %v706 = vpow.pop %v705
  %v707 = vsel %vm214, %v704, 0.0
  %708 = vadd.xlane.f32.xlu0 %v707
  %v709 = vpop.xlane.xlu0 %708
  %v710 = vsel %vm214, %v706, 0.0
  %711 = vadd.xlane.f32.xlu0 %v710
  %v712 = vpop.xlane.xlu0 %711
  %v713 = vrcp.pop %v709
  %v714 = vmul.f32 %v704, %v713
  %v715 = vrcp.pop %v712
  %v716 = vmul.f32 %v706, %v715
  %717 = vrot.lane.b32.xlu0 %v490, 96
  %v718 = vpop.permute.xlu0 %717
  %719 = vrot.lane.b32.xlu0 %v495, 96
  %v720 = vpop.permute.xlu0 %719
  %v724 = vsel %vm214, %v714, 0
  %v727 = vsel %vm214, %v716, 0
  %729 = vmatprep.subr.mxu0 0.0
  %730 = vmatpush1.msra.mxu0 %v718
  %731 = vmatprep.subr.mxu0 0.0
  %732 = vmatpush1.msra.mxu0 %v720
  %733 = vmatprep.subr.mxu0 0.0
  %734 = vmatpush1.msra.mxu0 0.0
  %735 = vmatprep.subr.mxu0 0.0
  %736 = vmatpush1.msra.mxu0 0.0
  %737 = vmatprep.subr.mxu0 0.0
  %738 = vmatpush1.msra.mxu0 0.0
  %739 = vmatprep.subr.mxu0 0.0
  %740 = vmatpush1.msra.mxu0 0.0
  %741 = vmatprep.subr.mxu0 0.0
  %742 = vmatpush1.msra.mxu0 0.0
  %743 = vmatprep.subr.mxu0 0.0
  %744 = vmatpush1.msra.mxu0 0.0
  %745 = vmatprep.subr.mxu0 0.0
  %746 = vmatpush1.msra.mxu0 0.0
  %747 = vmatprep.subr.mxu0 0.0
  %748 = vmatpush1.msra.mxu0 0.0
  %749 = vmatprep.subr.mxu0 0.0
  %750 = vmatpush1.msra.mxu0 0.0
  %751 = vmatprep.subr.mxu0 0.0
  %752 = vmatpush1.msra.mxu0 0.0
  %753 = vmatprep.subr.mxu0 0.0
  %754 = vmatpush1.msra.mxu0 0.0
  %755 = vmatprep.subr.mxu0 0.0
  %756 = vmatpush1.msra.mxu0 0.0
  %757 = vmatprep.subr.mxu0 0.0
  %758 = vmatpush1.msra.mxu0 0.0
  %759 = vmatprep.subr.mxu0 0.0
  %760 = vmatpush1.msra.mxu0 0.0
  %761 = vmatprep.subr.mxu0 0.0
  %762 = vmatpush1.msra.mxu0 0.0
  %763 = vmatprep.subr.mxu0 0.0
  %764 = vmatpush1.msra.mxu0 0.0
  %765 = vmatprep.subr.mxu0 0.0
  %766 = vmatpush1.msra.mxu0 0.0
  %767 = vmatprep.subr.mxu0 0.0
  %768 = vmatpush1.msra.mxu0 0.0
  %769 = vmatprep.subr.mxu0 0.0
  %770 = vmatpush1.msra.mxu0 0.0
  %771 = vmatprep.subr.mxu0 0.0
  %772 = vmatpush1.msra.mxu0 0.0
  %773 = vmatprep.subr.mxu0 0.0
  %774 = vmatpush1.msra.mxu0 0.0
  %775 = vmatprep.subr.mxu0 0.0
  %776 = vmatpush1.msra.mxu0 0.0
  %777 = vmatprep.subr.mxu0 0.0
  %778 = vmatpush1.msra.mxu0 0.0
  %779 = vmatprep.subr.mxu0 0.0
  %780 = vmatpush1.msra.mxu0 0.0
  %781 = vmatprep.subr.mxu0 0.0
  %782 = vmatpush1.msra.mxu0 0.0
  %783 = vmatprep.subr.mxu0 0.0
  %784 = vmatpush1.msra.mxu0 0.0
  %785 = vmatprep.subr.mxu0 0.0
  %786 = vmatpush1.msra.mxu0 0.0
  %787 = vmatprep.subr.mxu0 0.0
  %788 = vmatpush1.msra.mxu0 0.0
  %789 = vmatprep.subr.mxu0 0.0
  %790 = vmatpush1.msra.mxu0 0.0
  %791 = vmatprep.subr.mxu0 0.0
  %792 = vmatpush1.msra.mxu0 0.0
  %793 = vmatprep.mubr.f32.mxu0 0.0
  %794 = vmatmul.mubr.f32.gmra.mrb[0].mxu0 %v724
  %v795 = vpop.f32.mrb[0].mxu0
  %v796 = vadd.f32 0.0, %v795
  %v797 = vpop.f32.mrb[0].mxu0
  %798 = vmatprep.mubr.f32.mxu0 0.0
  %799 = vmatmul.mubr.f32.gmra.mrb[0].mxu0 %v727
  %v800 = vpop.f32.mrb[0].mxu0
  %v801 = vadd.f32 0.0, %v800
  %v802 = vpop.f32.mrb[0].mxu0
  %803 = vdwg.mxu0
  %v805 = vsel %vm214, %v796, 0
  %v808 = vsel %vm214, %v801, 0
  %810 = vmatprep.subr.mxu0 0.0
  %811 = vmatpush1.msra.mxu0 %v83
  %812 = vmatprep.subr.mxu0 0.0
  %813 = vmatpush1.msra.mxu0 %v84
  %814 = vmatprep.subr.mxu0 0.0
  %815 = vmatpush1.msra.mxu0 0.0
  %816 = vmatprep.subr.mxu0 0.0
  %817 = vmatpush1.msra.mxu0 0.0
  %818 = vmatprep.subr.mxu0 0.0
  %819 = vmatpush1.msra.mxu0 0.0
  %820 = vmatprep.subr.mxu0 0.0
  %821 = vmatpush1.msra.mxu0 0.0
  %822 = vmatprep.subr.mxu0 0.0
  %823 = vmatpush1.msra.mxu0 0.0
  %824 = vmatprep.subr.mxu0 0.0
  %825 = vmatpush1.msra.mxu0 0.0
  %826 = vmatprep.subr.mxu0 0.0
  %827 = vmatpush1.msra.mxu0 0.0
  %828 = vmatprep.subr.mxu0 0.0
  %829 = vmatpush1.msra.mxu0 0.0
  %830 = vmatprep.subr.mxu0 0.0
  %831 = vmatpush1.msra.mxu0 0.0
  %832 = vmatprep.subr.mxu0 0.0
  %833 = vmatpush1.msra.mxu0 0.0
  %834 = vmatprep.subr.mxu0 0.0
  %835 = vmatpush1.msra.mxu0 0.0
  %836 = vmatprep.subr.mxu0 0.0
  %837 = vmatpush1.msra.mxu0 0.0
  %838 = vmatprep.subr.mxu0 0.0
  %839 = vmatpush1.msra.mxu0 0.0
  %840 = vmatprep.subr.mxu0 0.0
  %841 = vmatpush1.msra.mxu0 0.0
  %842 = vmatprep.subr.mxu0 0.0
  %843 = vmatpush1.msra.mxu0 0.0
  %844 = vmatprep.subr.mxu0 0.0
  %845 = vmatpush1.msra.mxu0 0.0
  %846 = vmatprep.subr.mxu0 0.0
  %847 = vmatpush1.msra.mxu0 0.0
  %848 = vmatprep.subr.mxu0 0.0
  %849 = vmatpush1.msra.mxu0 0.0
  %850 = vmatprep.subr.mxu0 0.0
  %851 = vmatpush1.msra.mxu0 0.0
  %852 = vmatprep.subr.mxu0 0.0
  %853 = vmatpush1.msra.mxu0 0.0
  %854 = vmatprep.subr.mxu0 0.0
  %855 = vmatpush1.msra.mxu0 0.0
  %856 = vmatprep.subr.mxu0 0.0
  %857 = vmatpush1.msra.mxu0 0.0
  %858 = vmatprep.subr.mxu0 0.0
  %859 = vmatpush1.msra.mxu0 0.0
  %860 = vmatprep.subr.mxu0 0.0
  %861 = vmatpush1.msra.mxu0 0.0
  %862 = vmatprep.subr.mxu0 0.0
  %863 = vmatpush1.msra.mxu0 0.0
  %864 = vmatprep.subr.mxu0 0.0
  %865 = vmatpush1.msra.mxu0 0.0
  %866 = vmatprep.subr.mxu0 0.0
  %867 = vmatpush1.msra.mxu0 0.0
  %868 = vmatprep.subr.mxu0 0.0
  %869 = vmatpush1.msra.mxu0 0.0
  %870 = vmatprep.subr.mxu0 0.0
  %871 = vmatpush1.msra.mxu0 0.0
  %872 = vmatprep.subr.mxu0 0.0
  %873 = vmatpush1.msra.mxu0 0.0
  %874 = vmatprep.mubr.f32.mxu0 0.0
  %875 = vmatmul.mubr.f32.gmra.mrb[0].mxu0 %v805
  %v876 = vpop.f32.mrb[0].mxu0
  %v877 = vadd.f32 0.0, %v876
  %v878 = vpop.f32.mrb[0].mxu0
  %879 = vmatprep.mubr.f32.mxu0 0.0
  %880 = vmatmul.mubr.f32.gmra.mrb[0].mxu0 %v808
  %v881 = vpop.f32.mrb[0].mxu0
  %v882 = vadd.f32 0.0, %v881
  %v883 = vpop.f32.mrb[0].mxu0
  %884 = vdwg.mxu0
  %v885 = vadd.f32 %v143, %v877
  %v886 = vadd.f32 %v144, %v882
  %v888 = vsel %vm125, %v885, 0
  %v891 = vsel %vm125, %v886, 0
  %893 = vmatprep.subr.mxu0 0.0
  %894 = vmatpush1.msra.mxu0 %v85
  %895 = vmatprep.subr.mxu0 0.0
  %896 = vmatpush1.msra.mxu0 %v86
  %897 = vmatprep.subr.mxu0 0.0
  %898 = vmatpush1.msra.mxu0 %v87
  %899 = vmatprep.subr.mxu0 0.0
  %900 = vmatpush1.msra.mxu0 %v88
  %901 = vmatprep.subr.mxu0 0.0
  %902 = vmatpush1.msra.mxu0 0.0
  %903 = vmatprep.subr.mxu0 0.0
  %904 = vmatpush1.msra.mxu0 0.0
  %905 = vmatprep.subr.mxu0 0.0
  %906 = vmatpush1.msra.mxu0 0.0
  %907 = vmatprep.subr.mxu0 0.0
  %908 = vmatpush1.msra.mxu0 0.0
  %909 = vmatprep.subr.mxu0 0.0
  %910 = vmatpush1.msra.mxu0 0.0
  %911 = vmatprep.subr.mxu0 0.0
  %912 = vmatpush1.msra.mxu0 0.0
  %913 = vmatprep.subr.mxu0 0.0
  %914 = vmatpush1.msra.mxu0 0.0
  %915 = vmatprep.subr.mxu0 0.0
  %916 = vmatpush1.msra.mxu0 0.0
  %917 = vmatprep.subr.mxu0 0.0
  %918 = vmatpush1.msra.mxu0 0.0
  %919 = vmatprep.subr.mxu0 0.0
  %920 = vmatpush1.msra.mxu0 0.0
  %921 = vmatprep.subr.mxu0 0.0
  %922 = vmatpush1.msra.mxu0 0.0
  %923 = vmatprep.subr.mxu0 0.0
  %924 = vmatpush1.msra.mxu0 0.0
  %925 = vmatprep.subr.mxu0 0.0
  %926 = vmatpush1.msra.mxu0 0.0
  %927 = vmatprep.subr.mxu0 0.0
  %928 = vmatpush1.msra.mxu0 0.0
  %929 = vmatprep.subr.mxu0 0.0
  %930 = vmatpush1.msra.mxu0 0.0
  %931 = vmatprep.subr.mxu0 0.0
  %932 = vmatpush1.msra.mxu0 0.0
  %933 = vmatprep.subr.mxu0 0.0
  %934 = vmatpush1.msra.mxu0 0.0
  %935 = vmatprep.subr.mxu0 0.0
  %936 = vmatpush1.msra.mxu0 0.0
  %937 = vmatprep.subr.mxu0 0.0
  %938 = vmatpush1.msra.mxu0 0.0
  %939 = vmatprep.subr.mxu0 0.0
  %940 = vmatpush1.msra.mxu0 0.0
  %941 = vmatprep.subr.mxu0 0.0
  %942 = vmatpush1.msra.mxu0 0.0
  %943 = vmatprep.subr.mxu0 0.0
  %944 = vmatpush1.msra.mxu0 0.0
  %945 = vmatprep.subr.mxu0 0.0
  %946 = vmatpush1.msra.mxu0 0.0
  %947 = vmatprep.subr.mxu0 0.0
  %948 = vmatpush1.msra.mxu0 0.0
  %949 = vmatprep.subr.mxu0 0.0
  %950 = vmatpush1.msra.mxu0 0.0
  %951 = vmatprep.subr.mxu0 0.0
  %952 = vmatpush1.msra.mxu0 0.0
  %953 = vmatprep.subr.mxu0 0.0
  %954 = vmatpush1.msra.mxu0 0.0
  %955 = vmatprep.subr.mxu0 0.0
  %956 = vmatpush1.msra.mxu0 0.0
  %957 = vmatprep.mubr.f32.mxu0 0.0
  %958 = vmatmul.mubr.f32.gmra.mrb[0].mxu0 %v888
  %v959 = vpop.f32.mrb[0].mxu0
  %v960 = vadd.f32 0.0, %v959
  %v961 = vpop.f32.mrb[0].mxu0
  %962 = vmatprep.mubr.f32.mxu0 0.0
  %963 = vmatmul.mubr.f32.gmra.mrb[0].mxu0 %v891
  %v964 = vpop.f32.mrb[0].mxu0
  %v965 = vadd.f32 0.0, %v964
  %v966 = vpop.f32.mrb[0].mxu0
  %967 = vdwg.mxu0
  %v968 = vmax.f32 %v960, 0.0
  %v969 = vmax.f32 %v965, 0.0
  %970 = vmatprep.subr.mxu0 0.0
  %971 = vmatpush1.msra.mxu0 %v89
  %972 = vmatprep.subr.mxu0 0.0
  %973 = vmatpush1.msra.mxu0 %v90
  %974 = vmatprep.subr.mxu0 0.0
  %975 = vmatpush1.msra.mxu0 %v91
  %976 = vmatprep.subr.mxu0 0.0
  %977 = vmatpush1.msra.mxu0 %v92
  %978 = vmatprep.subr.mxu0 0.0
  %979 = vmatpush1.msra.mxu0 %v93
  %980 = vmatprep.subr.mxu0 0.0
  %981 = vmatpush1.msra.mxu0 %v94
  %982 = vmatprep.subr.mxu0 0.0
  %983 = vmatpush1.msra.mxu0 %v95
  %984 = vmatprep.subr.mxu0 0.0
  %985 = vmatpush1.msra.mxu0 %v96
  %986 = vmatprep.subr.mxu0 0.0
  %987 = vmatpush1.msra.mxu0 %v97
  %988 = vmatprep.subr.mxu0 0.0
  %989 = vmatpush1.msra.mxu0 %v98
  %990 = vmatprep.subr.mxu0 0.0
  %991 = vmatpush1.msra.mxu0 %v99
  %992 = vmatprep.subr.mxu0 0.0
  %993 = vmatpush1.msra.mxu0 %v100
  %994 = vmatprep.subr.mxu0 0.0
  %995 = vmatpush1.msra.mxu0 %v101
  %996 = vmatprep.subr.mxu0 0.0
  %997 = vmatpush1.msra.mxu0 %v102
  %998 = vmatprep.subr.mxu0 0.0
  %999 = vmatpush1.msra.mxu0 %v103
  %1000 = vmatprep.subr.mxu0 0.0
  %1001 = vmatpush1.msra.mxu0 %v104
  %1002 = vmatprep.subr.mxu0 0.0
  %1003 = vmatpush1.msra.mxu0 0.0
  %1004 = vmatprep.subr.mxu0 0.0
  %1005 = vmatpush1.msra.mxu0 0.0
  %1006 = vmatprep.subr.mxu0 0.0
  %1007 = vmatpush1.msra.mxu0 0.0
  %1008 = vmatprep.subr.mxu0 0.0
  %1009 = vmatpush1.msra.mxu0 0.0
  %1010 = vmatprep.subr.mxu0 0.0
  %1011 = vmatpush1.msra.mxu0 0.0
  %1012 = vmatprep.subr.mxu0 0.0
  %1013 = vmatpush1.msra.mxu0 0.0
  %1014 = vmatprep.subr.mxu0 0.0
  %1015 = vmatpush1.msra.mxu0 0.0
  %1016 = vmatprep.subr.mxu0 0.0
  %1017 = vmatpush1.msra.mxu0 0.0
  %1018 = vmatprep.subr.mxu0 0.0
  %1019 = vmatpush1.msra.mxu0 0.0
  %1020 = vmatprep.subr.mxu0 0.0
  %1021 = vmatpush1.msra.mxu0 0.0
  %1022 = vmatprep.subr.mxu0 0.0
  %1023 = vmatpush1.msra.mxu0 0.0
  %1024 = vmatprep.subr.mxu0 0.0
  %1025 = vmatpush1.msra.mxu0 0.0
  %1026 = vmatprep.subr.mxu0 0.0
  %1027 = vmatpush1.msra.mxu0 0.0
  %1028 = vmatprep.subr.mxu0 0.0
  %1029 = vmatpush1.msra.mxu0 0.0
  %1030 = vmatprep.subr.mxu0 0.0
  %1031 = vmatpush1.msra.mxu0 0.0
  %1032 = vmatprep.subr.mxu0 0.0
  %1033 = vmatpush1.msra.mxu0 0.0
  %1034 = vmatprep.mubr.f32.mxu0 0.0
  %1035 = vmatmul.mubr.f32.gmra.mrb[0].mxu0 %v968
  %v1036 = vpop.f32.mrb[0].mxu0
  %v1037 = vadd.f32 0.0, %v1036
  %v1038 = vpop.f32.mrb[0].mxu0
  %1039 = vmatprep.mubr.f32.mxu0 0.0
  %1040 = vmatmul.mubr.f32.gmra.mrb[0].mxu0 %v969
  %v1041 = vpop.f32.mrb[0].mxu0
  %v1042 = vadd.f32 0.0, %v1041
  %v1043 = vpop.f32.mrb[0].mxu0
  %1044 = vdwg.mxu0
  %v1045 = vadd.f32 %v885, %v1037
  %v1046 = vadd.f32 %v886, %v1042
  %v1048 = vsel %vm214, %v105, 0
  %v1051 = vsel %vm214, %v106, 0
  %v1054 = vsel %vm214, %v107, 0
  %v1057 = vsel %vm214, %v108, 0
  %1059 = vmatprep.subr.mxu0 0.0
  %1060 = vmatpush1.msra.mxu0 %v415
  %1061 = vmatprep.subr.mxu0 0.0
  %1062 = vmatpush1.msra.mxu0 %v416
  %1063 = vmatprep.subr.mxu0 0.0
  %1064 = vmatpush1.msra.mxu0 0.0
  %1065 = vmatprep.subr.mxu0 0.0
  %1066 = vmatpush1.msra.mxu0 0.0
  %1067 = vmatprep.subr.mxu0 0.0
  %1068 = vmatpush1.msra.mxu0 0.0
  %1069 = vmatprep.subr.mxu0 0.0
  %1070 = vmatpush1.msra.mxu0 0.0
  %1071 = vmatprep.subr.mxu0 0.0
  %1072 = vmatpush1.msra.mxu0 0.0
  %1073 = vmatprep.subr.mxu0 0.0
  %1074 = vmatpush1.msra.mxu0 0.0
  %1075 = vmatprep.subr.mxu0 0.0
  %1076 = vmatpush1.msra.mxu0 0.0
  %1077 = vmatprep.subr.mxu0 0.0
  %1078 = vmatpush1.msra.mxu0 0.0
  %1079 = vmatprep.subr.mxu0 0.0
  %1080 = vmatpush1.msra.mxu0 0.0
  %1081 = vmatprep.subr.mxu0 0.0
  %1082 = vmatpush1.msra.mxu0 0.0
  %1083 = vmatprep.subr.mxu0 0.0
  %1084 = vmatpush1.msra.mxu0 0.0
  %1085 = vmatprep.subr.mxu0 0.0
  %1086 = vmatpush1.msra.mxu0 0.0
  %1087 = vmatprep.subr.mxu0 0.0
  %1088 = vmatpush1.msra.mxu0 0.0
  %1089 = vmatprep.subr.mxu0 0.0
  %1090 = vmatpush1.msra.mxu0 0.0
  %1091 = vmatprep.subr.mxu0 0.0
  %1092 = vmatpush1.msra.mxu0 0.0
  %1093 = vmatprep.subr.mxu0 0.0
  %1094 = vmatpush1.msra.mxu0 0.0
  %1095 = vmatprep.subr.mxu0 0.0
  %1096 = vmatpush1.msra.mxu0 0.0
  %1097 = vmatprep.subr.mxu0 0.0
  %1098 = vmatpush1.msra.mxu0 0.0
  %1099 = vmatprep.subr.mxu0 0.0
  %1100 = vmatpush1.msra.mxu0 0.0
  %1101 = vmatprep.subr.mxu0 0.0
  %1102 = vmatpush1.msra.mxu0 0.0
  %1103 = vmatprep.subr.mxu0 0.0
  %1104 = vmatpush1.msra.mxu0 0.0
  %1105 = vmatprep.subr.mxu0 0.0
  %1106 = vmatpush1.msra.mxu0 0.0
  %1107 = vmatprep.subr.mxu0 0.0
  %1108 = vmatpush1.msra.mxu0 0.0
  %1109 = vmatprep.subr.mxu0 0.0
  %1110 = vmatpush1.msra.mxu0 0.0
  %1111 = vmatprep.subr.mxu0 0.0
  %1112 = vmatpush1.msra.mxu0 0.0
  %1113 = vmatprep.subr.mxu0 0.0
  %1114 = vmatpush1.msra.mxu0 0.0
  %1115 = vmatprep.subr.mxu0 0.0
  %1116 = vmatpush1.msra.mxu0 0.0
  %1117 = vmatprep.subr.mxu0 0.0
  %1118 = vmatpush1.msra.mxu0 0.0
  %1119 = vmatprep.subr.mxu0 0.0
  %1120 = vmatpush1.msra.mxu0 0.0
  %1121 = vmatprep.subr.mxu0 0.0
  %1122 = vmatpush1.msra.mxu0 0.0
  %1123 = vmatprep.mubr.f32.mxu0 0.0
  %1124 = vmatmul.mubr.f32.gmra.mrb[0].mxu0 %v1048
  %v1125 = vpop.f32.mrb[0].mxu0
  %v1126 = vadd.f32 0.0, %v1125
  %v1127 = vpop.f32.mrb[0].mxu0
  %1128 = vmatprep.mubr.f32.mxu0 0.0
  %1129 = vmatmul.mubr.f32.gmra.mrb[0].mxu0 %v1051
  %v1130 = vpop.f32.mrb[0].mxu0
  %v1131 = vadd.f32 0.0, %v1130
  %v1132 = vpop.f32.mrb[0].mxu0
  %1133 = vmatprep.mubr.f32.mxu0 0.0
  %1134 = vmatmul.mubr.f32.gmra.mrb[0].mxu0 %v1054
  %v1135 = vpop.f32.mrb[0].mxu0
  %v1136 = vadd.f32 0.0, %v1135
  %v1137 = vpop.f32.mrb[0].mxu0
  %1138 = vmatprep.mubr.f32.mxu0 0.0
  %1139 = vmatmul.mubr.f32.gmra.mrb[0].mxu0 %v1057
  %v1140 = vpop.f32.mrb[0].mxu0
  %v1141 = vadd.f32 0.0, %v1140
  %v1142 = vpop.f32.mrb[0].mxu0
  %1143 = vdwg.mxu0
  %v1144 = vmax.f32 %v1126, 0.0
  %v1145 = vmax.f32 %v1131, 0.0
  %v1146 = vmax.f32 %v1136, 0.0
  %v1147 = vmax.f32 %v1141, 0.0
  %v1149 = vsel %vm125, %v109, 0
  %v1152 = vsel %vm125, %v110, 0
  %1154 = vmatprep.subr.mxu0 0.0
  %1155 = vmatpush1.msra.mxu0 %v1144
  %1156 = vmatprep.subr.mxu0 0.0
  %1157 = vmatpush1.msra.mxu0 %v1145
  %1158 = vmatprep.subr.mxu0 0.0
  %1159 = vmatpush1.msra.mxu0 %v1146
  %1160 = vmatprep.subr.mxu0 0.0
  %1161 = vmatpush1.msra.mxu0 %v1147
  %1162 = vmatprep.subr.mxu0 0.0
  %1163 = vmatpush1.msra.mxu0 0.0
  %1164 = vmatprep.subr.mxu0 0.0
  %1165 = vmatpush1.msra.mxu0 0.0
  %1166 = vmatprep.subr.mxu0 0.0
  %1167 = vmatpush1.msra.mxu0 0.0
  %1168 = vmatprep.subr.mxu0 0.0
  %1169 = vmatpush1.msra.mxu0 0.0
  %1170 = vmatprep.subr.mxu0 0.0
  %1171 = vmatpush1.msra.mxu0 0.0
  %1172 = vmatprep.subr.mxu0 0.0
  %1173 = vmatpush1.msra.mxu0 0.0
  %1174 = vmatprep.subr.mxu0 0.0
  %1175 = vmatpush1.msra.mxu0 0.0
  %1176 = vmatprep.subr.mxu0 0.0
  %1177 = vmatpush1.msra.mxu0 0.0
  %1178 = vmatprep.subr.mxu0 0.0
  %1179 = vmatpush1.msra.mxu0 0.0
  %1180 = vmatprep.subr.mxu0 0.0
  %1181 = vmatpush1.msra.mxu0 0.0
  %1182 = vmatprep.subr.mxu0 0.0
  %1183 = vmatpush1.msra.mxu0 0.0
  %1184 = vmatprep.subr.mxu0 0.0
  %1185 = vmatpush1.msra.mxu0 0.0
  %1186 = vmatprep.subr.mxu0 0.0
  %1187 = vmatpush1.msra.mxu0 0.0
  %1188 = vmatprep.subr.mxu0 0.0
  %1189 = vmatpush1.msra.mxu0 0.0
  %1190 = vmatprep.subr.mxu0 0.0
  %1191 = vmatpush1.msra.mxu0 0.0
  %1192 = vmatprep.subr.mxu0 0.0
  %1193 = vmatpush1.msra.mxu0 0.0
  %1194 = vmatprep.subr.mxu0 0.0
  %1195 = vmatpush1.msra.mxu0 0.0
  %1196 = vmatprep.subr.mxu0 0.0
  %1197 = vmatpush1.msra.mxu0 0.0
  %1198 = vmatprep.subr.mxu0 0.0
  %1199 = vmatpush1.msra.mxu0 0.0
  %1200 = vmatprep.subr.mxu0 0.0
  %1201 = vmatpush1.msra.mxu0 0.0
  %1202 = vmatprep.subr.mxu0 0.0
  %1203 = vmatpush1.msra.mxu0 0.0
  %1204 = vmatprep.subr.mxu0 0.0
  %1205 = vmatpush1.msra.mxu0 0.0
  %1206 = vmatprep.subr.mxu0 0.0
  %1207 = vmatpush1.msra.mxu0 0.0
  %1208 = vmatprep.subr.mxu0 0.0
  %1209 = vmatpush1.msra.mxu0 0.0
  %1210 = vmatprep.subr.mxu0 0.0
  %1211 = vmatpush1.msra.mxu0 0.0
  %1212 = vmatprep.subr.mxu0 0.0
  %1213 = vmatpush1.msra.mxu0 0.0
  %1214 = vmatprep.subr.mxu0 0.0
  %1215 = vmatpush1.msra.mxu0 0.0
  %1216 = vmatprep.subr.mxu0 0.0
  %1217 = vmatpush1.msra.mxu0 0.0
  %1218 = vmatprep.mubr.f32.mxu0 0.0
  %1219 = vmatmul.mubr.f32.gmra.mrb[0].mxu0 %v1149
  %v1220 = vpop.f32.mrb[0].mxu0
  %v1221 = vadd.f32 0.0, %v1220
  %v1222 = vpop.f32.mrb[0].mxu0
  %1223 = vmatprep.mubr.f32.mxu0 0.0
  %1224 = vmatmul.mubr.f32.gmra.mrb[0].mxu0 %v1152
  %v1225 = vpop.f32.mrb[0].mxu0
  %v1226 = vadd.f32 0.0, %v1225
  %v1227 = vpop.f32.mrb[0].mxu0
  %1228 = vdwg.mxu0
  %v1229 = vadd.f32 %v415, %v1221
  %v1230 = vadd.f32 %v416, %v1226
  %v1232 = vsel %vm125, %v1045, 0
  %v1235 = vsel %vm125, %v1046, 0
  %1237 = vmatprep.subr.mxu0 0.0
  %1238 = vmatpush1.msra.mxu0 %v111
  %1239 = vmatprep.subr.mxu0 0.0
  %1240 = vmatpush1.msra.mxu0 %v112
  %1241 = vmatprep.subr.mxu0 0.0
  %1242 = vmatpush1.msra.mxu0 %v113
  %1243 = vmatprep.subr.mxu0 0.0
  %1244 = vmatpush1.msra.mxu0 %v114
  %1245 = vmatprep.subr.mxu0 0.0
  %1246 = vmatpush1.msra.mxu0 0.0
  %1247 = vmatprep.subr.mxu0 0.0
  %1248 = vmatpush1.msra.mxu0 0.0
  %1249 = vmatprep.subr.mxu0 0.0
  %1250 = vmatpush1.msra.mxu0 0.0
  %1251 = vmatprep.subr.mxu0 0.0
  %1252 = vmatpush1.msra.mxu0 0.0
  %1253 = vmatprep.subr.mxu0 0.0
  %1254 = vmatpush1.msra.mxu0 0.0
  %1255 = vmatprep.subr.mxu0 0.0
  %1256 = vmatpush1.msra.mxu0 0.0
  %1257 = vmatprep.subr.mxu0 0.0
  %1258 = vmatpush1.msra.mxu0 0.0
  %1259 = vmatprep.subr.mxu0 0.0
  %1260 = vmatpush1.msra.mxu0 0.0
  %1261 = vmatprep.subr.mxu0 0.0
  %1262 = vmatpush1.msra.mxu0 0.0
  %1263 = vmatprep.subr.mxu0 0.0
  %1264 = vmatpush1.msra.mxu0 0.0
  %1265 = vmatprep.subr.mxu0 0.0
  %1266 = vmatpush1.msra.mxu0 0.0
  %1267 = vmatprep.subr.mxu0 0.0
  %1268 = vmatpush1.msra.mxu0 0.0
  %1269 = vmatprep.subr.mxu0 0.0
  %1270 = vmatpush1.msra.mxu0 0.0
  %1271 = vmatprep.subr.mxu0 0.0
  %1272 = vmatpush1.msra.mxu0 0.0
  %1273 = vmatprep.subr.mxu0 0.0
  %1274 = vmatpush1.msra.mxu0 0.0
  %1275 = vmatprep.subr.mxu0 0.0
  %1276 = vmatpush1.msra.mxu0 0.0
  %1277 = vmatprep.subr.mxu0 0.0
  %1278 = vmatpush1.msra.mxu0 0.0
  %1279 = vmatprep.subr.mxu0 0.0
  %1280 = vmatpush1.msra.mxu0 0.0
  %1281 = vmatprep.subr.mxu0 0.0
  %1282 = vmatpush1.msra.mxu0 0.0
  %1283 = vmatprep.subr.mxu0 0.0
  %1284 = vmatpush1.msra.mxu0 0.0
  %1285 = vmatprep.subr.mxu0 0.0
  %1286 = vmatpush1.msra.mxu0 0.0
  %1287 = vmatprep.subr.mxu0 0.0
  %1288 = vmatpush1.msra.mxu0 0.0
  %1289 = vmatprep.subr.mxu0 0.0
  %1290 = vmatpush1.msra.mxu0 0.0
  %1291 = vmatprep.subr.mxu0 0.0
  %1292 = vmatpush1.msra.mxu0 0.0
  %1293 = vmatprep.subr.mxu0 0.0
  %1294 = vmatpush1.msra.mxu0 0.0
  %1295 = vmatprep.subr.mxu0 0.0
  %1296 = vmatpush1.msra.mxu0 0.0
  %1297 = vmatprep.subr.mxu0 0.0
  %1298 = vmatpush1.msra.mxu0 0.0
  %1299 = vmatprep.subr.mxu0 0.0
  %1300 = vmatpush1.msra.mxu0 0.0
  %1301 = vmatprep.mubr.f32.mxu0 0.0
  %1302 = vmatmul.mubr.f32.gmra.mrb[0].mxu0 %v1232
  %v1303 = vpop.f32.mrb[0].mxu0
  %v1304 = vadd.f32 0.0, %v1303
  %v1305 = vpop.f32.mrb[0].mxu0
  %1306 = vmatprep.mubr.f32.mxu0 0.0
  %1307 = vmatmul.mubr.f32.gmra.mrb[0].mxu0 %v1235
  %v1308 = vpop.f32.mrb[0].mxu0
  %v1309 = vadd.f32 0.0, %v1308
  %v1310 = vpop.f32.mrb[0].mxu0
  %1311 = vdwg.mxu0
  %v1312 = vmax.f32 %v1304, 0.0
  %v1313 = vmax.f32 %v1309, 0.0
  %v1315 = vsel %vm125, %v1312, 0
  %v1318 = vsel %vm125, %v1313, 0
  %1320 = vmatprep.subr.mxu0 0.0
  %1321 = vmatpush1.msra.mxu0 %v115
  %1322 = vmatprep.subr.mxu0 0.0
  %1323 = vmatpush1.msra.mxu0 %v116
  %1324 = vmatprep.subr.mxu0 0.0
  %1325 = vmatpush1.msra.mxu0 %v117
  %1326 = vmatprep.subr.mxu0 0.0
  %1327 = vmatpush1.msra.mxu0 %v118
  %1328 = vmatprep.subr.mxu0 0.0
  %1329 = vmatpush1.msra.mxu0 0.0
  %1330 = vmatprep.subr.mxu0 0.0
  %1331 = vmatpush1.msra.mxu0 0.0
  %1332 = vmatprep.subr.mxu0 0.0
  %1333 = vmatpush1.msra.mxu0 0.0
  %1334 = vmatprep.subr.mxu0 0.0
  %1335 = vmatpush1.msra.mxu0 0.0
  %1336 = vmatprep.subr.mxu0 0.0
  %1337 = vmatpush1.msra.mxu0 0.0
  %1338 = vmatprep.subr.mxu0 0.0
  %1339 = vmatpush1.msra.mxu0 0.0
  %1340 = vmatprep.subr.mxu0 0.0
  %1341 = vmatpush1.msra.mxu0 0.0
  %1342 = vmatprep.subr.mxu0 0.0
  %1343 = vmatpush1.msra.mxu0 0.0
  %1344 = vmatprep.subr.mxu0 0.0
  %1345 = vmatpush1.msra.mxu0 0.0
  %1346 = vmatprep.subr.mxu0 0.0
  %1347 = vmatpush1.msra.mxu0 0.0
  %1348 = vmatprep.subr.mxu0 0.0
  %1349 = vmatpush1.msra.mxu0 0.0
  %1350 = vmatprep.subr.mxu0 0.0
  %1351 = vmatpush1.msra.mxu0 0.0
  %1352 = vmatprep.subr.mxu0 0.0
  %1353 = vmatpush1.msra.mxu0 0.0
  %1354 = vmatprep.subr.mxu0 0.0
  %1355 = vmatpush1.msra.mxu0 0.0
  %1356 = vmatprep.subr.mxu0 0.0
  %1357 = vmatpush1.msra.mxu0 0.0
  %1358 = vmatprep.subr.mxu0 0.0
  %1359 = vmatpush1.msra.mxu0 0.0
  %1360 = vmatprep.subr.mxu0 0.0
  %1361 = vmatpush1.msra.mxu0 0.0
  %1362 = vmatprep.subr.mxu0 0.0
  %1363 = vmatpush1.msra.mxu0 0.0
  %1364 = vmatprep.subr.mxu0 0.0
  %1365 = vmatpush1.msra.mxu0 0.0
  %1366 = vmatprep.subr.mxu0 0.0
  %1367 = vmatpush1.msra.mxu0 0.0
  %1368 = vmatprep.subr.mxu0 0.0
  %1369 = vmatpush1.msra.mxu0 0.0
  %1370 = vmatprep.subr.mxu0 0.0
  %1371 = vmatpush1.msra.mxu0 0.0
  %1372 = vmatprep.subr.mxu0 0.0
  %1373 = vmatpush1.msra.mxu0 0.0
  %1374 = vmatprep.subr.mxu0 0.0
  %1375 = vmatpush1.msra.mxu0 0.0
  %1376 = vmatprep.subr.mxu0 0.0
  %1377 = vmatpush1.msra.mxu0 0.0
  %1378 = vmatprep.subr.mxu0 0.0
  %1379 = vmatpush1.msra.mxu0 0.0
  %1380 = vmatprep.subr.mxu0 0.0
  %1381 = vmatpush1.msra.mxu0 0.0
  %1382 = vmatprep.subr.mxu0 0.0
  %1383 = vmatpush1.msra.mxu0 0.0
  %1384 = vmatprep.mubr.f32.mxu0 0.0
  %1385 = vmatmul.mubr.f32.gmra.mrb[0].mxu0 %v1315
  %v1386 = vpop.f32.mrb[0].mxu0
  %v1387 = vadd.f32 0.0, %v1386
  %v1388 = vpop.f32.mrb[0].mxu0
  %1389 = vmatprep.mubr.f32.mxu0 0.0
  %1390 = vmatmul.mubr.f32.gmra.mrb[0].mxu0 %v1318
  %v1391 = vpop.f32.mrb[0].mxu0
  %v1392 = vadd.f32 0.0, %v1391
  %v1393 = vpop.f32.mrb[0].mxu0
  %1394 = vdwg.mxu0
  %v1395 = vadd.f32 %v29, %v1387
  %v1396 = vadd.f32 %v30, %v1392
  %1399 = vrot.lane.b32.xlu0 %v1387, 125
  %v1400 = vpop.permute.xlu0 %1399
  %1401 = vrot.lane.b32.xlu0 %v1392, 125
  %v1402 = vpop.permute.xlu0 %1401
  %vm1403 = vcmask 343040
  %v1404 = vsel %vm1403, %v1400, 0
  %v1406 = vsel %vm1403, %v1402, 0
  %vm1408 = vcmask 1041408
  %v1410 = vsel %vm1408, %v56, 0
  %1412 = vmatprep.subr.mxu0 0.0
  %1413 = vmatpush1.msra.mxu0 %v51
  %1414 = vmatprep.subr.mxu0 0.0
  %1415 = vmatpush1.msra.mxu0 %v52
  %1416 = vmatprep.subr.mxu0 0.0
  %1417 = vmatpush1.msra.mxu0 %v53
  %1418 = vmatprep.subr.mxu0 0.0
  %1419 = vmatpush1.msra.mxu0 %v54
  %1420 = vmatprep.subr.mxu0 0.0
  %1421 = vmatpush1.msra.mxu0 %v55
  %1422 = vmatprep.subr.mxu0 0.0
  %1423 = vmatpush1.msra.mxu0 %v1410
  %1424 = vmatprep.subr.mxu0 0.0
  %1425 = vmatpush1.msra.mxu0 0.0
  %1426 = vmatprep.subr.mxu0 0.0
  %1427 = vmatpush1.msra.mxu0 0.0
  %1428 = vmatprep.subr.mxu0 0.0
  %1429 = vmatpush1.msra.mxu0 0.0
  %1430 = vmatprep.subr.mxu0 0.0
  %1431 = vmatpush1.msra.mxu0 0.0
  %1432 = vmatprep.subr.mxu0 0.0
  %1433 = vmatpush1.msra.mxu0 0.0
  %1434 = vmatprep.subr.mxu0 0.0
  %1435 = vmatpush1.msra.mxu0 0.0
  %1436 = vmatprep.subr.mxu0 0.0
  %1437 = vmatpush1.msra.mxu0 0.0
  %1438 = vmatprep.subr.mxu0 0.0
  %1439 = vmatpush1.msra.mxu0 0.0
  %1440 = vmatprep.subr.mxu0 0.0
  %1441 = vmatpush1.msra.mxu0 0.0
  %1442 = vmatprep.subr.mxu0 0.0
  %1443 = vmatpush1.msra.mxu0 0.0
  %1444 = vmatprep.subr.mxu0 0.0
  %1445 = vmatpush1.msra.mxu0 0.0
  %1446 = vmatprep.subr.mxu0 0.0
  %1447 = vmatpush1.msra.mxu0 0.0
  %1448 = vmatprep.subr.mxu0 0.0
  %1449 = vmatpush1.msra.mxu0 0.0
  %1450 = vmatprep.subr.mxu0 0.0
  %1451 = vmatpush1.msra.mxu0 0.0
  %1452 = vmatprep.subr.mxu0 0.0
  %1453 = vmatpush1.msra.mxu0 0.0
  %1454 = vmatprep.subr.mxu0 0.0
  %1455 = vmatpush1.msra.mxu0 0.0
  %1456 = vmatprep.subr.mxu0 0.0
  %1457 = vmatpush1.msra.mxu0 0.0
  %1458 = vmatprep.subr.mxu0 0.0
  %1459 = vmatpush1.msra.mxu0 0.0
  %1460 = vmatprep.subr.mxu0 0.0
  %1461 = vmatpush1.msra.mxu0 0.0
  %1462 = vmatprep.subr.mxu0 0.0
  %1463 = vmatpush1.msra.mxu0 0.0
  %1464 = vmatprep.subr.mxu0 0.0
  %1465 = vmatpush1.msra.mxu0 0.0
  %1466 = vmatprep.subr.mxu0 0.0
  %1467 = vmatpush1.msra.mxu0 0.0
  %1468 = vmatprep.subr.mxu0 0.0
  %1469 = vmatpush1.msra.mxu0 0.0
  %1470 = vmatprep.subr.mxu0 0.0
  %1471 = vmatpush1.msra.mxu0 0.0
  %1472 = vmatprep.subr.mxu0 0.0
  %1473 = vmatpush1.msra.mxu0 0.0
  %1474 = vmatprep.subr.mxu0 0.0
  %1475 = vmatpush1.msra.mxu0 0.0
  %1476 = vmatprep.mubr.f32.mxu0 0.0
  %1477 = vmatmul.mubr.f32.gmra.mrb[0].mxu0 %v1404
  %v1478 = vpop.f32.mrb[0].mxu0
  %v1479 = vadd.f32 0.0, %v1478
  %v1480 = vpop.f32.mrb[0].mxu0
  %1481 = vmatprep.mubr.f32.mxu0 0.0
  %1482 = vmatmul.mubr.f32.gmra.mrb[0].mxu0 %v1406
  %v1483 = vpop.f32.mrb[0].mxu0
  %v1484 = vadd.f32 0.0, %v1483
  %v1485 = vpop.f32.mrb[0].mxu0
  %1486 = vdwg.mxu0
  %v1487 = vmul.f32 %v1479, %v27
  %v1488 = vmul.f32 %v1484, %v28
  %vm1489 = vcmask 23552
  %v1491 = vsel %vm1489, %v1395, 0
  %v1494 = vsel %vm1489, %v1396, 0
  %v1497 = vsel %vm289, %v73, 0
  %1499 = vmatprep.subr.mxu0 0.0
  %1500 = vmatpush1.msra.mxu0 %v1497
  %1501 = vmatprep.subr.mxu0 0.0
  %1502 = vmatpush1.msra.mxu0 0.0
  %1503 = vmatprep.subr.mxu0 0.0
  %1504 = vmatpush1.msra.mxu0 0.0
  %1505 = vmatprep.subr.mxu0 0.0
  %1506 = vmatpush1.msra.mxu0 0.0
  %1507 = vmatprep.subr.mxu0 0.0
  %1508 = vmatpush1.msra.mxu0 0.0
  %1509 = vmatprep.subr.mxu0 0.0
  %1510 = vmatpush1.msra.mxu0 0.0
  %1511 = vmatprep.subr.mxu0 0.0
  %1512 = vmatpush1.msra.mxu0 0.0
  %1513 = vmatprep.subr.mxu0 0.0
  %1514 = vmatpush1.msra.mxu0 0.0
  %1515 = vmatprep.subr.mxu0 0.0
  %1516 = vmatpush1.msra.mxu0 0.0
  %1517 = vmatprep.subr.mxu0 0.0
  %1518 = vmatpush1.msra.mxu0 0.0
  %1519 = vmatprep.subr.mxu0 0.0
  %1520 = vmatpush1.msra.mxu0 0.0
  %1521 = vmatprep.subr.mxu0 0.0
  %1522 = vmatpush1.msra.mxu0 0.0
  %1523 = vmatprep.subr.mxu0 0.0
  %1524 = vmatpush1.msra.mxu0 0.0
  %1525 = vmatprep.subr.mxu0 0.0
  %1526 = vmatpush1.msra.mxu0 0.0
  %1527 = vmatprep.subr.mxu0 0.0
  %1528 = vmatpush1.msra.mxu0 0.0
  %1529 = vmatprep.subr.mxu0 0.0
  %1530 = vmatpush1.msra.mxu0 0.0
  %1531 = vmatprep.subr.mxu0 0.0
  %1532 = vmatpush1.msra.mxu0 0.0
  %1533 = vmatprep.subr.mxu0 0.0
  %1534 = vmatpush1.msra.mxu0 0.0
  %1535 = vmatprep.subr.mxu0 0.0
  %1536 = vmatpush1.msra.mxu0 0.0
  %1537 = vmatprep.subr.mxu0 0.0
  %1538 = vmatpush1.msra.mxu0 0.0
  %1539 = vmatprep.subr.mxu0 0.0
  %1540 = vmatpush1.msra.mxu0 0.0
  %1541 = vmatprep.subr.mxu0 0.0
  %1542 = vmatpush1.msra.mxu0 0.0
  %1543 = vmatprep.subr.mxu0 0.0
  %1544 = vmatpush1.msra.mxu0 0.0
  %1545 = vmatprep.subr.mxu0 0.0
  %1546 = vmatpush1.msra.mxu0 0.0
  %1547 = vmatprep.subr.mxu0 0.0
  %1548 = vmatpush1.msra.mxu0 0.0
  %1549 = vmatprep.subr.mxu0 0.0
  %1550 = vmatpush1.msra.mxu0 0.0
  %1551 = vmatprep.subr.mxu0 0.0
  %1552 = vmatpush1.msra.mxu0 0.0
  %1553 = vmatprep.subr.mxu0 0.0
  %1554 = vmatpush1.msra.mxu0 0.0
  %1555 = vmatprep.subr.mxu0 0.0
  %1556 = vmatpush1.msra.mxu0 0.0
  %1557 = vmatprep.subr.mxu0 0.0
  %1558 = vmatpush1.msra.mxu0 0.0
  %1559 = vmatprep.subr.mxu0 0.0
  %1560 = vmatpush1.msra.mxu0 0.0
  %1561 = vmatprep.subr.mxu0 0.0
  %1562 = vmatpush1.msra.mxu0 0.0
  %1563 = vmatprep.mubr.f32.mxu0 0.0
  %1564 = vmatmul.mubr.f32.gmra.mrb[0].mxu0 %v1491
  %v1565 = vpop.f32.mrb[0].mxu0
  %v1566 = vadd.f32 0.0, %v1565
  %v1567 = vpop.f32.mrb[0].mxu0
  %1568 = vmatprep.mubr.f32.mxu0 0.0
  %1569 = vmatmul.mubr.f32.gmra.mrb[0].mxu0 %v1494
  %v1570 = vpop.f32.mrb[0].mxu0
  %v1571 = vadd.f32 0.0, %v1570
  %v1572 = vpop.f32.mrb[0].mxu0
  %1573 = vdwg.mxu0
  %vm1574 = vcmask 1031168
  %v1576 = vsel %vm1574, %v1487, 0
  %v1579 = vsel %vm1574, %v1488, 0
  %vm1581 = vcmask 1045504
  %v1583 = vsel %vm1581, %v72, 0
  %1585 = vmatprep.subr.mxu0 0.0
  %1586 = vmatpush1.msra.mxu0 %v57
  %1587 = vmatprep.subr.mxu0 0.0
  %1588 = vmatpush1.msra.mxu0 %v58
  %1589 = vmatprep.subr.mxu0 0.0
  %1590 = vmatpush1.msra.mxu0 %v59
  %1591 = vmatprep.subr.mxu0 0.0
  %1592 = vmatpush1.msra.mxu0 %v60
  %1593 = vmatprep.subr.mxu0 0.0
  %1594 = vmatpush1.msra.mxu0 %v61
  %1595 = vmatprep.subr.mxu0 0.0
  %1596 = vmatpush1.msra.mxu0 %v62
  %1597 = vmatprep.subr.mxu0 0.0
  %1598 = vmatpush1.msra.mxu0 %v63
  %1599 = vmatprep.subr.mxu0 0.0
  %1600 = vmatpush1.msra.mxu0 %v64
  %1601 = vmatprep.subr.mxu0 0.0
  %1602 = vmatpush1.msra.mxu0 %v65
  %1603 = vmatprep.subr.mxu0 0.0
  %1604 = vmatpush1.msra.mxu0 %v66
  %1605 = vmatprep.subr.mxu0 0.0
  %1606 = vmatpush1.msra.mxu0 %v67
  %1607 = vmatprep.subr.mxu0 0.0
  %1608 = vmatpush1.msra.mxu0 %v68
  %1609 = vmatprep.subr.mxu0 0.0
  %1610 = vmatpush1.msra.mxu0 %v69
  %1611 = vmatprep.subr.mxu0 0.0
  %1612 = vmatpush1.msra.mxu0 %v70
  %1613 = vmatprep.subr.mxu0 0.0
  %1614 = vmatpush1.msra.mxu0 %v71
  %1615 = vmatprep.subr.mxu0 0.0
  %1616 = vmatpush1.msra.mxu0 %v1583
  %1617 = vmatprep.subr.mxu0 0.0
  %1618 = vmatpush1.msra.mxu0 0.0
  %1619 = vmatprep.subr.mxu0 0.0
  %1620 = vmatpush1.msra.mxu0 0.0
  %1621 = vmatprep.subr.mxu0 0.0
  %1622 = vmatpush1.msra.mxu0 0.0
  %1623 = vmatprep.subr.mxu0 0.0
  %1624 = vmatpush1.msra.mxu0 0.0
  %1625 = vmatprep.subr.mxu0 0.0
  %1626 = vmatpush1.msra.mxu0 0.0
  %1627 = vmatprep.subr.mxu0 0.0
  %1628 = vmatpush1.msra.mxu0 0.0
  %1629 = vmatprep.subr.mxu0 0.0
  %1630 = vmatpush1.msra.mxu0 0.0
  %1631 = vmatprep.subr.mxu0 0.0
  %1632 = vmatpush1.msra.mxu0 0.0
  %1633 = vmatprep.subr.mxu0 0.0
  %1634 = vmatpush1.msra.mxu0 0.0
  %1635 = vmatprep.subr.mxu0 0.0
  %1636 = vmatpush1.msra.mxu0 0.0
  %1637 = vmatprep.subr.mxu0 0.0
  %1638 = vmatpush1.msra.mxu0 0.0
  %1639 = vmatprep.subr.mxu0 0.0
  %1640 = vmatpush1.msra.mxu0 0.0
  %1641 = vmatprep.subr.mxu0 0.0
  %1642 = vmatpush1.msra.mxu0 0.0
  %1643 = vmatprep.subr.mxu0 0.0
  %1644 = vmatpush1.msra.mxu0 0.0
  %1645 = vmatprep.subr.mxu0 0.0
  %1646 = vmatpush1.msra.mxu0 0.0
  %1647 = vmatprep.subr.mxu0 0.0
  %1648 = vmatpush1.msra.mxu0 0.0
  %1649 = vmatprep.mubr.f32.mxu0 0.0
  %1650 = vmatmul.mubr.f32.gmra.mrb[0].mxu0 %v1576
  %v1651 = vpop.f32.mrb[0].mxu0
  %v1652 = vadd.f32 %v1566, %v1651
  %v1653 = vpop.f32.mrb[0].mxu0
  %1654 = vmatprep.mubr.f32.mxu0 0.0
  %1655 = vmatmul.mubr.f32.gmra.mrb[0].mxu0 %v1579
  %v1656 = vpop.f32.mrb[0].mxu0
  %v1657 = vadd.f32 %v1571, %v1656
  %v1658 = vpop.f32.mrb[0].mxu0
  %1659 = vdwg.mxu0
  %vm1660 = vcmp.gt.f32.partialorder %v29, 0.5
  %vm1661 = vcmp.gt.f32.partialorder %v30, 0.5
  %v1662 = vsel %vm1660, 1, 0
  %v1663 = vsel %vm1661, 1, 0
  %1664 = vset.pattern.permute.xlu0 3
  %1665 = vperm.xlu0 %1664, %v1662
  %v1666 = vpop.permute.xlu0 %1665
  %1667 = vset.pattern.permute.xlu0 3
  %1668 = vperm.xlu0 %1667, %v1663
  %v1669 = vpop.permute.xlu0 %1668
  %vm1670 = vcmp.eq.s32.totalorder %v1666, 1
  %vm1671 = vcmp.eq.s32.totalorder %v1669, 1
  %1674 = vrot.lane.b32.xlu0 %v1652, 119
  %v1675 = vpop.permute.xlu0 %1674
  %1676 = vrot.lane.b32.xlu0 %v1657, 119
  %v1677 = vpop.permute.xlu0 %1676
  %v1680 = vsel %vm1670, %v1652, %v1675
  %v1681 = vsel %vm1671, %v1657, %v1677
  %v1682 = vsel %vm125, %v1045, 0.0
  %1683 = vadd.xlane.f32.xlu0 %v1682
  %v1684 = vpop.xlane.xlu0 %1683
  %v1685 = vsel %vm125, %v1046, 0.0
  %1686 = vadd.xlane.f32.xlu0 %v1685
  %v1687 = vpop.xlane.xlu0 %1686
  %v1688 = vmul.f32 %v1684, %v121
  %v1689 = vmul.f32 %v1687, %v121
  %v1690 = vsub.f32 %v1045, %v1688
  %v1691 = vsub.f32 %v1046, %v1689
  %v1692 = vmul.f32 %v1690, %v1690
  %v1693 = vmul.f32 %v1691, %v1691
  %v1694 = vsel %vm125, %v1692, 0.0
  %1695 = vadd.xlane.f32.xlu0 %v1694
  %v1696 = vpop.xlane.xlu0 %1695
  %v1697 = vsel %vm125, %v1693, 0.0
  %1698 = vadd.xlane.f32.xlu0 %v1697
  %v1699 = vpop.xlane.xlu0 %1698
  %v1700 = vmul.f32 %v1696, %v121
  %v1701 = vmul.f32 %v1699, %v121
  %v1702 = vadd.f32 %v1700, 1e-05
  %v1703 = vadd.f32 %v1701, 1e-05
  %v1704 = vrsqrt.pop %v1702
  %v1705 = vrsqrt.pop %v1703
  %v1706 = vmul.f32 %v1690, %v1704
  %v1707 = vmul.f32 %v1691, %v1705
  %v1708 = vmul.f32 %v1706, %v136
  %v1709 = vmul.f32 %v1707, %v136
  %v1710 = vadd.f32 %v1708, %v140
  %v1711 = vadd.f32 %v1709, %v140
  %v1712 = vadd.f32 %v23, %v1710
  %v1713 = vadd.f32 %v24, %v1711
  %v1714 = vadd.f32 %v1229, %v1230
  %v1715 = vrot.slane %v1714, 4
  %v1716 = vadd.f32 %v1714, %v1715
  %v1717 = vrot.slane %v1716, 2
  %v1718 = vadd.f32 %v1716, %v1717
  %v1719 = vrot.slane %v1718, 1
  %v1720 = vadd.f32 %v1718, %v1719
  %v1721 = vmul.f32 %v1720, %v145
  %v1722 = vsub.f32 %v1229, %v1721
  %v1723 = vsub.f32 %v1230, %v1721
  %v1724 = vmul.f32 %v1722, %v1722
  %v1725 = vmul.f32 %v1723, %v1723
  %v1726 = vadd.f32 %v1724, %v1725
  %v1727 = vrot.slane %v1726, 4
  %v1728 = vadd.f32 %v1726, %v1727
  %v1729 = vrot.slane %v1728, 2
  %v1730 = vadd.f32 %v1728, %v1729
  %v1731 = vrot.slane %v1730, 1
  %v1732 = vadd.f32 %v1730, %v1731
  %v1733 = vmul.f32 %v1732, %v145
  %v1734 = vadd.f32 %v1733, 1e-05
  %v1735 = vrsqrt.pop %v1734
  %v1736 = vmul.f32 %v1722, %v1735
  %v1737 = vmul.f32 %v1723, %v1735
  %v1738 = vmul.f32 %v1736, %v163
  %v1739 = vmul.f32 %v1737, %v168
  %v1740 = vadd.f32 %v1738, %v174
  %v1741 = vadd.f32 %v1739, %v178
  %1744 = vrot.lane.b32.xlu0 %v1680, 125
  %v1745 = vpop.permute.xlu0 %1744
  %1746 = vrot.lane.b32.xlu0 %v1681, 125
  %v1747 = vpop.permute.xlu0 %1746
  %1750 = vxpose.xlu0.b32.start [1/16] %v1745, 128
  %1751 = vxpose.xlu0.b32.cont [2/16] %v1747, 128
  %1752 = vxpose.xlu0.b32.cont [3/16] 0.0, 128
  %1753 = vxpose.xlu0.b32.cont [4/16] 0.0, 128
  %1754 = vxpose.xlu0.b32.cont [5/16] 0.0, 128
  %1755 = vxpose.xlu0.b32.cont [6/16] 0.0, 128
  %1756 = vxpose.xlu0.b32.cont [7/16] 0.0, 128
  %1757 = vxpose.xlu0.b32.cont [8/16] 0.0, 128
  %1758 = vxpose.xlu0.b32.cont [9/16] 0.0, 128
  %1759 = vxpose.xlu0.b32.cont [10/16] 0.0, 128
  %1760 = vxpose.xlu0.b32.cont [11/16] 0.0, 128
  %1761 = vxpose.xlu0.b32.cont [12/16] 0.0, 128
  %1762 = vxpose.xlu0.b32.cont [13/16] 0.0, 128
  %1763 = vxpose.xlu0.b32.cont [14/16] 0.0, 128
  %1764 = vxpose.xlu0.b32.cont [15/16] 0.0, 128
  %1765 = vxpose.xlu0.b32.end [16/16] 0.0, 128
  %v1766 = vpop.trf.xlu0
  %v1767 = vpop.trf.xlu0
  %v1768 = vpop.trf.xlu0
  %v1769 = vpop.trf.xlu0
  %v1770 = vpop.trf.xlu0
  %v1771 = vpop.trf.xlu0
  %v1772 = vpop.trf.xlu0
  %v1773 = vpop.trf.xlu0
  %v1774 = vpop.trf.xlu0
  %v1775 = vpop.trf.xlu0
  %v1776 = vpop.trf.xlu0
  %v1777 = vpop.trf.xlu0
  %v1778 = vpop.trf.xlu0
  %v1779 = vpop.trf.xlu0
  %v1780 = vpop.trf.xlu0
  %v1781 = vpop.trf.xlu0
  %v1783 = vsel %vm214, %v1766, 0
  %1785 = vmatprep.subr.mxu0 0.0
  %1786 = vmatpush1.msra.mxu0 %v33
  %1787 = vmatprep.subr.mxu0 0.0
  %1788 = vmatpush1.msra.mxu0 %v34
  %1789 = vmatprep.subr.mxu0 0.0
  %1790 = vmatpush1.msra.mxu0 0.0
  %1791 = vmatprep.subr.mxu0 0.0
  %1792 = vmatpush1.msra.mxu0 0.0
  %1793 = vmatprep.subr.mxu0 0.0
  %1794 = vmatpush1.msra.mxu0 0.0
  %1795 = vmatprep.subr.mxu0 0.0
  %1796 = vmatpush1.msra.mxu0 0.0
  %1797 = vmatprep.subr.mxu0 0.0
  %1798 = vmatpush1.msra.mxu0 0.0
  %1799 = vmatprep.subr.mxu0 0.0
  %1800 = vmatpush1.msra.mxu0 0.0
  %1801 = vmatprep.subr.mxu0 0.0
  %1802 = vmatpush1.msra.mxu0 0.0
  %1803 = vmatprep.subr.mxu0 0.0
  %1804 = vmatpush1.msra.mxu0 0.0
  %1805 = vmatprep.subr.mxu0 0.0
  %1806 = vmatpush1.msra.mxu0 0.0
  %1807 = vmatprep.subr.mxu0 0.0
  %1808 = vmatpush1.msra.mxu0 0.0
  %1809 = vmatprep.subr.mxu0 0.0
  %1810 = vmatpush1.msra.mxu0 0.0
  %1811 = vmatprep.subr.mxu0 0.0
  %1812 = vmatpush1.msra.mxu0 0.0
  %1813 = vmatprep.subr.mxu0 0.0
  %1814 = vmatpush1.msra.mxu0 0.0
  %1815 = vmatprep.subr.mxu0 0.0
  %1816 = vmatpush1.msra.mxu0 0.0
  %1817 = vmatprep.subr.mxu0 0.0
  %1818 = vmatpush1.msra.mxu0 0.0
  %1819 = vmatprep.subr.mxu0 0.0
  %1820 = vmatpush1.msra.mxu0 0.0
  %1821 = vmatprep.subr.mxu0 0.0
  %1822 = vmatpush1.msra.mxu0 0.0
  %1823 = vmatprep.subr.mxu0 0.0
  %1824 = vmatpush1.msra.mxu0 0.0
  %1825 = vmatprep.subr.mxu0 0.0
  %1826 = vmatpush1.msra.mxu0 0.0
  %1827 = vmatprep.subr.mxu0 0.0
  %1828 = vmatpush1.msra.mxu0 0.0
  %1829 = vmatprep.subr.mxu0 0.0
  %1830 = vmatpush1.msra.mxu0 0.0
  %1831 = vmatprep.subr.mxu0 0.0
  %1832 = vmatpush1.msra.mxu0 0.0
  %1833 = vmatprep.subr.mxu0 0.0
  %1834 = vmatpush1.msra.mxu0 0.0
  %1835 = vmatprep.subr.mxu0 0.0
  %1836 = vmatpush1.msra.mxu0 0.0
  %1837 = vmatprep.subr.mxu0 0.0
  %1838 = vmatpush1.msra.mxu0 0.0
  %1839 = vmatprep.subr.mxu0 0.0
  %1840 = vmatpush1.msra.mxu0 0.0
  %1841 = vmatprep.subr.mxu0 0.0
  %1842 = vmatpush1.msra.mxu0 0.0
  %1843 = vmatprep.subr.mxu0 0.0
  %1844 = vmatpush1.msra.mxu0 0.0
  %1845 = vmatprep.subr.mxu0 0.0
  %1846 = vmatpush1.msra.mxu0 0.0
  %1847 = vmatprep.subr.mxu0 0.0
  %1848 = vmatpush1.msra.mxu0 0.0
  %1849 = vmatprep.mubr.f32.mxu0 0.0
  %1850 = vmatmul.mubr.f32.gmra.mrb[0].mxu0 %v1783
  %v1851 = vpop.f32.mrb[0].mxu0
  %v1852 = vadd.f32 0.0, %v1851
  %v1853 = vpop.f32.mrb[0].mxu0
  %1854 = vdwg.mxu0
  %v1855 = vmul.f32 %v1852, %v1852
  %v1856 = vsel %vm289, %v1855, 0.0
  %v1857 = vrot.slane %v1856, 4
  %v1858 = vadd.f32 %v1856, %v1857
  %v1859 = vrot.slane %v1858, 2
  %v1860 = vadd.f32 %v1858, %v1859
  %v1861 = vrot.slane %v1860, 1
  %v1862 = vadd.f32 %v1860, %v1861
  %vm1863 = vcmp.gt.f32.partialorder %v1862, %v300
  %vm1864 = vcmp.gt.f32.partialorder %v1862, %v305
  %vm1865 = vcmp.lt.f32.partialorder %v1862, %v311
  %vm1866 = vcmp.lt.f32.partialorder %v1862, %v315
  %vm1867 = vmand %vm1863, %vm1865
  %vm1868 = vmand %vm1864, %vm1866
  %v1869 = vsel %vm1867, 1, 0
  %v1870 = vsel %vm1868, 1, 0
  %v1871 = vcvt.s32.f32 %v1869
  %v1872 = vcvt.s32.f32 %v1870
  %v1874 = vsel %vm334, %v1872, 0
  %1876 = vmatprep.subr.mxu0 0.0
  %1877 = vmatpush1.msra.mxu0 %v1871
  %1878 = vmatprep.subr.mxu0 0.0
  %1879 = vmatpush1.msra.mxu0 %v1874
  %1880 = vmatprep.subr.mxu0 0.0
  %1881 = vmatpush1.msra.mxu0 0.0
  %1882 = vmatprep.subr.mxu0 0.0
  %1883 = vmatpush1.msra.mxu0 0.0
  %1884 = vmatprep.subr.mxu0 0.0
  %1885 = vmatpush1.msra.mxu0 0.0
  %1886 = vmatprep.subr.mxu0 0.0
  %1887 = vmatpush1.msra.mxu0 0.0
  %1888 = vmatprep.subr.mxu0 0.0
  %1889 = vmatpush1.msra.mxu0 0.0
  %1890 = vmatprep.subr.mxu0 0.0
  %1891 = vmatpush1.msra.mxu0 0.0
  %1892 = vmatprep.subr.mxu0 0.0
  %1893 = vmatpush1.msra.mxu0 0.0
  %1894 = vmatprep.subr.mxu0 0.0
  %1895 = vmatpush1.msra.mxu0 0.0
  %1896 = vmatprep.subr.mxu0 0.0
  %1897 = vmatpush1.msra.mxu0 0.0
  %1898 = vmatprep.subr.mxu0 0.0
  %1899 = vmatpush1.msra.mxu0 0.0
  %1900 = vmatprep.subr.mxu0 0.0
  %1901 = vmatpush1.msra.mxu0 0.0
  %1902 = vmatprep.subr.mxu0 0.0
  %1903 = vmatpush1.msra.mxu0 0.0
  %1904 = vmatprep.subr.mxu0 0.0
  %1905 = vmatpush1.msra.mxu0 0.0
  %1906 = vmatprep.subr.mxu0 0.0
  %1907 = vmatpush1.msra.mxu0 0.0
  %1908 = vmatprep.subr.mxu0 0.0
  %1909 = vmatpush1.msra.mxu0 0.0
  %1910 = vmatprep.subr.mxu0 0.0
  %1911 = vmatpush1.msra.mxu0 0.0
  %1912 = vmatprep.subr.mxu0 0.0
  %1913 = vmatpush1.msra.mxu0 0.0
  %1914 = vmatprep.subr.mxu0 0.0
  %1915 = vmatpush1.msra.mxu0 0.0
  %1916 = vmatprep.subr.mxu0 0.0
  %1917 = vmatpush1.msra.mxu0 0.0
  %1918 = vmatprep.subr.mxu0 0.0
  %1919 = vmatpush1.msra.mxu0 0.0
  %1920 = vmatprep.subr.mxu0 0.0
  %1921 = vmatpush1.msra.mxu0 0.0
  %1922 = vmatprep.subr.mxu0 0.0
  %1923 = vmatpush1.msra.mxu0 0.0
  %1924 = vmatprep.subr.mxu0 0.0
  %1925 = vmatpush1.msra.mxu0 0.0
  %1926 = vmatprep.subr.mxu0 0.0
  %1927 = vmatpush1.msra.mxu0 0.0
  %1928 = vmatprep.subr.mxu0 0.0
  %1929 = vmatpush1.msra.mxu0 0.0
  %1930 = vmatprep.subr.mxu0 0.0
  %1931 = vmatpush1.msra.mxu0 0.0
  %1932 = vmatprep.subr.mxu0 0.0
  %1933 = vmatpush1.msra.mxu0 0.0
  %1934 = vmatprep.subr.mxu0 0.0
  %1935 = vmatpush1.msra.mxu0 0.0
  %1936 = vmatprep.subr.mxu0 0.0
  %1937 = vmatpush1.msra.mxu0 0.0
  %1938 = vmatprep.subr.mxu0 0.0
  %1939 = vmatpush1.msra.mxu0 0.0
  %1940 = vmatprep.mubr.f32.mxu0 0.0
  %1941 = vmatmul.mubr.f32.gmra.mrb[0].mxu0 %v330
  %v1942 = vpop.f32.mrb[0].mxu0
  %v1943 = vadd.f32 0.0, %v1942
  %v1944 = vpop.f32.mrb[0].mxu0
  %1945 = vmatprep.mubr.f32.mxu0 0.0
  %1946 = vmatmul.mubr.f32.gmra.mrb[0].mxu0 %v332
  %v1947 = vpop.f32.mrb[0].mxu0
  %v1948 = vadd.f32 0.0, %v1947
  %v1949 = vpop.f32.mrb[0].mxu0
  %1950 = vdwg.mxu0
  %v1951 = vadd.f32 %v25, %v1740
  %v1952 = vadd.f32 %v26, %v1741
  %v1953 = vadd.f32 %v1951, %v1943
  %v1954 = vadd.f32 %v1952, %v1948
  %v1956 = vsel %vm125, %v1712, 0
  %v1959 = vsel %vm125, %v1713, 0
  %1961 = vmatprep.subr.mxu0 0.0
  %1962 = vmatpush1.msra.mxu0 %v79
  %1963 = vmatprep.subr.mxu0 0.0
  %1964 = vmatpush1.msra.mxu0 %v80
  %1965 = vmatprep.subr.mxu0 0.0
  %1966 = vmatpush1.msra.mxu0 %v81
  %1967 = vmatprep.subr.mxu0 0.0
  %1968 = vmatpush1.msra.mxu0 %v82
  %1969 = vmatprep.subr.mxu0 0.0
  %1970 = vmatpush1.msra.mxu0 0.0
  %1971 = vmatprep.subr.mxu0 0.0
  %1972 = vmatpush1.msra.mxu0 0.0
  %1973 = vmatprep.subr.mxu0 0.0
  %1974 = vmatpush1.msra.mxu0 0.0
  %1975 = vmatprep.subr.mxu0 0.0
  %1976 = vmatpush1.msra.mxu0 0.0
  %1977 = vmatprep.subr.mxu0 0.0
  %1978 = vmatpush1.msra.mxu0 0.0
  %1979 = vmatprep.subr.mxu0 0.0
  %1980 = vmatpush1.msra.mxu0 0.0
  %1981 = vmatprep.subr.mxu0 0.0
  %1982 = vmatpush1.msra.mxu0 0.0
  %1983 = vmatprep.subr.mxu0 0.0
  %1984 = vmatpush1.msra.mxu0 0.0
  %1985 = vmatprep.subr.mxu0 0.0
  %1986 = vmatpush1.msra.mxu0 0.0
  %1987 = vmatprep.subr.mxu0 0.0
  %1988 = vmatpush1.msra.mxu0 0.0
  %1989 = vmatprep.subr.mxu0 0.0
  %1990 = vmatpush1.msra.mxu0 0.0
  %1991 = vmatprep.subr.mxu0 0.0
  %1992 = vmatpush1.msra.mxu0 0.0
  %1993 = vmatprep.subr.mxu0 0.0
  %1994 = vmatpush1.msra.mxu0 0.0
  %1995 = vmatprep.subr.mxu0 0.0
  %1996 = vmatpush1.msra.mxu0 0.0
  %1997 = vmatprep.subr.mxu0 0.0
  %1998 = vmatpush1.msra.mxu0 0.0
  %1999 = vmatprep.subr.mxu0 0.0
  %2000 = vmatpush1.msra.mxu0 0.0
  %2001 = vmatprep.subr.mxu0 0.0
  %2002 = vmatpush1.msra.mxu0 0.0
  %2003 = vmatprep.subr.mxu0 0.0
  %2004 = vmatpush1.msra.mxu0 0.0
  %2005 = vmatprep.subr.mxu0 0.0
  %2006 = vmatpush1.msra.mxu0 0.0
  %2007 = vmatprep.subr.mxu0 0.0
  %2008 = vmatpush1.msra.mxu0 0.0
  %2009 = vmatprep.subr.mxu0 0.0
  %2010 = vmatpush1.msra.mxu0 0.0
  %2011 = vmatprep.subr.mxu0 0.0
  %2012 = vmatpush1.msra.mxu0 0.0
  %2013 = vmatprep.subr.mxu0 0.0
  %2014 = vmatpush1.msra.mxu0 0.0
  %2015 = vmatprep.subr.mxu0 0.0
  %2016 = vmatpush1.msra.mxu0 0.0
  %2017 = vmatprep.subr.mxu0 0.0
  %2018 = vmatpush1.msra.mxu0 0.0
  %2019 = vmatprep.subr.mxu0 0.0
  %2020 = vmatpush1.msra.mxu0 0.0
  %2021 = vmatprep.subr.mxu0 0.0
  %2022 = vmatpush1.msra.mxu0 0.0
  %2023 = vmatprep.subr.mxu0 0.0
  %2024 = vmatpush1.msra.mxu0 0.0
  %2025 = vmatprep.mubr.f32.mxu0 0.0
  %2026 = vmatmul.mubr.f32.gmra.mrb[0].mxu0 %v1956
  %v2027 = vpop.f32.mrb[0].mxu0
  %v2028 = vadd.f32 0.0, %v2027
  %v2029 = vpop.f32.mrb[0].mxu0
  %2030 = vmatprep.mubr.f32.mxu0 0.0
  %2031 = vmatmul.mubr.f32.gmra.mrb[0].mxu0 %v1959
  %v2032 = vpop.f32.mrb[0].mxu0
  %v2033 = vadd.f32 0.0, %v2032
  %v2034 = vpop.f32.mrb[0].mxu0
  %2035 = vdwg.mxu0
  %v2036 = vmul.f32 %v500, %v1953
  %v2037 = vmul.f32 %v504, %v1954
  %v2038 = vadd.f32 %v2036, %v2037
  %v2039 = vrot.slane %v2038, 4
  %v2040 = vadd.f32 %v2038, %v2039
  %v2041 = vrot.slane %v2040, 2
  %v2042 = vadd.f32 %v2040, %v2041
  %v2043 = vrot.slane %v2042, 1
  %v2044 = vadd.f32 %v2042, %v2043
  %v2045 = vmul.f32 %v31, %v2044
  %v2046 = vmul.f32 %v32, %v2044
  %2047 = vmatprep.subr.mxu0 0.0
  %2048 = vmatpush1.msra.mxu0 %v35
  %2049 = vmatprep.subr.mxu0 0.0
  %2050 = vmatpush1.msra.mxu0 %v36
  %2051 = vmatprep.subr.mxu0 0.0
  %2052 = vmatpush1.msra.mxu0 %v37
  %2053 = vmatprep.subr.mxu0 0.0
  %2054 = vmatpush1.msra.mxu0 %v38
  %2055 = vmatprep.subr.mxu0 0.0
  %2056 = vmatpush1.msra.mxu0 %v39
  %2057 = vmatprep.subr.mxu0 0.0
  %2058 = vmatpush1.msra.mxu0 %v40
  %2059 = vmatprep.subr.mxu0 0.0
  %2060 = vmatpush1.msra.mxu0 %v41
  %2061 = vmatprep.subr.mxu0 0.0
  %2062 = vmatpush1.msra.mxu0 %v42
  %2063 = vmatprep.subr.mxu0 0.0
  %2064 = vmatpush1.msra.mxu0 %v43
  %2065 = vmatprep.subr.mxu0 0.0
  %2066 = vmatpush1.msra.mxu0 %v44
  %2067 = vmatprep.subr.mxu0 0.0
  %2068 = vmatpush1.msra.mxu0 %v45
  %2069 = vmatprep.subr.mxu0 0.0
  %2070 = vmatpush1.msra.mxu0 %v46
  %2071 = vmatprep.subr.mxu0 0.0
  %2072 = vmatpush1.msra.mxu0 %v47
  %2073 = vmatprep.subr.mxu0 0.0
  %2074 = vmatpush1.msra.mxu0 %v48
  %2075 = vmatprep.subr.mxu0 0.0
  %2076 = vmatpush1.msra.mxu0 %v49
  %2077 = vmatprep.subr.mxu0 0.0
  %2078 = vmatpush1.msra.mxu0 %v50
  %2079 = vmatprep.subr.mxu0 0.0
  %2080 = vmatpush1.msra.mxu0 0.0
  %2081 = vmatprep.subr.mxu0 0.0
  %2082 = vmatpush1.msra.mxu0 0.0
  %2083 = vmatprep.subr.mxu0 0.0
  %2084 = vmatpush1.msra.mxu0 0.0
  %2085 = vmatprep.subr.mxu0 0.0
  %2086 = vmatpush1.msra.mxu0 0.0
  %2087 = vmatprep.subr.mxu0 0.0
  %2088 = vmatpush1.msra.mxu0 0.0
  %2089 = vmatprep.subr.mxu0 0.0
  %2090 = vmatpush1.msra.mxu0 0.0
  %2091 = vmatprep.subr.mxu0 0.0
  %2092 = vmatpush1.msra.mxu0 0.0
  %2093 = vmatprep.subr.mxu0 0.0
  %2094 = vmatpush1.msra.mxu0 0.0
  %2095 = vmatprep.subr.mxu0 0.0
  %2096 = vmatpush1.msra.mxu0 0.0
  %2097 = vmatprep.subr.mxu0 0.0
  %2098 = vmatpush1.msra.mxu0 0.0
  %2099 = vmatprep.subr.mxu0 0.0
  %2100 = vmatpush1.msra.mxu0 0.0
  %2101 = vmatprep.subr.mxu0 0.0
  %2102 = vmatpush1.msra.mxu0 0.0
  %2103 = vmatprep.subr.mxu0 0.0
  %2104 = vmatpush1.msra.mxu0 0.0
  %2105 = vmatprep.subr.mxu0 0.0
  %2106 = vmatpush1.msra.mxu0 0.0
  %2107 = vmatprep.subr.mxu0 0.0
  %2108 = vmatpush1.msra.mxu0 0.0
  %2109 = vmatprep.subr.mxu0 0.0
  %2110 = vmatpush1.msra.mxu0 0.0
  %2111 = vmatprep.mubr.f32.mxu0 0.0
  %2112 = vmatmul.mubr.f32.gmra.mrb[0].mxu0 %v2045
  %v2113 = vpop.f32.mrb[0].mxu0
  %v2114 = vadd.f32 0.0, %v2113
  %v2115 = vpop.f32.mrb[0].mxu0
  %2116 = vmatprep.mubr.f32.mxu0 0.0
  %2117 = vmatmul.mubr.f32.gmra.mrb[0].mxu0 %v2046
  %v2118 = vpop.f32.mrb[0].mxu0
  %v2119 = vadd.f32 0.0, %v2118
  %v2120 = vpop.f32.mrb[0].mxu0
  %2121 = vdwg.mxu0
  %2124 = vrot.lane.b32.xlu0 %v2028, 112
  %v2125 = vpop.permute.xlu0 %2124
  %2126 = vrot.lane.b32.xlu0 %v2033, 112
  %v2127 = vpop.permute.xlu0 %2126
  %v2128 = vsel %vm214, %v2028, 0
  %v2130 = vsel %vm214, %v2033, 0
  %v2132 = vsel %vm214, %v2125, 0
  %v2134 = vsel %vm214, %v2127, 0
  %2136 = vmatprep.subr.mxu0 0.0
  %2137 = vmatpush1.xpose.msra.mxu0 %v2132
  %2138 = vmatprep.subr.mxu0 0.0
  %2139 = vmatpush1.xpose.msra.mxu0 %v2134
  %2140 = vmatprep.subr.mxu0 0.0
  %2141 = vmatpush1.xpose.msra.mxu0 0.0
  %2142 = vmatprep.subr.mxu0 0.0
  %2143 = vmatpush1.xpose.msra.mxu0 0.0
  %2144 = vmatprep.subr.mxu0 0.0
  %2145 = vmatpush1.xpose.msra.mxu0 0.0
  %2146 = vmatprep.subr.mxu0 0.0
  %2147 = vmatpush1.xpose.msra.mxu0 0.0
  %2148 = vmatprep.subr.mxu0 0.0
  %2149 = vmatpush1.xpose.msra.mxu0 0.0
  %2150 = vmatprep.subr.mxu0 0.0
  %2151 = vmatpush1.xpose.msra.mxu0 0.0
  %2152 = vmatprep.subr.mxu0 0.0
  %2153 = vmatpush1.xpose.msra.mxu0 0.0
  %2154 = vmatprep.subr.mxu0 0.0
  %2155 = vmatpush1.xpose.msra.mxu0 0.0
  %2156 = vmatprep.subr.mxu0 0.0
  %2157 = vmatpush1.xpose.msra.mxu0 0.0
  %2158 = vmatprep.subr.mxu0 0.0
  %2159 = vmatpush1.xpose.msra.mxu0 0.0
  %2160 = vmatprep.subr.mxu0 0.0
  %2161 = vmatpush1.xpose.msra.mxu0 0.0
  %2162 = vmatprep.subr.mxu0 0.0
  %2163 = vmatpush1.xpose.msra.mxu0 0.0
  %2164 = vmatprep.subr.mxu0 0.0
  %2165 = vmatpush1.xpose.msra.mxu0 0.0
  %2166 = vmatprep.subr.mxu0 0.0
  %2167 = vmatpush1.xpose.msra.mxu0 0.0
  %2168 = vmatprep.subr.mxu0 0.0
  %2169 = vmatpush1.xpose.msra.mxu0 0.0
  %2170 = vmatprep.subr.mxu0 0.0
  %2171 = vmatpush1.xpose.msra.mxu0 0.0
  %2172 = vmatprep.subr.mxu0 0.0
  %2173 = vmatpush1.xpose.msra.mxu0 0.0
  %2174 = vmatprep.subr.mxu0 0.0
  %2175 = vmatpush1.xpose.msra.mxu0 0.0
  %2176 = vmatprep.subr.mxu0 0.0
  %2177 = vmatpush1.xpose.msra.mxu0 0.0
  %2178 = vmatprep.subr.mxu0 0.0
  %2179 = vmatpush1.xpose.msra.mxu0 0.0
  %2180 = vmatprep.subr.mxu0 0.0
  %2181 = vmatpush1.xpose.msra.mxu0 0.0
  %2182 = vmatprep.subr.mxu0 0.0
  %2183 = vmatpush1.xpose.msra.mxu0 0.0
  %2184 = vmatprep.subr.mxu0 0.0
  %2185 = vmatpush1.xpose.msra.mxu0 0.0
  %2186 = vmatprep.subr.mxu0 0.0
  %2187 = vmatpush1.xpose.msra.mxu0 0.0
  %2188 = vmatprep.subr.mxu0 0.0
  %2189 = vmatpush1.xpose.msra.mxu0 0.0
  %2190 = vmatprep.subr.mxu0 0.0
  %2191 = vmatpush1.xpose.msra.mxu0 0.0
  %2192 = vmatprep.subr.mxu0 0.0
  %2193 = vmatpush1.xpose.msra.mxu0 0.0
  %2194 = vmatprep.subr.mxu0 0.0
  %2195 = vmatpush1.xpose.msra.mxu0 0.0
  %2196 = vmatprep.subr.mxu0 0.0
  %2197 = vmatpush1.xpose.msra.mxu0 0.0
  %2198 = vmatprep.subr.mxu0 0.0
  %2199 = vmatpush1.xpose.msra.mxu0 0.0
  %2200 = vmatprep.mubr.f32.mxu0 0.0
  %2201 = vmatmul.mubr.f32.gmra.mrb[0].mxu0 %v2128
  %v2202 = vpop.f32.mrb[0].mxu0
  %v2203 = vadd.f32 0.0, %v2202
  %v2204 = vpop.f32.mrb[0].mxu0
  %2205 = vmatprep.mubr.f32.mxu0 0.0
  %2206 = vmatmul.mubr.f32.gmra.mrb[0].mxu0 %v2130
  %v2207 = vpop.f32.mrb[0].mxu0
  %v2208 = vadd.f32 0.0, %v2207
  %v2209 = vpop.f32.mrb[0].mxu0
  %2210 = vdwg.mxu0
  %v2211 = vmul.f32 %v2203, 0.25
  %v2212 = vmul.f32 %v2208, 0.25
  %v2213 = vadd.f32 %v2211, %v2114
  %v2214 = vadd.f32 %v2212, %v2119
  %v2215 = vadd.f32 %v2213, %v688
  %v2216 = vadd.f32 %v2214, %v690
  %v2217 = vsel %vm214, %v2215, -inf
  %2218 = vmax.xlane.f32.xlu0 %v2217
  %v2219 = vpop.xlane.xlu0 %2218
  %v2220 = vsel %vm214, %v2216, -inf
  %2221 = vmax.xlane.f32.xlu0 %v2220
  %v2222 = vpop.xlane.xlu0 %2221
  %v2223 = vsub.f32 %v2215, %v2219
  %v2224 = vsub.f32 %v2216, %v2222
  %v2225 = vmul.f32 %v2223, 1.442695
  %v2226 = vpow.pop %v2225
  %v2227 = vmul.f32 %v2224, 1.442695
  %v2228 = vpow.pop %v2227
  %v2229 = vsel %vm214, %v2226, 0.0
  %2230 = vadd.xlane.f32.xlu0 %v2229
  %v2231 = vpop.xlane.xlu0 %2230
  %v2232 = vsel %vm214, %v2228, 0.0
  %2233 = vadd.xlane.f32.xlu0 %v2232
  %v2234 = vpop.xlane.xlu0 %2233
  %v2235 = vrcp.pop %v2231
  %v2236 = vmul.f32 %v2226, %v2235
  %v2237 = vrcp.pop %v2234
  %v2238 = vmul.f32 %v2228, %v2237
  %2239 = vrot.lane.b32.xlu0 %v2028, 96
  %v2240 = vpop.permute.xlu0 %2239
  %2241 = vrot.lane.b32.xlu0 %v2033, 96
  %v2242 = vpop.permute.xlu0 %2241
  %v2246 = vsel %vm214, %v2236, 0
  %v2249 = vsel %vm214, %v2238, 0
  %2251 = vmatprep.subr.mxu0 0.0
  %2252 = vmatpush1.msra.mxu0 %v2240
  %2253 = vmatprep.subr.mxu0 0.0
  %2254 = vmatpush1.msra.mxu0 %v2242
  %2255 = vmatprep.subr.mxu0 0.0
  %2256 = vmatpush1.msra.mxu0 0.0
  %2257 = vmatprep.subr.mxu0 0.0
  %2258 = vmatpush1.msra.mxu0 0.0
  %2259 = vmatprep.subr.mxu0 0.0
  %2260 = vmatpush1.msra.mxu0 0.0
  %2261 = vmatprep.subr.mxu0 0.0
  %2262 = vmatpush1.msra.mxu0 0.0
  %2263 = vmatprep.subr.mxu0 0.0
  %2264 = vmatpush1.msra.mxu0 0.0
  %2265 = vmatprep.subr.mxu0 0.0
  %2266 = vmatpush1.msra.mxu0 0.0
  %2267 = vmatprep.subr.mxu0 0.0
  %2268 = vmatpush1.msra.mxu0 0.0
  %2269 = vmatprep.subr.mxu0 0.0
  %2270 = vmatpush1.msra.mxu0 0.0
  %2271 = vmatprep.subr.mxu0 0.0
  %2272 = vmatpush1.msra.mxu0 0.0
  %2273 = vmatprep.subr.mxu0 0.0
  %2274 = vmatpush1.msra.mxu0 0.0
  %2275 = vmatprep.subr.mxu0 0.0
  %2276 = vmatpush1.msra.mxu0 0.0
  %2277 = vmatprep.subr.mxu0 0.0
  %2278 = vmatpush1.msra.mxu0 0.0
  %2279 = vmatprep.subr.mxu0 0.0
  %2280 = vmatpush1.msra.mxu0 0.0
  %2281 = vmatprep.subr.mxu0 0.0
  %2282 = vmatpush1.msra.mxu0 0.0
  %2283 = vmatprep.subr.mxu0 0.0
  %2284 = vmatpush1.msra.mxu0 0.0
  %2285 = vmatprep.subr.mxu0 0.0
  %2286 = vmatpush1.msra.mxu0 0.0
  %2287 = vmatprep.subr.mxu0 0.0
  %2288 = vmatpush1.msra.mxu0 0.0
  %2289 = vmatprep.subr.mxu0 0.0
  %2290 = vmatpush1.msra.mxu0 0.0
  %2291 = vmatprep.subr.mxu0 0.0
  %2292 = vmatpush1.msra.mxu0 0.0
  %2293 = vmatprep.subr.mxu0 0.0
  %2294 = vmatpush1.msra.mxu0 0.0
  %2295 = vmatprep.subr.mxu0 0.0
  %2296 = vmatpush1.msra.mxu0 0.0
  %2297 = vmatprep.subr.mxu0 0.0
  %2298 = vmatpush1.msra.mxu0 0.0
  %2299 = vmatprep.subr.mxu0 0.0
  %2300 = vmatpush1.msra.mxu0 0.0
  %2301 = vmatprep.subr.mxu0 0.0
  %2302 = vmatpush1.msra.mxu0 0.0
  %2303 = vmatprep.subr.mxu0 0.0
  %2304 = vmatpush1.msra.mxu0 0.0
  %2305 = vmatprep.subr.mxu0 0.0
  %2306 = vmatpush1.msra.mxu0 0.0
  %2307 = vmatprep.subr.mxu0 0.0
  %2308 = vmatpush1.msra.mxu0 0.0
  %2309 = vmatprep.subr.mxu0 0.0
  %2310 = vmatpush1.msra.mxu0 0.0
  %2311 = vmatprep.subr.mxu0 0.0
  %2312 = vmatpush1.msra.mxu0 0.0
  %2313 = vmatprep.subr.mxu0 0.0
  %2314 = vmatpush1.msra.mxu0 0.0
  %2315 = vmatprep.mubr.f32.mxu0 0.0
  %2316 = vmatmul.mubr.f32.gmra.mrb[0].mxu0 %v2246
  %v2317 = vpop.f32.mrb[0].mxu0
  %v2318 = vadd.f32 0.0, %v2317
  %v2319 = vpop.f32.mrb[0].mxu0
  %2320 = vmatprep.mubr.f32.mxu0 0.0
  %2321 = vmatmul.mubr.f32.gmra.mrb[0].mxu0 %v2249
  %v2322 = vpop.f32.mrb[0].mxu0
  %v2323 = vadd.f32 0.0, %v2322
  %v2324 = vpop.f32.mrb[0].mxu0
  %2325 = vdwg.mxu0
  %v2327 = vsel %vm214, %v2318, 0
  %v2330 = vsel %vm214, %v2323, 0
  %2332 = vmatprep.subr.mxu0 0.0
  %2333 = vmatpush1.msra.mxu0 %v83
  %2334 = vmatprep.subr.mxu0 0.0
  %2335 = vmatpush1.msra.mxu0 %v84
  %2336 = vmatprep.subr.mxu0 0.0
  %2337 = vmatpush1.msra.mxu0 0.0
  %2338 = vmatprep.subr.mxu0 0.0
  %2339 = vmatpush1.msra.mxu0 0.0
  %2340 = vmatprep.subr.mxu0 0.0
  %2341 = vmatpush1.msra.mxu0 0.0
  %2342 = vmatprep.subr.mxu0 0.0
  %2343 = vmatpush1.msra.mxu0 0.0
  %2344 = vmatprep.subr.mxu0 0.0
  %2345 = vmatpush1.msra.mxu0 0.0
  %2346 = vmatprep.subr.mxu0 0.0
  %2347 = vmatpush1.msra.mxu0 0.0
  %2348 = vmatprep.subr.mxu0 0.0
  %2349 = vmatpush1.msra.mxu0 0.0
  %2350 = vmatprep.subr.mxu0 0.0
  %2351 = vmatpush1.msra.mxu0 0.0
  %2352 = vmatprep.subr.mxu0 0.0
  %2353 = vmatpush1.msra.mxu0 0.0
  %2354 = vmatprep.subr.mxu0 0.0
  %2355 = vmatpush1.msra.mxu0 0.0
  %2356 = vmatprep.subr.mxu0 0.0
  %2357 = vmatpush1.msra.mxu0 0.0
  %2358 = vmatprep.subr.mxu0 0.0
  %2359 = vmatpush1.msra.mxu0 0.0
  %2360 = vmatprep.subr.mxu0 0.0
  %2361 = vmatpush1.msra.mxu0 0.0
  %2362 = vmatprep.subr.mxu0 0.0
  %2363 = vmatpush1.msra.mxu0 0.0
  %2364 = vmatprep.subr.mxu0 0.0
  %2365 = vmatpush1.msra.mxu0 0.0
  %2366 = vmatprep.subr.mxu0 0.0
  %2367 = vmatpush1.msra.mxu0 0.0
  %2368 = vmatprep.subr.mxu0 0.0
  %2369 = vmatpush1.msra.mxu0 0.0
  %2370 = vmatprep.subr.mxu0 0.0
  %2371 = vmatpush1.msra.mxu0 0.0
  %2372 = vmatprep.subr.mxu0 0.0
  %2373 = vmatpush1.msra.mxu0 0.0
  %2374 = vmatprep.subr.mxu0 0.0
  %2375 = vmatpush1.msra.mxu0 0.0
  %2376 = vmatprep.subr.mxu0 0.0
  %2377 = vmatpush1.msra.mxu0 0.0
  %2378 = vmatprep.subr.mxu0 0.0
  %2379 = vmatpush1.msra.mxu0 0.0
  %2380 = vmatprep.subr.mxu0 0.0
  %2381 = vmatpush1.msra.mxu0 0.0
  %2382 = vmatprep.subr.mxu0 0.0
  %2383 = vmatpush1.msra.mxu0 0.0
  %2384 = vmatprep.subr.mxu0 0.0
  %2385 = vmatpush1.msra.mxu0 0.0
  %2386 = vmatprep.subr.mxu0 0.0
  %2387 = vmatpush1.msra.mxu0 0.0
  %2388 = vmatprep.subr.mxu0 0.0
  %2389 = vmatpush1.msra.mxu0 0.0
  %2390 = vmatprep.subr.mxu0 0.0
  %2391 = vmatpush1.msra.mxu0 0.0
  %2392 = vmatprep.subr.mxu0 0.0
  %2393 = vmatpush1.msra.mxu0 0.0
  %2394 = vmatprep.subr.mxu0 0.0
  %2395 = vmatpush1.msra.mxu0 0.0
  %2396 = vmatprep.mubr.f32.mxu0 0.0
  %2397 = vmatmul.mubr.f32.gmra.mrb[0].mxu0 %v2327
  %v2398 = vpop.f32.mrb[0].mxu0
  %v2399 = vadd.f32 0.0, %v2398
  %v2400 = vpop.f32.mrb[0].mxu0
  %2401 = vmatprep.mubr.f32.mxu0 0.0
  %2402 = vmatmul.mubr.f32.gmra.mrb[0].mxu0 %v2330
  %v2403 = vpop.f32.mrb[0].mxu0
  %v2404 = vadd.f32 0.0, %v2403
  %v2405 = vpop.f32.mrb[0].mxu0
  %2406 = vdwg.mxu0
  %v2407 = vadd.f32 %v1712, %v2399
  %v2408 = vadd.f32 %v1713, %v2404
  %v2410 = vsel %vm125, %v2407, 0
  %v2413 = vsel %vm125, %v2408, 0
  %2415 = vmatprep.subr.mxu0 0.0
  %2416 = vmatpush1.msra.mxu0 %v85
  %2417 = vmatprep.subr.mxu0 0.0
  %2418 = vmatpush1.msra.mxu0 %v86
  %2419 = vmatprep.subr.mxu0 0.0
  %2420 = vmatpush1.msra.mxu0 %v87
  %2421 = vmatprep.subr.mxu0 0.0
  %2422 = vmatpush1.msra.mxu0 %v88
  %2423 = vmatprep.subr.mxu0 0.0
  %2424 = vmatpush1.msra.mxu0 0.0
  %2425 = vmatprep.subr.mxu0 0.0
  %2426 = vmatpush1.msra.mxu0 0.0
  %2427 = vmatprep.subr.mxu0 0.0
  %2428 = vmatpush1.msra.mxu0 0.0
  %2429 = vmatprep.subr.mxu0 0.0
  %2430 = vmatpush1.msra.mxu0 0.0
  %2431 = vmatprep.subr.mxu0 0.0
  %2432 = vmatpush1.msra.mxu0 0.0
  %2433 = vmatprep.subr.mxu0 0.0
  %2434 = vmatpush1.msra.mxu0 0.0
  %2435 = vmatprep.subr.mxu0 0.0
  %2436 = vmatpush1.msra.mxu0 0.0
  %2437 = vmatprep.subr.mxu0 0.0
  %2438 = vmatpush1.msra.mxu0 0.0
  %2439 = vmatprep.subr.mxu0 0.0
  %2440 = vmatpush1.msra.mxu0 0.0
  %2441 = vmatprep.subr.mxu0 0.0
  %2442 = vmatpush1.msra.mxu0 0.0
  %2443 = vmatprep.subr.mxu0 0.0
  %2444 = vmatpush1.msra.mxu0 0.0
  %2445 = vmatprep.subr.mxu0 0.0
  %2446 = vmatpush1.msra.mxu0 0.0
  %2447 = vmatprep.subr.mxu0 0.0
  %2448 = vmatpush1.msra.mxu0 0.0
  %2449 = vmatprep.subr.mxu0 0.0
  %2450 = vmatpush1.msra.mxu0 0.0
  %2451 = vmatprep.subr.mxu0 0.0
  %2452 = vmatpush1.msra.mxu0 0.0
  %2453 = vmatprep.subr.mxu0 0.0
  %2454 = vmatpush1.msra.mxu0 0.0
  %2455 = vmatprep.subr.mxu0 0.0
  %2456 = vmatpush1.msra.mxu0 0.0
  %2457 = vmatprep.subr.mxu0 0.0
  %2458 = vmatpush1.msra.mxu0 0.0
  %2459 = vmatprep.subr.mxu0 0.0
  %2460 = vmatpush1.msra.mxu0 0.0
  %2461 = vmatprep.subr.mxu0 0.0
  %2462 = vmatpush1.msra.mxu0 0.0
  %2463 = vmatprep.subr.mxu0 0.0
  %2464 = vmatpush1.msra.mxu0 0.0
  %2465 = vmatprep.subr.mxu0 0.0
  %2466 = vmatpush1.msra.mxu0 0.0
  %2467 = vmatprep.subr.mxu0 0.0
  %2468 = vmatpush1.msra.mxu0 0.0
  %2469 = vmatprep.subr.mxu0 0.0
  %2470 = vmatpush1.msra.mxu0 0.0
  %2471 = vmatprep.subr.mxu0 0.0
  %2472 = vmatpush1.msra.mxu0 0.0
  %2473 = vmatprep.subr.mxu0 0.0
  %2474 = vmatpush1.msra.mxu0 0.0
  %2475 = vmatprep.subr.mxu0 0.0
  %2476 = vmatpush1.msra.mxu0 0.0
  %2477 = vmatprep.subr.mxu0 0.0
  %2478 = vmatpush1.msra.mxu0 0.0
  %2479 = vmatprep.mubr.f32.mxu0 0.0
  %2480 = vmatmul.mubr.f32.gmra.mrb[0].mxu0 %v2410
  %v2481 = vpop.f32.mrb[0].mxu0
  %v2482 = vadd.f32 0.0, %v2481
  %v2483 = vpop.f32.mrb[0].mxu0
  %2484 = vmatprep.mubr.f32.mxu0 0.0
  %2485 = vmatmul.mubr.f32.gmra.mrb[0].mxu0 %v2413
  %v2486 = vpop.f32.mrb[0].mxu0
  %v2487 = vadd.f32 0.0, %v2486
  %v2488 = vpop.f32.mrb[0].mxu0
  %2489 = vdwg.mxu0
  %v2490 = vmax.f32 %v2482, 0.0
  %v2491 = vmax.f32 %v2487, 0.0
  %2492 = vmatprep.subr.mxu0 0.0
  %2493 = vmatpush1.msra.mxu0 %v89
  %2494 = vmatprep.subr.mxu0 0.0
  %2495 = vmatpush1.msra.mxu0 %v90
  %2496 = vmatprep.subr.mxu0 0.0
  %2497 = vmatpush1.msra.mxu0 %v91
  %2498 = vmatprep.subr.mxu0 0.0
  %2499 = vmatpush1.msra.mxu0 %v92
  %2500 = vmatprep.subr.mxu0 0.0
  %2501 = vmatpush1.msra.mxu0 %v93
  %2502 = vmatprep.subr.mxu0 0.0
  %2503 = vmatpush1.msra.mxu0 %v94
  %2504 = vmatprep.subr.mxu0 0.0
  %2505 = vmatpush1.msra.mxu0 %v95
  %2506 = vmatprep.subr.mxu0 0.0
  %2507 = vmatpush1.msra.mxu0 %v96
  %2508 = vmatprep.subr.mxu0 0.0
  %2509 = vmatpush1.msra.mxu0 %v97
  %2510 = vmatprep.subr.mxu0 0.0
  %2511 = vmatpush1.msra.mxu0 %v98
  %2512 = vmatprep.subr.mxu0 0.0
  %2513 = vmatpush1.msra.mxu0 %v99
  %2514 = vmatprep.subr.mxu0 0.0
  %2515 = vmatpush1.msra.mxu0 %v100
  %2516 = vmatprep.subr.mxu0 0.0
  %2517 = vmatpush1.msra.mxu0 %v101
  %2518 = vmatprep.subr.mxu0 0.0
  %2519 = vmatpush1.msra.mxu0 %v102
  %2520 = vmatprep.subr.mxu0 0.0
  %2521 = vmatpush1.msra.mxu0 %v103
  %2522 = vmatprep.subr.mxu0 0.0
  %2523 = vmatpush1.msra.mxu0 %v104
  %2524 = vmatprep.subr.mxu0 0.0
  %2525 = vmatpush1.msra.mxu0 0.0
  %2526 = vmatprep.subr.mxu0 0.0
  %2527 = vmatpush1.msra.mxu0 0.0
  %2528 = vmatprep.subr.mxu0 0.0
  %2529 = vmatpush1.msra.mxu0 0.0
  %2530 = vmatprep.subr.mxu0 0.0
  %2531 = vmatpush1.msra.mxu0 0.0
  %2532 = vmatprep.subr.mxu0 0.0
  %2533 = vmatpush1.msra.mxu0 0.0
  %2534 = vmatprep.subr.mxu0 0.0
  %2535 = vmatpush1.msra.mxu0 0.0
  %2536 = vmatprep.subr.mxu0 0.0
  %2537 = vmatpush1.msra.mxu0 0.0
  %2538 = vmatprep.subr.mxu0 0.0
  %2539 = vmatpush1.msra.mxu0 0.0
  %2540 = vmatprep.subr.mxu0 0.0
  %2541 = vmatpush1.msra.mxu0 0.0
  %2542 = vmatprep.subr.mxu0 0.0
  %2543 = vmatpush1.msra.mxu0 0.0
  %2544 = vmatprep.subr.mxu0 0.0
  %2545 = vmatpush1.msra.mxu0 0.0
  %2546 = vmatprep.subr.mxu0 0.0
  %2547 = vmatpush1.msra.mxu0 0.0
  %2548 = vmatprep.subr.mxu0 0.0
  %2549 = vmatpush1.msra.mxu0 0.0
  %2550 = vmatprep.subr.mxu0 0.0
  %2551 = vmatpush1.msra.mxu0 0.0
  %2552 = vmatprep.subr.mxu0 0.0
  %2553 = vmatpush1.msra.mxu0 0.0
  %2554 = vmatprep.subr.mxu0 0.0
  %2555 = vmatpush1.msra.mxu0 0.0
  %2556 = vmatprep.mubr.f32.mxu0 0.0
  %2557 = vmatmul.mubr.f32.gmra.mrb[0].mxu0 %v2490
  %v2558 = vpop.f32.mrb[0].mxu0
  %v2559 = vadd.f32 0.0, %v2558
  %v2560 = vpop.f32.mrb[0].mxu0
  %2561 = vmatprep.mubr.f32.mxu0 0.0
  %2562 = vmatmul.mubr.f32.gmra.mrb[0].mxu0 %v2491
  %v2563 = vpop.f32.mrb[0].mxu0
  %v2564 = vadd.f32 0.0, %v2563
  %v2565 = vpop.f32.mrb[0].mxu0
  %2566 = vdwg.mxu0
  %v2567 = vadd.f32 %v2407, %v2559
  %v2568 = vadd.f32 %v2408, %v2564
  %v2570 = vsel %vm125, %v2567, 0
  %v2573 = vsel %vm125, %v2568, 0
  %2575 = vmatprep.subr.mxu0 0.0
  %2576 = vmatpush1.msra.mxu0 %v111
  %2577 = vmatprep.subr.mxu0 0.0
  %2578 = vmatpush1.msra.mxu0 %v112
  %2579 = vmatprep.subr.mxu0 0.0
  %2580 = vmatpush1.msra.mxu0 %v113
  %2581 = vmatprep.subr.mxu0 0.0
  %2582 = vmatpush1.msra.mxu0 %v114
  %2583 = vmatprep.subr.mxu0 0.0
  %2584 = vmatpush1.msra.mxu0 0.0
  %2585 = vmatprep.subr.mxu0 0.0
  %2586 = vmatpush1.msra.mxu0 0.0
  %2587 = vmatprep.subr.mxu0 0.0
  %2588 = vmatpush1.msra.mxu0 0.0
  %2589 = vmatprep.subr.mxu0 0.0
  %2590 = vmatpush1.msra.mxu0 0.0
  %2591 = vmatprep.subr.mxu0 0.0
  %2592 = vmatpush1.msra.mxu0 0.0
  %2593 = vmatprep.subr.mxu0 0.0
  %2594 = vmatpush1.msra.mxu0 0.0
  %2595 = vmatprep.subr.mxu0 0.0
  %2596 = vmatpush1.msra.mxu0 0.0
  %2597 = vmatprep.subr.mxu0 0.0
  %2598 = vmatpush1.msra.mxu0 0.0
  %2599 = vmatprep.subr.mxu0 0.0
  %2600 = vmatpush1.msra.mxu0 0.0
  %2601 = vmatprep.subr.mxu0 0.0
  %2602 = vmatpush1.msra.mxu0 0.0
  %2603 = vmatprep.subr.mxu0 0.0
  %2604 = vmatpush1.msra.mxu0 0.0
  %2605 = vmatprep.subr.mxu0 0.0
  %2606 = vmatpush1.msra.mxu0 0.0
  %2607 = vmatprep.subr.mxu0 0.0
  %2608 = vmatpush1.msra.mxu0 0.0
  %2609 = vmatprep.subr.mxu0 0.0
  %2610 = vmatpush1.msra.mxu0 0.0
  %2611 = vmatprep.subr.mxu0 0.0
  %2612 = vmatpush1.msra.mxu0 0.0
  %2613 = vmatprep.subr.mxu0 0.0
  %2614 = vmatpush1.msra.mxu0 0.0
  %2615 = vmatprep.subr.mxu0 0.0
  %2616 = vmatpush1.msra.mxu0 0.0
  %2617 = vmatprep.subr.mxu0 0.0
  %2618 = vmatpush1.msra.mxu0 0.0
  %2619 = vmatprep.subr.mxu0 0.0
  %2620 = vmatpush1.msra.mxu0 0.0
  %2621 = vmatprep.subr.mxu0 0.0
  %2622 = vmatpush1.msra.mxu0 0.0
  %2623 = vmatprep.subr.mxu0 0.0
  %2624 = vmatpush1.msra.mxu0 0.0
  %2625 = vmatprep.subr.mxu0 0.0
  %2626 = vmatpush1.msra.mxu0 0.0
  %2627 = vmatprep.subr.mxu0 0.0
  %2628 = vmatpush1.msra.mxu0 0.0
  %2629 = vmatprep.subr.mxu0 0.0
  %2630 = vmatpush1.msra.mxu0 0.0
  %2631 = vmatprep.subr.mxu0 0.0
  %2632 = vmatpush1.msra.mxu0 0.0
  %2633 = vmatprep.subr.mxu0 0.0
  %2634 = vmatpush1.msra.mxu0 0.0
  %2635 = vmatprep.subr.mxu0 0.0
  %2636 = vmatpush1.msra.mxu0 0.0
  %2637 = vmatprep.subr.mxu0 0.0
  %2638 = vmatpush1.msra.mxu0 0.0
  %2639 = vmatprep.mubr.f32.mxu0 0.0
  %2640 = vmatmul.mubr.f32.gmra.mrb[0].mxu0 %v2570
  %v2641 = vpop.f32.mrb[0].mxu0
  %v2642 = vadd.f32 0.0, %v2641
  %v2643 = vpop.f32.mrb[0].mxu0
  %2644 = vmatprep.mubr.f32.mxu0 0.0
  %2645 = vmatmul.mubr.f32.gmra.mrb[0].mxu0 %v2573
  %v2646 = vpop.f32.mrb[0].mxu0
  %v2647 = vadd.f32 0.0, %v2646
  %v2648 = vpop.f32.mrb[0].mxu0
  %2649 = vdwg.mxu0
  %v2650 = vmax.f32 %v2642, 0.0
  %v2651 = vmax.f32 %v2647, 0.0
  %v2653 = vsel %vm125, %v2650, 0
  %v2656 = vsel %vm125, %v2651, 0
  %2658 = vmatprep.subr.mxu0 0.0
  %2659 = vmatpush1.msra.mxu0 %v115
  %2660 = vmatprep.subr.mxu0 0.0
  %2661 = vmatpush1.msra.mxu0 %v116
  %2662 = vmatprep.subr.mxu0 0.0
  %2663 = vmatpush1.msra.mxu0 %v117
  %2664 = vmatprep.subr.mxu0 0.0
  %2665 = vmatpush1.msra.mxu0 %v118
  %2666 = vmatprep.subr.mxu0 0.0
  %2667 = vmatpush1.msra.mxu0 0.0
  %2668 = vmatprep.subr.mxu0 0.0
  %2669 = vmatpush1.msra.mxu0 0.0
  %2670 = vmatprep.subr.mxu0 0.0
  %2671 = vmatpush1.msra.mxu0 0.0
  %2672 = vmatprep.subr.mxu0 0.0
  %2673 = vmatpush1.msra.mxu0 0.0
  %2674 = vmatprep.subr.mxu0 0.0
  %2675 = vmatpush1.msra.mxu0 0.0
  %2676 = vmatprep.subr.mxu0 0.0
  %2677 = vmatpush1.msra.mxu0 0.0
  %2678 = vmatprep.subr.mxu0 0.0
  %2679 = vmatpush1.msra.mxu0 0.0
  %2680 = vmatprep.subr.mxu0 0.0
  %2681 = vmatpush1.msra.mxu0 0.0
  %2682 = vmatprep.subr.mxu0 0.0
  %2683 = vmatpush1.msra.mxu0 0.0
  %2684 = vmatprep.subr.mxu0 0.0
  %2685 = vmatpush1.msra.mxu0 0.0
  %2686 = vmatprep.subr.mxu0 0.0
  %2687 = vmatpush1.msra.mxu0 0.0
  %2688 = vmatprep.subr.mxu0 0.0
  %2689 = vmatpush1.msra.mxu0 0.0
  %2690 = vmatprep.subr.mxu0 0.0
  %2691 = vmatpush1.msra.mxu0 0.0
  %2692 = vmatprep.subr.mxu0 0.0
  %2693 = vmatpush1.msra.mxu0 0.0
  %2694 = vmatprep.subr.mxu0 0.0
  %2695 = vmatpush1.msra.mxu0 0.0
  %2696 = vmatprep.subr.mxu0 0.0
  %2697 = vmatpush1.msra.mxu0 0.0
  %2698 = vmatprep.subr.mxu0 0.0
  %2699 = vmatpush1.msra.mxu0 0.0
  %2700 = vmatprep.subr.mxu0 0.0
  %2701 = vmatpush1.msra.mxu0 0.0
  %2702 = vmatprep.subr.mxu0 0.0
  %2703 = vmatpush1.msra.mxu0 0.0
  %2704 = vmatprep.subr.mxu0 0.0
  %2705 = vmatpush1.msra.mxu0 0.0
  %2706 = vmatprep.subr.mxu0 0.0
  %2707 = vmatpush1.msra.mxu0 0.0
  %2708 = vmatprep.subr.mxu0 0.0
  %2709 = vmatpush1.msra.mxu0 0.0
  %2710 = vmatprep.subr.mxu0 0.0
  %2711 = vmatpush1.msra.mxu0 0.0
  %2712 = vmatprep.subr.mxu0 0.0
  %2713 = vmatpush1.msra.mxu0 0.0
  %2714 = vmatprep.subr.mxu0 0.0
  %2715 = vmatpush1.msra.mxu0 0.0
  %2716 = vmatprep.subr.mxu0 0.0
  %2717 = vmatpush1.msra.mxu0 0.0
  %2718 = vmatprep.subr.mxu0 0.0
  %2719 = vmatpush1.msra.mxu0 0.0
  %2720 = vmatprep.subr.mxu0 0.0
  %2721 = vmatpush1.msra.mxu0 0.0
  %2722 = vmatprep.mubr.f32.mxu0 0.0
  %2723 = vmatmul.mubr.f32.gmra.mrb[0].mxu0 %v2653
  %v2724 = vpop.f32.mrb[0].mxu0
  %v2725 = vadd.f32 0.0, %v2724
  %v2726 = vpop.f32.mrb[0].mxu0
  %2727 = vmatprep.mubr.f32.mxu0 0.0
  %2728 = vmatmul.mubr.f32.gmra.mrb[0].mxu0 %v2656
  %v2729 = vpop.f32.mrb[0].mxu0
  %v2730 = vadd.f32 0.0, %v2729
  %v2731 = vpop.f32.mrb[0].mxu0
  %2732 = vdwg.mxu0
  %v2733 = vadd.f32 %v29, %v2725
  %v2734 = vadd.f32 %v30, %v2730
  %2737 = vrot.lane.b32.xlu0 %v2725, 125
  %v2738 = vpop.permute.xlu0 %2737
  %2739 = vrot.lane.b32.xlu0 %v2730, 125
  %v2740 = vpop.permute.xlu0 %2739
  %v2741 = vsel %vm1403, %v2738, 0
  %v2743 = vsel %vm1403, %v2740, 0
  %2745 = vmatprep.subr.mxu0 0.0
  %2746 = vmatpush1.msra.mxu0 %v51
  %2747 = vmatprep.subr.mxu0 0.0
  %2748 = vmatpush1.msra.mxu0 %v52
  %2749 = vmatprep.subr.mxu0 0.0
  %2750 = vmatpush1.msra.mxu0 %v53
  %2751 = vmatprep.subr.mxu0 0.0
  %2752 = vmatpush1.msra.mxu0 %v54
  %2753 = vmatprep.subr.mxu0 0.0
  %2754 = vmatpush1.msra.mxu0 %v55
  %2755 = vmatprep.subr.mxu0 0.0
  %2756 = vmatpush1.msra.mxu0 %v1410
  %2757 = vmatprep.subr.mxu0 0.0
  %2758 = vmatpush1.msra.mxu0 0.0
  %2759 = vmatprep.subr.mxu0 0.0
  %2760 = vmatpush1.msra.mxu0 0.0
  %2761 = vmatprep.subr.mxu0 0.0
  %2762 = vmatpush1.msra.mxu0 0.0
  %2763 = vmatprep.subr.mxu0 0.0
  %2764 = vmatpush1.msra.mxu0 0.0
  %2765 = vmatprep.subr.mxu0 0.0
  %2766 = vmatpush1.msra.mxu0 0.0
  %2767 = vmatprep.subr.mxu0 0.0
  %2768 = vmatpush1.msra.mxu0 0.0
  %2769 = vmatprep.subr.mxu0 0.0
  %2770 = vmatpush1.msra.mxu0 0.0
  %2771 = vmatprep.subr.mxu0 0.0
  %2772 = vmatpush1.msra.mxu0 0.0
  %2773 = vmatprep.subr.mxu0 0.0
  %2774 = vmatpush1.msra.mxu0 0.0
  %2775 = vmatprep.subr.mxu0 0.0
  %2776 = vmatpush1.msra.mxu0 0.0
  %2777 = vmatprep.subr.mxu0 0.0
  %2778 = vmatpush1.msra.mxu0 0.0
  %2779 = vmatprep.subr.mxu0 0.0
  %2780 = vmatpush1.msra.mxu0 0.0
  %2781 = vmatprep.subr.mxu0 0.0
  %2782 = vmatpush1.msra.mxu0 0.0
  %2783 = vmatprep.subr.mxu0 0.0
  %2784 = vmatpush1.msra.mxu0 0.0
  %2785 = vmatprep.subr.mxu0 0.0
  %2786 = vmatpush1.msra.mxu0 0.0
  %2787 = vmatprep.subr.mxu0 0.0
  %2788 = vmatpush1.msra.mxu0 0.0
  %2789 = vmatprep.subr.mxu0 0.0
  %2790 = vmatpush1.msra.mxu0 0.0
  %2791 = vmatprep.subr.mxu0 0.0
  %2792 = vmatpush1.msra.mxu0 0.0
  %2793 = vmatprep.subr.mxu0 0.0
  %2794 = vmatpush1.msra.mxu0 0.0
  %2795 = vmatprep.subr.mxu0 0.0
  %2796 = vmatpush1.msra.mxu0 0.0
  %2797 = vmatprep.subr.mxu0 0.0
  %2798 = vmatpush1.msra.mxu0 0.0
  %2799 = vmatprep.subr.mxu0 0.0
  %2800 = vmatpush1.msra.mxu0 0.0
  %2801 = vmatprep.subr.mxu0 0.0
  %2802 = vmatpush1.msra.mxu0 0.0
  %2803 = vmatprep.subr.mxu0 0.0
  %2804 = vmatpush1.msra.mxu0 0.0
  %2805 = vmatprep.subr.mxu0 0.0
  %2806 = vmatpush1.msra.mxu0 0.0
  %2807 = vmatprep.subr.mxu0 0.0
  %2808 = vmatpush1.msra.mxu0 0.0
  %2809 = vmatprep.mubr.f32.mxu0 0.0
  %2810 = vmatmul.mubr.f32.gmra.mrb[0].mxu0 %v2741
  %v2811 = vpop.f32.mrb[0].mxu0
  %v2812 = vadd.f32 0.0, %v2811
  %v2813 = vpop.f32.mrb[0].mxu0
  %2814 = vmatprep.mubr.f32.mxu0 0.0
  %2815 = vmatmul.mubr.f32.gmra.mrb[0].mxu0 %v2743
  %v2816 = vpop.f32.mrb[0].mxu0
  %v2817 = vadd.f32 0.0, %v2816
  %v2818 = vpop.f32.mrb[0].mxu0
  %2819 = vdwg.mxu0
  %v2820 = vmul.f32 %v2812, %v27
  %v2821 = vmul.f32 %v2817, %v28
  %v2823 = vsel %vm1489, %v2733, 0
  %v2826 = vsel %vm1489, %v2734, 0
  %2828 = vmatprep.subr.mxu0 0.0
  %2829 = vmatpush1.msra.mxu0 %v1497
  %2830 = vmatprep.subr.mxu0 0.0
  %2831 = vmatpush1.msra.mxu0 0.0
  %2832 = vmatprep.subr.mxu0 0.0
  %2833 = vmatpush1.msra.mxu0 0.0
  %2834 = vmatprep.subr.mxu0 0.0
  %2835 = vmatpush1.msra.mxu0 0.0
  %2836 = vmatprep.subr.mxu0 0.0
  %2837 = vmatpush1.msra.mxu0 0.0
  %2838 = vmatprep.subr.mxu0 0.0
  %2839 = vmatpush1.msra.mxu0 0.0
  %2840 = vmatprep.subr.mxu0 0.0
  %2841 = vmatpush1.msra.mxu0 0.0
  %2842 = vmatprep.subr.mxu0 0.0
  %2843 = vmatpush1.msra.mxu0 0.0
  %2844 = vmatprep.subr.mxu0 0.0
  %2845 = vmatpush1.msra.mxu0 0.0
  %2846 = vmatprep.subr.mxu0 0.0
  %2847 = vmatpush1.msra.mxu0 0.0
  %2848 = vmatprep.subr.mxu0 0.0
  %2849 = vmatpush1.msra.mxu0 0.0
  %2850 = vmatprep.subr.mxu0 0.0
  %2851 = vmatpush1.msra.mxu0 0.0
  %2852 = vmatprep.subr.mxu0 0.0
  %2853 = vmatpush1.msra.mxu0 0.0
  %2854 = vmatprep.subr.mxu0 0.0
  %2855 = vmatpush1.msra.mxu0 0.0
  %2856 = vmatprep.subr.mxu0 0.0
  %2857 = vmatpush1.msra.mxu0 0.0
  %2858 = vmatprep.subr.mxu0 0.0
  %2859 = vmatpush1.msra.mxu0 0.0
  %2860 = vmatprep.subr.mxu0 0.0
  %2861 = vmatpush1.msra.mxu0 0.0
  %2862 = vmatprep.subr.mxu0 0.0
  %2863 = vmatpush1.msra.mxu0 0.0
  %2864 = vmatprep.subr.mxu0 0.0
  %2865 = vmatpush1.msra.mxu0 0.0
  %2866 = vmatprep.subr.mxu0 0.0
  %2867 = vmatpush1.msra.mxu0 0.0
  %2868 = vmatprep.subr.mxu0 0.0
  %2869 = vmatpush1.msra.mxu0 0.0
  %2870 = vmatprep.subr.mxu0 0.0
  %2871 = vmatpush1.msra.mxu0 0.0
  %2872 = vmatprep.subr.mxu0 0.0
  %2873 = vmatpush1.msra.mxu0 0.0
  %2874 = vmatprep.subr.mxu0 0.0
  %2875 = vmatpush1.msra.mxu0 0.0
  %2876 = vmatprep.subr.mxu0 0.0
  %2877 = vmatpush1.msra.mxu0 0.0
  %2878 = vmatprep.subr.mxu0 0.0
  %2879 = vmatpush1.msra.mxu0 0.0
  %2880 = vmatprep.subr.mxu0 0.0
  %2881 = vmatpush1.msra.mxu0 0.0
  %2882 = vmatprep.subr.mxu0 0.0
  %2883 = vmatpush1.msra.mxu0 0.0
  %2884 = vmatprep.subr.mxu0 0.0
  %2885 = vmatpush1.msra.mxu0 0.0
  %2886 = vmatprep.subr.mxu0 0.0
  %2887 = vmatpush1.msra.mxu0 0.0
  %2888 = vmatprep.subr.mxu0 0.0
  %2889 = vmatpush1.msra.mxu0 0.0
  %2890 = vmatprep.subr.mxu0 0.0
  %2891 = vmatpush1.msra.mxu0 0.0
  %2892 = vmatprep.mubr.f32.mxu0 0.0
  %2893 = vmatmul.mubr.f32.gmra.mrb[0].mxu0 %v2823
  %v2894 = vpop.f32.mrb[0].mxu0
  %v2895 = vadd.f32 0.0, %v2894
  %v2896 = vpop.f32.mrb[0].mxu0
  %2897 = vmatprep.mubr.f32.mxu0 0.0
  %2898 = vmatmul.mubr.f32.gmra.mrb[0].mxu0 %v2826
  %v2899 = vpop.f32.mrb[0].mxu0
  %v2900 = vadd.f32 0.0, %v2899
  %v2901 = vpop.f32.mrb[0].mxu0
  %2902 = vdwg.mxu0
  %v2904 = vsel %vm1574, %v2820, 0
  %v2907 = vsel %vm1574, %v2821, 0
  %2909 = vmatprep.subr.mxu0 0.0
  %2910 = vmatpush1.msra.mxu0 %v57
  %2911 = vmatprep.subr.mxu0 0.0
  %2912 = vmatpush1.msra.mxu0 %v58
  %2913 = vmatprep.subr.mxu0 0.0
  %2914 = vmatpush1.msra.mxu0 %v59
  %2915 = vmatprep.subr.mxu0 0.0
  %2916 = vmatpush1.msra.mxu0 %v60
  %2917 = vmatprep.subr.mxu0 0.0
  %2918 = vmatpush1.msra.mxu0 %v61
  %2919 = vmatprep.subr.mxu0 0.0
  %2920 = vmatpush1.msra.mxu0 %v62
  %2921 = vmatprep.subr.mxu0 0.0
  %2922 = vmatpush1.msra.mxu0 %v63
  %2923 = vmatprep.subr.mxu0 0.0
  %2924 = vmatpush1.msra.mxu0 %v64
  %2925 = vmatprep.subr.mxu0 0.0
  %2926 = vmatpush1.msra.mxu0 %v65
  %2927 = vmatprep.subr.mxu0 0.0
  %2928 = vmatpush1.msra.mxu0 %v66
  %2929 = vmatprep.subr.mxu0 0.0
  %2930 = vmatpush1.msra.mxu0 %v67
  %2931 = vmatprep.subr.mxu0 0.0
  %2932 = vmatpush1.msra.mxu0 %v68
  %2933 = vmatprep.subr.mxu0 0.0
  %2934 = vmatpush1.msra.mxu0 %v69
  %2935 = vmatprep.subr.mxu0 0.0
  %2936 = vmatpush1.msra.mxu0 %v70
  %2937 = vmatprep.subr.mxu0 0.0
  %2938 = vmatpush1.msra.mxu0 %v71
  %2939 = vmatprep.subr.mxu0 0.0
  %2940 = vmatpush1.msra.mxu0 %v1583
  %2941 = vmatprep.subr.mxu0 0.0
  %2942 = vmatpush1.msra.mxu0 0.0
  %2943 = vmatprep.subr.mxu0 0.0
  %2944 = vmatpush1.msra.mxu0 0.0
  %2945 = vmatprep.subr.mxu0 0.0
  %2946 = vmatpush1.msra.mxu0 0.0
  %2947 = vmatprep.subr.mxu0 0.0
  %2948 = vmatpush1.msra.mxu0 0.0
  %2949 = vmatprep.subr.mxu0 0.0
  %2950 = vmatpush1.msra.mxu0 0.0
  %2951 = vmatprep.subr.mxu0 0.0
  %2952 = vmatpush1.msra.mxu0 0.0
  %2953 = vmatprep.subr.mxu0 0.0
  %2954 = vmatpush1.msra.mxu0 0.0
  %2955 = vmatprep.subr.mxu0 0.0
  %2956 = vmatpush1.msra.mxu0 0.0
  %2957 = vmatprep.subr.mxu0 0.0
  %2958 = vmatpush1.msra.mxu0 0.0
  %2959 = vmatprep.subr.mxu0 0.0
  %2960 = vmatpush1.msra.mxu0 0.0
  %2961 = vmatprep.subr.mxu0 0.0
  %2962 = vmatpush1.msra.mxu0 0.0
  %2963 = vmatprep.subr.mxu0 0.0
  %2964 = vmatpush1.msra.mxu0 0.0
  %2965 = vmatprep.subr.mxu0 0.0
  %2966 = vmatpush1.msra.mxu0 0.0
  %2967 = vmatprep.subr.mxu0 0.0
  %2968 = vmatpush1.msra.mxu0 0.0
  %2969 = vmatprep.subr.mxu0 0.0
  %2970 = vmatpush1.msra.mxu0 0.0
  %2971 = vmatprep.subr.mxu0 0.0
  %2972 = vmatpush1.msra.mxu0 0.0
  %2973 = vmatprep.mubr.f32.mxu0 0.0
  %2974 = vmatmul.mubr.f32.gmra.mrb[0].mxu0 %v2904
  %v2975 = vpop.f32.mrb[0].mxu0
  %v2976 = vadd.f32 %v2895, %v2975
  %v2977 = vpop.f32.mrb[0].mxu0
  %2978 = vmatprep.mubr.f32.mxu0 0.0
  %2979 = vmatmul.mubr.f32.gmra.mrb[0].mxu0 %v2907
  %v2980 = vpop.f32.mrb[0].mxu0
  %v2981 = vadd.f32 %v2900, %v2980
  %v2982 = vpop.f32.mrb[0].mxu0
  %2983 = vdwg.mxu0
  %2984 = vrot.lane.b32.xlu0 %v2733, 42
  %v2985 = vpop.permute.xlu0 %2984
  %2986 = vrot.lane.b32.xlu0 %v2734, 42
  %v2987 = vpop.permute.xlu0 %2986
  %v2990 = vsel %vm1403, %v2976, %v2985
  %v2991 = vsel %vm1403, %v2981, %v2987
  %vm2992 = vcmask 367616
  %2993 = vst.msk [vmem:[%s6] sm:$0xff] %vm2992, %v2990
  %2994 = vst.msk [vmem:[%s6 + $0x8] sm:$0xff] %vm2992, %v2991
  // Predicated region
  $region26: #{denoise_forward.1} parent=0 // pred_check
    _
  $region27: #{denoise_forward.1} parent=0 // pred_check_branch
    %2996 = sbr.rel (0) target = $region29
  $region28: #{denoise_forward.1} parent=0 // pred_region
    _
  $region29: #{denoise_forward.1} parent=0 // pred_fallthru
    _
  // Predicated region
  $region30: #{denoise_forward.1} parent=0 // pred_check
    _
  $region31: #{denoise_forward.1} parent=0 // pred_check_branch
    %2998 = sbr.rel (0) target = $region33
  $region32: #{denoise_forward.1} parent=0 // pred_region
    _
  $region33: #{denoise_forward.1} parent=0 // pred_fallthru
    _

</llo_original>
